<compile_context>
chip_gen: v5e
topology: v5e:2x2
jax: 0.10.0
libtpu: 0.0.40
codegen_flags: <defaults>
</compile_context>

<pallas_src>
import functools
import math

import jax
import jax.numpy as jnp
from jax.experimental import pallas as pl
from jax.experimental.pallas import tpu as pltpu

_BN_EPS = 1e-5
_LANE = 128


# ----------------------------------------------------------------------------
# hardware-derived VMEM budget
# ----------------------------------------------------------------------------
def _round_up(x, m):
    return (x + m - 1) // m * m


def _tpu_vmem_capacity():
    try:
        return int(pltpu.get_tpu_info().vmem_capacity_bytes)
    except Exception:               # conservative default valid on v5e/v6e/v7x
        return 64 * 1024 * 1024


_VMEM_CAP = _tpu_vmem_capacity()
_VMEM_BUDGET = int(0.40 * _VMEM_CAP)      # planning budget for tile selection
_VMEM_LIMIT = int(0.80 * _VMEM_CAP)       # scoped limit handed to the compiler


def _cparams(semantics):
    return pltpu.CompilerParams(dimension_semantics=semantics,
                                vmem_limit_bytes=_VMEM_LIMIT)


def _resident_vmem_supported():
    """Probe full-array VMEM-resident input specs; fall back to blocked specs."""
    def k(w_ref, o_ref):
        o_ref[...] = w_ref[...] * 2.0

    try:
        x = jnp.ones((8, 128), jnp.float32)
        y = pl.pallas_call(
            k,
            out_shape=jax.ShapeDtypeStruct((8, 128), jnp.float32),
            grid_spec=pltpu.PrefetchScalarGridSpec(
                num_scalar_prefetch=0,
                grid=(1,),
                in_specs=[pl.BlockSpec(memory_space=pltpu.MemorySpace.VMEM)],
                out_specs=pl.BlockSpec((8, 128), lambda i: (0, 0)),
            ),
            compiler_params=_cparams(("arbitrary",)),
        )(x)
        jax.block_until_ready(y)
        return True
    except Exception:
        return False


_RESIDENT_OK = _resident_vmem_supported()


# ----------------------------------------------------------------------------
# Kernel 1: fused (matmul -> +bias -> LeakyReLU -> +residual), full K per step
# ----------------------------------------------------------------------------
def _mm_kernel(a_ref, w_ref, b_ref, *rest, apply_act):
    if len(rest) == 2:
        r_ref, o_ref = rest
    else:
        r_ref = None
        (o_ref,) = rest
    y = jnp.dot(a_ref[...], w_ref[...], preferred_element_type=jnp.float32)
    y = y + b_ref[...]                                   # folded-BN / conv bias
    if apply_act:
        y = jnp.where(y > 0, y, 0.1 * y)                 # LeakyReLU(0.1)
    if r_ref is not None:
        y = y + r_ref[...].astype(jnp.float32)           # fused residual (after act)
    o_ref[...] = y.astype(o_ref.dtype)


def _fused_matmul(a, w, bias, residual, apply_act, out_dtype):
    """out = act(a @ w + bias) [+ residual].  a:(M,K) bf16, w:(K,N) bf16
    (K, N multiples of 128), bias:(1,N) f32.  Single K step, no accumulator
    scratch; weights are VMEM-resident when a single N tile is used."""
    M, K = a.shape
    N = w.shape[1]
    osz = jnp.dtype(out_dtype).itemsize

    # M tiling: (8,128)-aligned tiles, prefer >=2 tiles so megacore can shard.
    if M >= 512:
        tm = 256
    elif M >= 256:
        tm = 128
    else:
        tm = _round_up(M, 8)
    Mp = _round_up(M, tm)

    def fits(tn_):
        w_mem = 2 * K * N if tn_ == N else 2 * (2 * K * tn_)
        a_mem = 2 * (2 * tm * K)
        o_mem = 2 * (osz * tm * tn_)
        r_mem = 2 * (2 * tm * tn_) if residual is not None else 0
        acc = 4 * tm * tn_
        return w_mem + a_mem + o_mem + r_mem + acc + (1 << 20) <= _VMEM_BUDGET

    tn = _LANE
    for cand in (N, 1024, 512, 256, 128):
        if cand <= N and N % cand == 0 and fits(cand):
            tn = cand
            break
    n_tiles = N // tn

    if Mp != M:
        a = jnp.pad(a, ((0, Mp - M), (0, 0)))
        if residual is not None:
            residual = jnp.pad(residual, ((0, Mp - M), (0, 0)))

    if n_tiles == 1 and _RESIDENT_OK:
        w_spec = pl.BlockSpec(memory_space=pltpu.MemorySpace.VMEM)   # resident copy
    elif n_tiles == 1:
        w_spec = pl.BlockSpec((K, N), lambda i, j: (0, 0))
    else:
        w_spec = pl.BlockSpec((K, tn), lambda i, j: (0, j))

    in_specs = [pl.BlockSpec((tm, K), lambda i, j: (i, 0)),
                w_spec,
                pl.BlockSpec((1, tn), lambda i, j: (0, j))]
    inputs = [a.astype(jnp.bfloat16), w, bias]
    if residual is not None:
        in_specs.append(pl.BlockSpec((tm, tn), lambda i, j: (i, j)))
        inputs.append(residual)

    out = pl.pallas_call(
        functools.partial(_mm_kernel, apply_act=apply_act),
        out_shape=jax.ShapeDtypeStruct((Mp, N), out_dtype),
        grid_spec=pltpu.PrefetchScalarGridSpec(
            num_scalar_prefetch=0,
            grid=(Mp // tm, n_tiles),            # M tiles lead (shardable on v7x)
            in_specs=in_specs,
            out_specs=pl.BlockSpec((tm, tn), lambda i, j: (i, j)),
        ),
        compiler_params=_cparams(("parallel", "parallel")),
    )(*inputs)
    return out[:M] if Mp != M else out


# ----------------------------------------------------------------------------
# Kernel 2: row-blocked 3x3 stride-1 conv (R output rows per grid step)
# ----------------------------------------------------------------------------
def _conv3_kernel(a_ref, w_ref, b_ref, *rest, R, Wrow, Wo, apply_act):
    if len(rest) == 2:
        r_ref, o_ref = rest
    else:
        r_ref = None
        (o_ref,) = rest

    a = a_ref[...]                              # ((R+2)*Wrow + 8, Cp) bf16 flat block
    span = (R + 2) * Wrow
    m = R * Wrow
    acc = None
    for dx in range(3):
        # Shift the narrow bf16 operand (not the f32 product): only two shifted
        # copies (dx=1,2); the dy offsets below are 8-aligned (Wrow % 8 == 0).
        a_dx = a[dx:dx + span, :] if dx else a[:span, :]
        for dy in range(3):
            a_tap = a_dx[dy * Wrow:dy * Wrow + m, :]
            p = jnp.dot(a_tap, w_ref[3 * dy + dx],
                        preferred_element_type=jnp.float32)
            acc = p if acc is None else acc + p

    y = acc + b_ref[...]                                 # folded-BN / conv bias
    if apply_act:
        y = jnp.where(y > 0, y, 0.1 * y)                 # LeakyReLU(0.1)
    y = y.reshape(R, Wrow, -1)[:, :Wo, :]                # drop width-padding cols
    if r_ref is not None:
        y = y + r_ref[...].astype(jnp.float32)           # fused residual (after act)
    o_ref[...] = y.astype(o_ref.dtype)


def _conv3x3_s1(x, w9, bias, residual, apply_act, out_dtype):
    """3x3 / stride-1 / pad-1 conv.  x:(B,H,W,Cp) bf16 (Cp % 128 == 0),
    w9:(9,Cp,Np) bf16 (BN folded), bias:(1,Np) f32.  Returns (B,H,W,Np)."""
    B, Ho, Wo, Cp = x.shape
    Np = w9.shape[2]
    Wp = Wo + 2
    Wrow = _round_up(Wp, 8)
    osz = jnp.dtype(out_dtype).itemsize

    def fits(r, tn_):
        length = (r + 2) * Wrow + 8
        w_mem = 2 * 9 * Cp * Np if tn_ == Np else 2 * (2 * 9 * Cp * tn_)
        a_mem = 2 * (2 * length * Cp)            # double-buffered bf16 row block
        shift = 2 * (2 * length * Cp)            # the two dx-shifted bf16 copies
        o_mem = 2 * (osz * r * Wo * tn_)
        r_mem = 2 * (2 * r * Wo * tn_) if residual is not None else 0
        acc = 4 * r * Wrow * tn_
        return w_mem + a_mem + shift + o_mem + r_mem + acc + (1 << 20) <= _VMEM_BUDGET

    # output-channel tile: full Np (resident weights) unless over the VMEM budget
    tn = _LANE
    for cand in (Np, 512, 256, 128):
        if cand <= Np and Np % cand == 0 and fits(1, cand):
            tn = cand
            break

    # rows per grid step: a divisor of Ho big enough to feed the MXU (M >= 512)
    divs = [d for d in range(1, Ho + 1) if Ho % d == 0]
    R = 1
    for d in divs:
        if d * Wrow > 4096 or not fits(d, tn):
            break
        R = d
        if d >= 8 and d * Wrow >= 512:
            break
    if R < 2:
        R = next(d for d in divs if d >= 2)
    n_yb = Ho // R
    n_tiles = Np // tn
    L = (R + 2) * Wrow + 8

    # Lay the padded input out as non-overlapping (R+2)-row flat blocks so each
    # grid step DMAs one large contiguous chunk instead of three single rows.
    xpad = jnp.pad(x, ((0, 0), (1, 1), (1, 1), (0, 0)))
    xpad = jnp.pad(xpad, ((0, 0), (0, max(0, R - 2)), (0, Wrow - Wp), (0, 0)))
    body = xpad[:, :n_yb * R].reshape(B, n_yb, R, Wrow, Cp)
    halo = xpad[:, R:R + n_yb * R].reshape(B, n_yb, R, Wrow, Cp)[:, :, :2]
    xb = jnp.concatenate([body, halo], axis=2).reshape(B, n_yb, (R + 2) * Wrow, Cp)
    xb = jnp.pad(xb, ((0, 0), (0, 0), (0, L - (R + 2) * Wrow), (0, 0)))

    if n_tiles == 1 and _RESIDENT_OK:
        w_spec = pl.BlockSpec(memory_space=pltpu.MemorySpace.VMEM)   # resident copy
    elif n_tiles == 1:
        w_spec = pl.BlockSpec((9, Cp, Np), lambda b, y, j: (0, 0, 0))
    else:
        w_spec = pl.BlockSpec((9, Cp, tn), lambda b, y, j: (0, 0, j))

    in_specs = [
        pl.BlockSpec((None, None, L, Cp), lambda b, y, j: (b, y, 0, 0)),
        w_spec,
        pl.BlockSpec((1, tn), lambda b, y, j: (0, j)),
    ]
    inputs = [xb, w9, bias]
    if residual is not None:
        in_specs.append(pl.BlockSpec((None, R, Wo, tn),
                                     lambda b, y, j: (b, y, 0, j)))
        inputs.append(residual)

    return pl.pallas_call(
        functools.partial(_conv3_kernel, R=R, Wrow=Wrow, Wo=Wo,
                          apply_act=apply_act),
        out_shape=jax.ShapeDtypeStruct((B, Ho, Wo, Np), out_dtype),
        grid_spec=pltpu.PrefetchScalarGridSpec(
            num_scalar_prefetch=0,
            grid=(B, n_yb, n_tiles),             # batch leads (shardable on v7x)
            in_specs=in_specs,
            out_specs=pl.BlockSpec((None, R, Wo, tn),
                                   lambda b, y, j: (b, y, 0, j)),
        ),
        compiler_params=_cparams(("parallel", "parallel", "arbitrary")),
    )(*inputs)


# ----------------------------------------------------------------------------
# Conv layer dispatcher (one jitted XLA program per layer shape)
# ----------------------------------------------------------------------------
@functools.partial(jax.jit, static_argnames=("stride", "apply_act", "out_dtype"))
def conv_layer(x, w, bias, residual, *, stride, apply_act, out_dtype):
    """x: NHWC bf16 with lane-padded channels.  w: (Cp,Np) for 1x1 conv,
    (9,Cp,Np) for 3x3 conv (BN folded, channels zero-padded to 128 multiples).
    bias: (1,Np) f32.  Output keeps lane-padded (Np) channels."""
    B, H, W_, Cp = x.shape
    if w.ndim == 2:                                      # 1x1 conv, stride 1
        Np = w.shape[1]
        a = x.reshape(B * H * W_, Cp)
        res = residual.reshape(B * H * W_, Np) if residual is not None else None
        out = _fused_matmul(a, w, bias, res, apply_act, out_dtype)
        return out.reshape(B, H, W_, Np)

    Np = w.shape[2]                                      # 3x3 conv, pad 1
    Ho = (H - 1) // stride + 1
    Wo = (W_ - 1) // stride + 1
    if stride == 1 and Ho >= 8 and Wo >= 8:
        return _conv3x3_s1(x, w, bias, residual, apply_act, out_dtype)

    # Fallback: im2col matmul (stride-2 downsamples and tiny feature maps).
    # TODO(synk): strided row-block kernel to keep patches out of HBM at scale.
    xpad = jnp.pad(x, ((0, 0), (1, 1), (1, 1), (0, 0)))
    cols = [xpad[:, dy:dy + (Ho - 1) * stride + 1:stride,
                 dx:dx + (Wo - 1) * stride + 1:stride, :]
            for dy in range(3) for dx in range(3)]
    a = jnp.concatenate(cols, axis=-1).reshape(B * Ho * Wo, 9 * Cp)
    res = residual.reshape(B * Ho * Wo, Np) if residual is not None else None
    out = _fused_matmul(a, w.reshape(9 * Cp, Np), bias, res, apply_act, out_dtype)
    return out.reshape(B, Ho, Wo, Np)


# ----------------------------------------------------------------------------
# Deterministic parameter construction + module structure mirroring PyTorch
# ----------------------------------------------------------------------------
class KeyGen:
    def __init__(self, seed):
        self._key = jax.random.PRNGKey(seed)

    def __call__(self):
        self._key, sub = jax.random.split(self._key)
        return sub


class ConvBNAct:
    """Conv2d(bias=False) + BatchNorm2d(eval, folded) + LeakyReLU(0.1),
    with channels zero-padded to multiples of 128 (lane-dense activations)."""

    def __init__(self, kg, in_c, out_c, k, stride, act=True,
                 use_bn=True, conv_bias=False):
        in_cp = _round_up(in_c, _LANE)
        out_cp = _round_up(out_c, _LANE)
        fan_in = in_c * k * k
        w = (jax.random.normal(kg(), (out_c, in_c, k, k), jnp.float32)
             * (1.0 / math.sqrt(fan_in)))
        if use_bn:
            gamma = jnp.ones((out_c,), jnp.float32)
            beta = jnp.zeros((out_c,), jnp.float32)
            rmean = jnp.zeros((out_c,), jnp.float32)
            rvar = jnp.ones((out_c,), jnp.float32)
            scale = gamma / jnp.sqrt(rvar + _BN_EPS)
            bias = beta - rmean * scale
        else:
            scale = jnp.ones((out_c,), jnp.float32)
            if conv_bias:
                bound = 1.0 / math.sqrt(fan_in)
                bias = jax.random.uniform(kg(), (out_c,), jnp.float32,
                                          -bound, bound)
            else:
                bias = jnp.zeros((out_c,), jnp.float32)

        wf = w * scale[:, None, None, None]               # fold BN scale into weights
        if k == 1:
            w2 = wf.reshape(out_c, in_c).T                               # (C, O)
            w2 = jnp.pad(w2, ((0, in_cp - in_c), (0, out_cp - out_c)))
            self.w = w2.astype(jnp.bfloat16)
        else:
            # (O,C,3,3) -> (dy,dx,C,O) -> (9,C,O): matches in-kernel tap order
            w9 = jnp.transpose(wf, (2, 3, 1, 0)).reshape(k * k, in_c, out_c)
            w9 = jnp.pad(w9, ((0, 0), (0, in_cp - in_c), (0, out_cp - out_c)))
            self.w = w9.astype(jnp.bfloat16)
        self.bias = jnp.pad(bias, (0, out_cp - out_c)).reshape(1, out_cp)
        self.stride = stride
        self.act = act

    def __call__(self, x, residual=None, out_dtype=jnp.bfloat16):
        return conv_layer(x, self.w, self.bias, residual,
                          stride=self.stride, apply_act=self.act,
                          out_dtype=out_dtype)


class Block:
    def __init__(self, kg, in_c):
        self.conv1 = ConvBNAct(kg, in_c, in_c // 2, 1, 1)
        self.conv2 = ConvBNAct(kg, in_c // 2, in_c, 3, 1)

    def __call__(self, x):
        h = self.conv1(x)
        return self.conv2(h, residual=x)   # residual add fused into the epilogue


class DarkNet53:
    def __init__(self, kg, in_channels):
        mid = 32
        self.conv0 = ConvBNAct(kg, in_channels, mid, 3, 1)
        self.layer1 = self._make_layer(kg, 1, mid)
        self.layer2 = self._make_layer(kg, 2, 2 * mid)
        self.layer3 = self._make_layer(kg, 8, 4 * mid)
        self.layer4 = self._make_layer(kg, 8, 8 * mid)
        self.layer5 = self._make_layer(kg, 4, 16 * mid)

    @staticmethod
    def _make_layer(kg, num_layers, in_c):
        layers = [ConvBNAct(kg, in_c, 2 * in_c, 3, 2)]
        for _ in range(num_layers):
            layers.append(Block(kg, 2 * in_c))
        return layers

    def __call__(self, x):
        x = self.conv0(x)
        for l in self.layer1:
            x = l(x)
        for l in self.layer2:
            x = l(x)
        for l in self.layer3:
            x = l(x)
        out_52 = x
        for l in self.layer4:
            x = l(x)
        out_26 = x
        for l in self.layer5:
            x = l(x)
        return out_52, out_26, x


class YoloNet:
    def __init__(self, seed, in_channels, num_classes):
        kg = KeyGen(seed)
        self.num_classes = num_classes
        self.out_size = (5 + num_classes) * 3
        self.backbone = DarkNet53(kg, in_channels)
        mc = [1024, 768, 512, 384, 256, 128]
        self.conv_set1 = self._conv_set(kg, mc[0], mc[2])
        self.output_13 = self._output_layers(kg, mc[2], self.out_size)
        self.conv_upsample1 = self._conv_upsample(kg, mc[2])
        self.conv_set2 = self._conv_set(kg, mc[1], mc[4])
        self.output_26 = self._output_layers(kg, mc[4], self.out_size)
        self.conv_upsample2 = self._conv_upsample(kg, mc[4])
        self.conv_set3 = self._conv_set(kg, mc[3], mc[5])
        self.output_52 = self._output_layers(kg, mc[5], self.out_size)

    @staticmethod
    def _conv_set(kg, in_c, out_c):
        return [
            ConvBNAct(kg, in_c, out_c, 1, 1),
            ConvBNAct(kg, out_c, 2 * out_c, 3, 1),
            ConvBNAct(kg, 2 * out_c, out_c, 1, 1),
            ConvBNAct(kg, out_c, 2 * out_c, 3, 1),
            ConvBNAct(kg, 2 * out_c, out_c, 1, 1),
        ]

    @staticmethod
    def _output_layers(kg, in_c, out_c):
        return [
            ConvBNAct(kg, in_c, 2 * in_c, 3, 1),
            ConvBNAct(kg, 2 * in_c, out_c, 1, 1,
                      act=False, use_bn=False, conv_bias=True),
        ]

    @staticmethod
    def _conv_upsample(kg, in_c):
        return [ConvBNAct(kg, in_c, in_c // 2, 1, 1)]

    @staticmethod
    def _seq(layers, x):
        for l in layers:
            x = l(x)
        return x

    def _head(self, layers, x):
        y = layers[0](x)
        out = layers[1](y, out_dtype=jnp.float32)    # detection heads emit f32
        return out[..., :self.out_size]              # trim lane padding -> 3*(nc+5)

    @staticmethod
    def _upsample2x(x):
        # nn.UpsamplingNearest2d(scale_factor=2) in NHWC
        return jnp.repeat(jnp.repeat(x, 2, axis=1), 2, axis=2)

    def _reshape_permute(self, out):
        # NHWC (B,H,W,3*(nc+5)) -> (B,3,H,W,nc+5), matching the NCHW
        # reshape(B,3,nc+5,H,W).permute(0,1,3,4,2) of the reference.
        B, H, W, _ = out.shape
        out = out.reshape(B, H, W, 3, self.num_classes + 5)
        return jnp.transpose(out, (0, 3, 1, 2, 4))

    def __call__(self, x_nchw):
        x = jnp.transpose(x_nchw, (0, 2, 3, 1)).astype(jnp.bfloat16)   # NCHW -> NHWC
        cin = x.shape[-1]
        cpad = _round_up(cin, _LANE)
        if cpad != cin:
            x = jnp.pad(x, ((0, 0), (0, 0), (0, 0), (0, cpad - cin)))  # lane-dense input
        out_52, out_26, out_13 = self.backbone(x)

        x = self._seq(self.conv_set1, out_13)
        o13 = self._reshape_permute(self._head(self.output_13, x))

        x = self._upsample2x(self._seq(self.conv_upsample1, x))
        x = jnp.concatenate([x, out_26], axis=-1)
        x = self._seq(self.conv_set2, x)
        o26 = self._reshape_permute(self._head(self.output_26, x))

        x = self._upsample2x(self._seq(self.conv_upsample2, x))
        x = jnp.concatenate([x, out_52], axis=-1)
        x = self._seq(self.conv_set3, x)
        o52 = self._reshape_permute(self._head(self.output_52, x))

        return [o13, o26, o52]


if __name__ == "__main__":
    in_channels, num_classes = 3, 2
    B, H, W = 2, 32, 32   # smallest spatial size divisible by the 32x backbone stride

    model = YoloNet(seed=0, in_channels=in_channels, num_classes=num_classes)
    x = jax.random.normal(jax.random.PRNGKey(0), (B, in_channels, H, W), jnp.float32)

    outs = model(x)
    outs = jax.block_until_ready(outs)

    assert outs[0].shape == (B, 3, H // 32, W // 32, num_classes + 5)
    assert outs[1].shape == (B, 3, H // 16, W // 16, num_classes + 5)
    assert outs[2].shape == (B, 3, H // 8, W // 8, num_classes + 5)
    assert all(bool(jnp.all(jnp.isfinite(o))) for o in outs)
    print("KERNEL_OK")
</pallas_src>

<mosaic_0001>
module attributes {stable_mosaic.version = 11 : i64} {
  func.func @k(%arg0: i32, %arg1: memref<8x128xf32, #tpu.memory_space<vmem>>, %arg2: memref<8x128xf32, #tpu.memory_space<vmem>>) attributes {dimension_semantics = [#tpu.dimension_semantics<arbitrary>], iteration_bounds = array<i64: 1>, scalar_prefetch = 0 : i64, scratch_operands = 0 : i64, tpu.core_type = #tpu.core_type<tc>, window_params = [{pipeline_mode = #tpu.pipeline_mode<synchronous>, transform_indices = @transform_0, window_bounds = array<i64: 8, 128>}, {pipeline_mode = #tpu.pipeline_mode<synchronous>, transform_indices = @transform_1, window_bounds = array<i64: 8, 128>}]} {
    %c0 = arith.constant 0 : index
    %c0_0 = arith.constant 0 : index
    %0 = vector.load %arg1[%c0, %c0_0] : memref<8x128xf32, #tpu.memory_space<vmem>>, vector<8x128xf32>
    %cst = arith.constant 2.000000e+00 : f32
    %1 = vector.broadcast %cst : f32 to vector<8x128xf32>
    %2 = arith.mulf %0, %1 : vector<8x128xf32>
    %c0_1 = arith.constant 0 : index
    %c0_2 = arith.constant 0 : index
    %3 = vector.load %arg2[%c0_1, %c0_2] : memref<8x128xf32, #tpu.memory_space<vmem>>, vector<8x128xf32>
    tpu.vector_store %arg2[%c0_1, %c0_2], %2 {strides = array<i32>} : memref<8x128xf32, #tpu.memory_space<vmem>>, vector<8x128xf32>,
    return
  }
  func.func @transform_0(%arg0: i32) -> (i32, i32) {
    %c0_i32 = arith.constant 0 : i32
    %c0_i32_0 = arith.constant 0 : i32
    %c0_i32_1 = arith.constant 0 : i32
    return %c0_i32, %c0_i32_0 : i32, i32
  }
  func.func @transform_1(%arg0: i32) -> (i32, i32) {
    %c0_i32 = arith.constant 0 : i32
    %c0_i32_0 = arith.constant 0 : i32
    %c0_i32_1 = arith.constant 0 : i32
    return %c0_i32, %c0_i32_0 : i32, i32
  }
}

module attributes {stable_mosaic.version = 11 : i64} {
  func.func @_conv3_kernel(%arg0: i32, %arg1: i32, %arg2: i32, %arg3: memref<1x1x728x128xbf16, #tpu.memory_space<vmem>>, %arg4: memref<9x128x128xbf16, #tpu.memory_space<vmem>>, %arg5: memref<1x128xf32, #tpu.memory_space<vmem>>, %arg6: memref<1x16x32x128xbf16, #tpu.memory_space<vmem>>) attributes {dimension_semantics = [#tpu.dimension_semantics<parallel>, #tpu.dimension_semantics<parallel>, #tpu.dimension_semantics<arbitrary>], iteration_bounds = array<i64: 2, 2, 1>, scalar_prefetch = 0 : i64, scratch_operands = 0 : i64, tpu.core_type = #tpu.core_type<tc>, window_params = [{transform_indices = @transform_0, window_bounds = array<i64: 1, 1, 728, 128>}, {pipeline_mode = #tpu.pipeline_mode<synchronous>, transform_indices = @transform_1, window_bounds = array<i64: 9, 128, 128>}, {transform_indices = @transform_2, window_bounds = array<i64: 1, 128>}, {transform_indices = @transform_3, window_bounds = array<i64: 1, 16, 32, 128>}]} {
    %c0 = arith.constant 0 : index
    %c0_0 = arith.constant 0 : index
    %c0_1 = arith.constant 0 : index
    %c0_2 = arith.constant 0 : index
    %0 = vector.load %arg3[%c0, %c0_0, %c0_1, %c0_2] : memref<1x1x728x128xbf16, #tpu.memory_space<vmem>>, vector<1x1x728x128xbf16>
    %1 = vector.shape_cast %0 : vector<1x1x728x128xbf16> to vector<728x128xbf16>
    %2 = vector.extract_strided_slice %1 {offsets = [0, 0], sizes = [720, 128], strides = [1, 1]} : vector<728x128xbf16> to vector<720x128xbf16>
    %3 = vector.extract_strided_slice %2 {offsets = [0, 0], sizes = [640, 128], strides = [1, 1]} : vector<720x128xbf16> to vector<640x128xbf16>
    %c0_3 = arith.constant 0 : index
    %c0_4 = arith.constant 0 : index
    %c0_5 = arith.constant 0 : index
    %4 = vector.load %arg4[%c0_3, %c0_4, %c0_5] : memref<9x128x128xbf16, #tpu.memory_space<vmem>>, vector<1x128x128xbf16>
    %5 = vector.shape_cast %4 : vector<1x128x128xbf16> to vector<128x128xbf16>
    %cst = arith.constant dense<0.000000e+00> : vector<640x128xf32>
    %6 = tpu.matmul %3, %5, %cst {dimension_numbers = #tpu.dot_dimension_numbers<[1], [0], [0], [1], [0, 0, 1, 1], [], []>} : vector<640x128xbf16>, vector<128x128xbf16>, vector<640x128xf32> -> vector<640x128xf32>
    %7 = vector.extract_strided_slice %2 {offsets = [40, 0], sizes = [640, 128], strides = [1, 1]} : vector<720x128xbf16> to vector<640x128xbf16>
    %c3 = arith.constant 3 : index
    %c0_6 = arith.constant 0 : index
    %c0_7 = arith.constant 0 : index
    %8 = vector.load %arg4[%c3, %c0_6, %c0_7] : memref<9x128x128xbf16, #tpu.memory_space<vmem>>, vector<1x128x128xbf16>
    %9 = vector.shape_cast %8 : vector<1x128x128xbf16> to vector<128x128xbf16>
    %cst_8 = arith.constant dense<0.000000e+00> : vector<640x128xf32>
    %10 = tpu.matmul %7, %9, %cst_8 {dimension_numbers = #tpu.dot_dimension_numbers<[1], [0], [0], [1], [0, 0, 1, 1], [], []>} : vector<640x128xbf16>, vector<128x128xbf16>, vector<640x128xf32> -> vector<640x128xf32>
    %11 = arith.addf %6, %10 : vector<640x128xf32>
    %12 = vector.extract_strided_slice %2 {offsets = [80, 0], sizes = [640, 128], strides = [1, 1]} : vector<720x128xbf16> to vector<640x128xbf16>
    %c6 = arith.constant 6 : index
    %c0_9 = arith.constant 0 : index
    %c0_10 = arith.constant 0 : index
    %13 = vector.load %arg4[%c6, %c0_9, %c0_10] : memref<9x128x128xbf16, #tpu.memory_space<vmem>>, vector<1x128x128xbf16>
    %14 = vector.shape_cast %13 : vector<1x128x128xbf16> to vector<128x128xbf16>
    %cst_11 = arith.constant dense<0.000000e+00> : vector<640x128xf32>
    %15 = tpu.matmul %12, %14, %cst_11 {dimension_numbers = #tpu.dot_dimension_numbers<[1], [0], [0], [1], [0, 0, 1, 1], [], []>} : vector<640x128xbf16>, vector<128x128xbf16>, vector<640x128xf32> -> vector<640x128xf32>
    %16 = arith.addf %11, %15 : vector<640x128xf32>
    %17 = vector.extract_strided_slice %1 {offsets = [1, 0], sizes = [720, 128], strides = [1, 1]} : vector<728x128xbf16> to vector<720x128xbf16>
    %18 = vector.extract_strided_slice %17 {offsets = [0, 0], sizes = [640, 128], strides = [1, 1]} : vector<720x128xbf16> to vector<640x128xbf16>
    %c1 = arith.constant 1 : index
    %c0_12 = arith.constant 0 : index
    %c0_13 = arith.constant 0 : index
    %19 = vector.load %arg4[%c1, %c0_12, %c0_13] : memref<9x128x128xbf16, #tpu.memory_space<vmem>>, vector<1x128x128xbf16>
    %20 = vector.shape_cast %19 : vector<1x128x128xbf16> to vector<128x128xbf16>
    %cst_14 = arith.constant dense<0.000000e+00> : vector<640x128xf32>
    %21 = tpu.matmul %18, %20, %cst_14 {dimension_numbers = #tpu.dot_dimension_numbers<[1], [0], [0], [1], [0, 0, 1, 1], [], []>} : vector<640x128xbf16>, vector<128x128xbf16>, vector<640x128xf32> -> vector<640x128xf32>
    %22 = arith.addf %16, %21 : vector<640x128xf32>
    %23 = vector.extract_strided_slice %17 {offsets = [40, 0], sizes = [640, 128], strides = [1, 1]} : vector<720x128xbf16> to vector<640x128xbf16>
    %c4 = arith.constant 4 : index
    %c0_15 = arith.constant 0 : index
    %c0_16 = arith.constant 0 : index
    %24 = vector.load %arg4[%c4, %c0_15, %c0_16] : memref<9x128x128xbf16, #tpu.memory_space<vmem>>, vector<1x128x128xbf16>
    %25 = vector.shape_cast %24 : vector<1x128x128xbf16> to vector<128x128xbf16>
    %cst_17 = arith.constant dense<0.000000e+00> : vector<640x128xf32>
    %26 = tpu.matmul %23, %25, %cst_17 {dimension_numbers = #tpu.dot_dimension_numbers<[1], [0], [0], [1], [0, 0, 1, 1], [], []>} : vector<640x128xbf16>, vector<128x128xbf16>, vector<640x128xf32> -> vector<640x128xf32>
    %27 = arith.addf %22, %26 : vector<640x128xf32>
    %28 = vector.extract_strided_slice %17 {offsets = [80, 0], sizes = [640, 128], strides = [1, 1]} : vector<720x128xbf16> to vector<640x128xbf16>
    %c7 = arith.constant 7 : index
    %c0_18 = arith.constant 0 : index
    %c0_19 = arith.constant 0 : index
    %29 = vector.load %arg4[%c7, %c0_18, %c0_19] : memref<9x128x128xbf16, #tpu.memory_space<vmem>>, vector<1x128x128xbf16>
    %30 = vector.shape_cast %29 : vector<1x128x128xbf16> to vector<128x128xbf16>
    %cst_20 = arith.constant dense<0.000000e+00> : vector<640x128xf32>
    %31 = tpu.matmul %28, %30, %cst_20 {dimension_numbers = #tpu.dot_dimension_numbers<[1], [0], [0], [1], [0, 0, 1, 1], [], []>} : vector<640x128xbf16>, vector<128x128xbf16>, vector<640x128xf32> -> vector<640x128xf32>
    %32 = arith.addf %27, %31 : vector<640x128xf32>
    %33 = vector.extract_strided_slice %1 {offsets = [2, 0], sizes = [720, 128], strides = [1, 1]} : vector<728x128xbf16> to vector<720x128xbf16>
    %34 = vector.extract_strided_slice %33 {offsets = [0, 0], sizes = [640, 128], strides = [1, 1]} : vector<720x128xbf16> to vector<640x128xbf16>
    %c2 = arith.constant 2 : index
    %c0_21 = arith.constant 0 : index
    %c0_22 = arith.constant 0 : index
    %35 = vector.load %arg4[%c2, %c0_21, %c0_22] : memref<9x128x128xbf16, #tpu.memory_space<vmem>>, vector<1x128x128xbf16>
    %36 = vector.shape_cast %35 : vector<1x128x128xbf16> to vector<128x128xbf16>
    %cst_23 = arith.constant dense<0.000000e+00> : vector<640x128xf32>
    %37 = tpu.matmul %34, %36, %cst_23 {dimension_numbers = #tpu.dot_dimension_numbers<[1], [0], [0], [1], [0, 0, 1, 1], [], []>} : vector<640x128xbf16>, vector<128x128xbf16>, vector<640x128xf32> -> vector<640x128xf32>
    %38 = arith.addf %32, %37 : vector<640x128xf32>
    %39 = vector.extract_strided_slice %33 {offsets = [40, 0], sizes = [640, 128], strides = [1, 1]} : vector<720x128xbf16> to vector<640x128xbf16>
    %c5 = arith.constant 5 : index
    %c0_24 = arith.constant 0 : index
    %c0_25 = arith.constant 0 : index
    %40 = vector.load %arg4[%c5, %c0_24, %c0_25] : memref<9x128x128xbf16, #tpu.memory_space<vmem>>, vector<1x128x128xbf16>
    %41 = vector.shape_cast %40 : vector<1x128x128xbf16> to vector<128x128xbf16>
    %cst_26 = arith.constant dense<0.000000e+00> : vector<640x128xf32>
    %42 = tpu.matmul %39, %41, %cst_26 {dimension_numbers = #tpu.dot_dimension_numbers<[1], [0], [0], [1], [0, 0, 1, 1], [], []>} : vector<640x128xbf16>, vector<128x128xbf16>, vector<640x128xf32> -> vector<640x128xf32>
    %43 = arith.addf %38, %42 : vector<640x128xf32>
    %44 = vector.extract_strided_slice %33 {offsets = [80, 0], sizes = [640, 128], strides = [1, 1]} : vector<720x128xbf16> to vector<640x128xbf16>
    %c8 = arith.constant 8 : index
    %c0_27 = arith.constant 0 : index
    %c0_28 = arith.constant 0 : index
    %45 = vector.load %arg4[%c8, %c0_27, %c0_28] : memref<9x128x128xbf16, #tpu.memory_space<vmem>>, vector<1x128x128xbf16>
    %46 = vector.shape_cast %45 : vector<1x128x128xbf16> to vector<128x128xbf16>
    %cst_29 = arith.constant dense<0.000000e+00> : vector<640x128xf32>
    %47 = tpu.matmul %44, %46, %cst_29 {dimension_numbers = #tpu.dot_dimension_numbers<[1], [0], [0], [1], [0, 0, 1, 1], [], []>} : vector<640x128xbf16>, vector<128x128xbf16>, vector<640x128xf32> -> vector<640x128xf32>
    %48 = arith.addf %43, %47 : vector<640x128xf32>
    %c0_30 = arith.constant 0 : index
    %c0_31 = arith.constant 0 : index
    %49 = vector.load %arg5[%c0_30, %c0_31] : memref<1x128xf32, #tpu.memory_space<vmem>>, vector<1x128xf32>
    %50 = vector.broadcast %49 : vector<1x128xf32> to vector<640x128xf32>
    %51 = arith.addf %48, %50 : vector<640x128xf32>
    %cst_32 = arith.constant 0.000000e+00 : f32
    %52 = vector.broadcast %cst_32 : f32 to vector<640x128xf32>
    %53 = arith.cmpf ogt, %51, %52 : vector<640x128xf32>
    %cst_33 = arith.constant 1.000000e-01 : f32
    %54 = vector.broadcast %cst_33 : f32 to vector<640x128xf32>
    %55 = arith.mulf %54, %51 : vector<640x128xf32>
    %56 = arith.select %53, %51, %55 : vector<640x128xi1>, vector<640x128xf32>
    %57 = vector.shape_cast %56 : vector<640x128xf32> to vector<16x40x128xf32>
    %58 = vector.extract_strided_slice %57 {offsets = [0, 0, 0], sizes = [16, 32, 128], strides = [1, 1, 1]} : vector<16x40x128xf32> to vector<16x32x128xf32>
    %59 = arith.truncf %58 : vector<16x32x128xf32> to vector<16x32x128xbf16>
    %c0_34 = arith.constant 0 : index
    %c0_35 = arith.constant 0 : index
    %c0_36 = arith.constant 0 : index
    %c0_37 = arith.constant 0 : index
    %60 = vector.load %arg6[%c0_34, %c0_35, %c0_36, %c0_37] : memref<1x16x32x128xbf16, #tpu.memory_space<vmem>>, vector<1x16x32x128xbf16>
    %61 = vector.shape_cast %60 : vector<1x16x32x128xbf16> to vector<16x32x128xbf16>
    %62 = vector.shape_cast %59 : vector<16x32x128xbf16> to vector<1x16x32x128xbf16>
    tpu.vector_store %arg6[%c0_34, %c0_35, %c0_36, %c0_37], %62 {strides = array<i32>} : memref<1x16x32x128xbf16, #tpu.memory_space<vmem>>, vector<1x16x32x128xbf16>,
    return
  }
  func.func @transform_0(%arg0: i32, %arg1: i32, %arg2: i32) -> (i32, i32, i32, i32) {
    %c0_i32 = arith.constant 0 : i32
    %c0_i32_0 = arith.constant 0 : i32
    %c0_i32_1 = arith.constant 0 : i32
    return %arg0, %arg1, %c0_i32, %c0_i32_0 : i32, i32, i32, i32
  }
  func.func @transform_1(%arg0: i32, %arg1: i32, %arg2: i32) -> (i32, i32, i32) {
    %c0_i32 = arith.constant 0 : i32
    %c0_i32_0 = arith.constant 0 : i32
    %c0_i32_1 = arith.constant 0 : i32
    %c0_i32_2 = arith.constant 0 : i32
    return %c0_i32, %c0_i32_0, %c0_i32_1 : i32, i32, i32
  }
  func.func @transform_2(%arg0: i32, %arg1: i32, %arg2: i32) -> (i32, i32) {
    %c0_i32 = arith.constant 0 : i32
    %c0_i32_0 = arith.constant 0 : i32
    return %c0_i32, %arg2 : i32, i32
  }
  func.func @transform_3(%arg0: i32, %arg1: i32, %arg2: i32) -> (i32, i32, i32, i32) {
    %c0_i32 = arith.constant 0 : i32
    %c0_i32_0 = arith.constant 0 : i32
    return %arg0, %arg1, %c0_i32, %arg2 : i32, i32, i32, i32
  }
}

</mosaic_0001>

<llo_original>
// kernel: tpu_custom_call.1
$region0: #{tpu_custom_call.1}
  #allocation0 [shape = 'u32[]', space=smem, size = 0x4, offset = 0x4, fixed_abs, tag = 'smem constant byte address 0x4 - core index']
  #allocation1 [shape = 'u32[72,128]{1,0:T(1,128)}', space=vmem, size = 0x9000, scoped, tag = 'internal scratch']
  %s0 = inlined_call_operand.hbm [shape: f32[8,128], index: 0, kind: input, shape index: {}]
  %s1 = inlined_call_operand.hbm [shape: f32[8,128], index: 1, kind: output, shape index: {}]
  %s2 = sld [smem:[#allocation0]]
  $region18: #{tpu_custom_call.1} parent=0
    _
  %s4 = ssub.s32 1, %s2
  %s5 = scalar_select 0, %s4, %s2
  $region1: #{tpu_custom_call.1} parent=0
    #allocation2 [shape = 'u8[4096]{0}', space=vmem, size = 0x1000, scoped, tag = 'input window, operand 0, single buffered']
    #allocation3 [shape = 's32[1]{0}', space=sflag, size = 0x4, scoped, tag = 'scoped memory for tpu_custom_call.1']
    #allocation4 [shape = 's32[1]{0}', space=sflag, size = 0x4, scoped, tag = 'scoped memory for tpu_custom_call.1']
    #allocation5 [shape = 'u8[4096]{0}', space=vmem, size = 0x1000, scoped, tag = 'output window, operand 0, single buffered']
    %6 = vsyncpa [#allocation3], 0
    %7 = vsyncpa [#allocation4], 0
    // Predicated region
    $region2: #{tpu_custom_call.1} parent=1 // pred_check
      _
    $region3: #{tpu_custom_call.1} parent=1 // pred_check_branch
      %9 = sbr.rel (0) target = $region5
    $region4: #{tpu_custom_call.1} parent=1 // pred_region
      %11 = vsyncadd [#allocation3], 0
      %s13 = sshll.u32 %s0, 4
      %s14 = int_to_ptr.hbm [resolvable:$true] %s13
      %s15 = sshll.u32 [#allocation2], 4
      %s16 = int_to_ptr.vmem [resolvable:$true] %s15
      %18 = dma.hbm_to_vmem [thread:$0]  %s14, 128, %s16, [#allocation3]
    $region5: #{tpu_custom_call.1} parent=1 // pred_fallthru
      _
    // Predicated region
    $region6: #{tpu_custom_call.1} parent=1 // pred_check
      _
    $region7: #{tpu_custom_call.1} parent=1 // pred_check_branch
      %20 = sbr.rel (0) target = $region9
    $region8: #{tpu_custom_call.1} parent=1 // pred_region
      %22 = dma.done [#allocation3], 128
    $region9: #{tpu_custom_call.1} parent=1 // pred_fallthru
      _
    %v23 = vld [vmem:[#allocation2] sm:$0xff]
    %v24 = vmul.f32 %v23, 2.0
    %25 = vst [vmem:[#allocation5] sm:$0xff] %v24
    // Predicated region
    $region10: #{tpu_custom_call.1} parent=1 // pred_check
      _
    $region11: #{tpu_custom_call.1} parent=1 // pred_check_branch
      %27 = sbr.rel (0) target = $region13
    $region12: #{tpu_custom_call.1} parent=1 // pred_region
      %29 = vsyncadd [#allocation4], 0
      %s31 = sshll.u32 [#allocation5], 4
      %s32 = int_to_ptr.vmem [resolvable:$true] %s31
      %s33 = sshll.u32 %s1, 4
      %s34 = int_to_ptr.hbm [resolvable:$true] %s33
      %36 = dma.vmem_to_hbm [thread:$0]  %s32, 128, %s34, [#allocation4]
    $region13: #{tpu_custom_call.1} parent=1 // pred_fallthru
      _
    // Predicated region
    $region14: #{tpu_custom_call.1} parent=1 // pred_check
      _
    $region15: #{tpu_custom_call.1} parent=1 // pred_check_branch
      %38 = sbr.rel (0) target = $region17
    $region16: #{tpu_custom_call.1} parent=1 // pred_region
      %40 = dma.done [#allocation4], 128
    $region17: #{tpu_custom_call.1} parent=1 // pred_fallthru
      _
    %41 = vsyncpa [#allocation3], 1
    %42 = vsyncpa [#allocation4], 1

// kernel: conv_layer.1
$region0: #{conv_layer.1}
  #allocation0 [shape = 'u32[]', space=smem, size = 0x4, offset = 0x4, fixed_abs, tag = 'smem constant byte address 0x4 - core index']
  #allocation1 [shape = 'u32[72,128]{1,0:T(1,128)}', space=vmem, size = 0x9000, scoped, tag = 'internal scratch']
  %s0 = inlined_call_operand.vmem [shape: bf16[2,2,728,128], index: 0, kind: input, shape index: {}]
  %s1 = inlined_call_operand.vmem [shape: bf16[9,128,128], index: 1, kind: input, shape index: {}]
  %s2 = inlined_call_operand.vmem [shape: f32[1,128], index: 2, kind: input, shape index: {}]
  %s3 = inlined_call_operand.hbm [shape: bf16[2,32,32,128], index: 3, kind: output, shape index: {}]
  %s4 = sld [smem:[#allocation0]]
  $region45: #{conv_layer.1} parent=0
    _
  %s6 = ssub.s32 1, %s4
  %s7 = scalar_select 0, %s6, %s4
  $region1: #{conv_layer.1} parent=0
    #allocation2 [shape = 'u8[262144]{0}', space=vmem, size = 0x40000, scoped, tag = 'output window, operand 0']
    #allocation3 [shape = 's32[2]{0}', space=sflag, size = 0x8, scoped, tag = 'scoped memory for conv_layer.1']
    %8 = vsyncpa [#allocation3], 0
    %s9 = scalar_lea.sflag [#allocation3], 1
    %10 = vsyncpa %s9, 0
    loop: start=0, step=1, limit=6
    $region2: #{conv_layer.1} parent=1 // loop_pre_header
      _
    $region3: #{conv_layer.1} parent=1 // loop_header
      %s12 = sphi 0, %s16
      %p13 = scmp.ge.s32.totalorder %s12, 6
      %s19 = sphi 0, %s38
      %s20 = sphi 0, %s34
      %s21 = sphi 0, %s30
      %s22 = sphi 0, %s19
      %s23 = sphi 0, %s20
      %s24 = sphi 0, %s21
      %s25 = sphi 0, %s22
      %s26 = sphi 0, %s23
      %s27 = sphi 0, %s24
      %s43 = sphi 0, %s45
      %s46 = sphi 0, %s43
      %s47 = sphi 0, %s46
      %s63 = sphi 0, %s47
      %s67 = sphi 0, %s67
      %s69 = sphi 0, %s67
      %s70 = sphi 0, %s69
      %s84 = sphi 0, %s70
      %s90 = sphi 0, %s92
      %s93 = sphi 0, %s90
      %s94 = sphi 0, %s93
      %s110 = sphi 0, %s94
      %s120 = sphi 0, %s122
      %s123 = sphi 0, %s120
      %s124 = sphi 0, %s123
      %s140 = sphi 0, %s124
    $region4: #{conv_layer.1} parent=1 // loop_header_branch
      %15 = sbr.rel (%p13) target = $region8
    $region5: #{conv_layer.1} parent=1 // loop_body
      %s17 = ssub.s32 %s12, 1
      %s18 = ssub.s32 %s12, 2
      %s28 = sadd.s32 1, %s21
      %p29 = scmp.ge.s32.totalorder %s28, 1
      %s30 = scalar_select %p29, 0, %s28
      %s31 = sadd.s32 1, %s20
      %s32 = scalar_select %p29, %s31, %s20
      %p33 = scmp.ge.s32.totalorder %s32, 2
      %s34 = scalar_select %p33, 0, %s32
      %s35 = sadd.s32 1, %s19
      %s36 = scalar_select %p33, %s35, %s19
      %p37 = scmp.ge.s32.totalorder %s36, 2
      %s38 = scalar_select %p37, 0, %s36
      %s39 = ssub.s32 %s19, %s38
      %s40 = ssub.s32 %s20, %s34
      %s41 = sor.u32 %s39, %s40
      %p42 = scmp.eq.s32.totalorder %s41, 0
      %s44 = sadd.s32 %s43, 1
      %s45 = scalar_select %p42, %s43, %s44
      %p48 = pneg %p42
      %p49 = scmp.eq.s32.totalorder %s12, 3
      %p50 = por %p48, %p49
      %p51 = scmp.ne.s32.totalorder %s43, %s46
      %p52 = scmp.eq.s32.totalorder %s12, 0
      %p53 = por %p51, %p52
      %p54 = scmp.ne.s32.totalorder %s43, %s46
      %p55 = scmp.eq.s32.totalorder %s17, 3
      %p56 = por %p54, %p55
      %p57 = scmp.ne.s32.totalorder %s46, %s47
      %p58 = scmp.eq.s32.totalorder %s17, 0
      %p59 = por %p57, %p58
      %p60 = scmp.ne.s32.totalorder %s46, %s47
      %p61 = scmp.eq.s32.totalorder %s18, 3
      %p62 = por %p60, %p61
      %p64 = scmp.ne.s32.totalorder %s47, %s63
      %p65 = scmp.eq.s32.totalorder %s18, 0
      %p66 = por %p64, %p65
      %s68 = sadd.s32 %s67, 1
      %p71 = scmp.eq.s32.totalorder %s12, 3
      %p72 = scmp.ne.s32.totalorder %s67, %s69
      %p73 = scmp.eq.s32.totalorder %s12, 0
      %p74 = por %p72, %p73
      %p75 = scmp.ne.s32.totalorder %s67, %s69
      %p76 = scmp.eq.s32.totalorder %s17, 3
      %p77 = por %p75, %p76
      %p78 = scmp.ne.s32.totalorder %s69, %s70
      %p79 = scmp.eq.s32.totalorder %s17, 0
      %p80 = por %p78, %p79
      %p81 = scmp.ne.s32.totalorder %s69, %s70
      %p82 = scmp.eq.s32.totalorder %s18, 3
      %p83 = por %p81, %p82
      %p85 = scmp.ne.s32.totalorder %s70, %s84
      %p86 = scmp.eq.s32.totalorder %s18, 0
      %p87 = por %p85, %p86
      %s88 = ssub.s32 %s21, %s30
      %p89 = scmp.eq.s32.totalorder %s88, 0
      %s91 = sadd.s32 %s90, 1
      %s92 = scalar_select %p89, %s90, %s91
      %p95 = pneg %p89
      %p96 = scmp.eq.s32.totalorder %s12, 3
      %p97 = por %p95, %p96
      %p98 = scmp.ne.s32.totalorder %s90, %s93
      %p99 = scmp.eq.s32.totalorder %s12, 0
      %p100 = por %p98, %p99
      %p101 = scmp.ne.s32.totalorder %s90, %s93
      %p102 = scmp.eq.s32.totalorder %s17, 3
      %p103 = por %p101, %p102
      %p104 = scmp.ne.s32.totalorder %s93, %s94
      %p105 = scmp.eq.s32.totalorder %s17, 0
      %p106 = por %p104, %p105
      %p107 = scmp.ne.s32.totalorder %s93, %s94
      %p108 = scmp.eq.s32.totalorder %s18, 3
      %p109 = por %p107, %p108
      %p111 = scmp.ne.s32.totalorder %s94, %s110
      %p112 = scmp.eq.s32.totalorder %s18, 0
      %p113 = por %p111, %p112
      %s114 = ssub.s32 %s19, %s38
      %s115 = ssub.s32 %s20, %s34
      %s116 = sor.u32 %s114, %s115
      %s117 = ssub.s32 %s21, %s30
      %s118 = sor.u32 %s116, %s117
      %p119 = scmp.eq.s32.totalorder %s118, 0
      %s121 = sadd.s32 %s120, 1
      %s122 = scalar_select %p119, %s120, %s121
      %p125 = pneg %p119
      %p126 = scmp.eq.s32.totalorder %s12, 3
      %p127 = por %p125, %p126
      %p128 = scmp.ne.s32.totalorder %s120, %s123
      %p129 = scmp.eq.s32.totalorder %s12, 0
      %p130 = por %p128, %p129
      %p131 = scmp.ne.s32.totalorder %s120, %s123
      %p132 = scmp.eq.s32.totalorder %s17, 3
      %p133 = por %p131, %p132
      %p134 = scmp.ne.s32.totalorder %s123, %s124
      %p135 = scmp.eq.s32.totalorder %s17, 0
      %p136 = por %p134, %p135
      %p137 = scmp.ne.s32.totalorder %s123, %s124
      %p138 = scmp.eq.s32.totalorder %s18, 3
      %p139 = por %p137, %p138
      %p141 = scmp.ne.s32.totalorder %s124, %s140
      %p142 = scmp.eq.s32.totalorder %s18, 0
      %p143 = por %p141, %p142
      %p144 = scmp.le.s32.totalorder 1, %s12
      %p145 = scmp.lt.s32.totalorder %s12, 5
      %p146 = pnand %p144, %p145
      %p147 = pneg %p146
      // Predicated region
      $region9: #{conv_layer.1} parent=5 // pred_check
        _
      $region10: #{conv_layer.1} parent=5 // pred_check_branch
        %149 = sbr.rel (%p146) target = $region12
      $region11: #{conv_layer.1} parent=5 // pred_region
        %s150 = ssub.s32 %s12, 1
        // Predicated region
        $region13: #{conv_layer.1} parent=11 // pred_check
          %p151 = pneg %p80
        $region14: #{conv_layer.1} parent=11 // pred_check_branch
          %153 = sbr.rel (%p151) target = $region16
        $region15: #{conv_layer.1} parent=11 // pred_region
          _
        $region16: #{conv_layer.1} parent=11 // pred_fallthru
          _
        // Predicated region
        $region17: #{conv_layer.1} parent=11 // pred_check
          %p154 = pneg %p106
        $region18: #{conv_layer.1} parent=11 // pred_check_branch
          %156 = sbr.rel (%p154) target = $region20
        $region19: #{conv_layer.1} parent=11 // pred_region
          %p157 = scmp.lt.s32.totalorder %s24, 0
          %s158 = scalar_select %p157, %s24, 0
          %s159 = scalar_lea.vmem %s2, %s158
        $region20: #{conv_layer.1} parent=11 // pred_fallthru
          _
      $region12: #{conv_layer.1} parent=5 // pred_fallthru
        _
      %p160 = scmp.lt.s32.totalorder %s12, 4
      // Predicated region
      $region21: #{conv_layer.1} parent=5 // pred_check
        %p161 = pneg %p160
      $region22: #{conv_layer.1} parent=5 // pred_check_branch
        %163 = sbr.rel (%p161) target = $region24
      $region23: #{conv_layer.1} parent=5 // pred_region
        // Predicated region
        $region25: #{conv_layer.1} parent=23 // pred_check
          %p164 = pneg %p53
        $region26: #{conv_layer.1} parent=23 // pred_check_branch
          %166 = sbr.rel (%p164) target = $region28
        $region27: #{conv_layer.1} parent=23 // pred_region
          %p167 = scmp.lt.s32.totalorder %s19, 1
          %s168 = scalar_select %p167, %s19, 1
          %p169 = scmp.lt.s32.totalorder %s20, 1
          %s170 = scalar_select %p169, %s20, 1
          %s171 = smul.addr %s170, 91
          %s172 = smul.addr %s168, 182
          %s173 = sadd.s32 %s171, %s172
          %s174 = smul.addr %s173, 4
          %s175 = scalar_lea.vmem %s0, %s174
        $region28: #{conv_layer.1} parent=23 // pred_fallthru
          _
      $region24: #{conv_layer.1} parent=5 // pred_fallthru
        _
      %p176 = scmp.le.s32.totalorder 1, %s12
      %p177 = scmp.lt.s32.totalorder %s12, 5
      %p178 = pnand %p176, %p177
      %p179 = pneg %p178
      // Predicated region
      $region29: #{conv_layer.1} parent=5 // pred_check
        _
      $region30: #{conv_layer.1} parent=5 // pred_check_branch
        %181 = sbr.rel (%p178) target = $region32
      $region31: #{conv_layer.1} parent=5 // pred_region
        %s182 = ssub.s32 %s12, 1
        %p183 = scmp.lt.s32.totalorder %s22, 1
        %s184 = scalar_select %p183, %s22, 1
        %p185 = scmp.lt.s32.totalorder %s23, 1
        %s186 = scalar_select %p185, %s23, 1
        %s187 = smul.addr %s186, 91
        %s188 = smul.addr %s184, 182
        %s189 = sadd.s32 %s187, %s188
        %s190 = smul.addr %s189, 4
        %s191 = scalar_lea.vmem %s0, %s190
        %p192 = pneg %p59
        %p193 = pneg %p56
        %p194 = pneg %p80
        %p195 = pneg %p77
        %p196 = scmp.lt.s32.totalorder %s24, 0
        %s197 = scalar_select %p196, %s24, 0
        %s198 = scalar_lea.vmem %s2, %s197
        %p199 = pneg %p106
        %p200 = pneg %p103
        %p201 = pneg %p136
        %p202 = pneg %p133
        %s203 = sand.u32 %s123, 1
        %s204 = scalar_lea.sflag [#allocation3], %s203
        %s205 = sand.u32 %s123, 1
        %s206 = smul.addr %s205, 256
        %s207 = scalar_lea.vmem [#allocation2], %s206
        %p208 = scmp.lt.s32.totalorder %s22, 1
        %s209 = scalar_select %p208, %s22, 1
        %p210 = scmp.lt.s32.totalorder %s23, 1
        %s211 = scalar_select %p210, %s23, 1
        %s212 = smul.addr %s211, 91
        %s213 = smul.addr %s209, 182
        %s214 = sadd.s32 %s212, %s213
        %s215 = smul.addr %s214, 4
        %s216 = scalar_lea.vmem %s0, %s215
        %p217 = scmp.lt.s32.totalorder %s24, 0
        %s218 = scalar_select %p217, %s24, 0
        %s219 = scalar_lea.vmem %s2, %s218
        %s220 = smul.u32 16, %s23
        %v221 = vld [vmem:[%s216] sm:$0xf]
        %v222 = vld [vmem:[%s216 + $0x4] sm:$0xf]
        %v223 = vld [vmem:[%s216 + $0x8] sm:$0xf]
        %v224 = vld [vmem:[%s216 + $0xc] sm:$0xf]
        %v225 = vld [vmem:[%s216 + $0x10] sm:$0xf]
        %v226 = vld [vmem:[%s216 + $0x14] sm:$0xf]
        %v227 = vld [vmem:[%s216 + $0x18] sm:$0xf]
        %v228 = vld [vmem:[%s216 + $0x1c] sm:$0xf]
        %v229 = vld [vmem:[%s216 + $0x20] sm:$0xf]
        %v230 = vld [vmem:[%s216 + $0x24] sm:$0xf]
        %v231 = vld [vmem:[%s216 + $0x28] sm:$0xf]
        %v232 = vld [vmem:[%s216 + $0x2c] sm:$0xf]
        %v233 = vld [vmem:[%s216 + $0x30] sm:$0xf]
        %v234 = vld [vmem:[%s216 + $0x34] sm:$0xf]
        %v235 = vld [vmem:[%s216 + $0x38] sm:$0xf]
        %v236 = vld [vmem:[%s216 + $0x3c] sm:$0xf]
        %v237 = vld [vmem:[%s216 + $0x40] sm:$0xf]
        %v238 = vld [vmem:[%s216 + $0x44] sm:$0xf]
        %v239 = vld [vmem:[%s216 + $0x48] sm:$0xf]
        %v240 = vld [vmem:[%s216 + $0x4c] sm:$0xf]
        %v241 = vld [vmem:[%s216 + $0x50] sm:$0xf]
        %v242 = vld [vmem:[%s216 + $0x54] sm:$0xf]
        %v243 = vld [vmem:[%s216 + $0x58] sm:$0xf]
        %v244 = vld [vmem:[%s216 + $0x5c] sm:$0xf]
        %v245 = vld [vmem:[%s216 + $0x60] sm:$0xf]
        %v246 = vld [vmem:[%s216 + $0x64] sm:$0xf]
        %v247 = vld [vmem:[%s216 + $0x68] sm:$0xf]
        %v248 = vld [vmem:[%s216 + $0x6c] sm:$0xf]
        %v249 = vld [vmem:[%s216 + $0x70] sm:$0xf]
        %v250 = vld [vmem:[%s216 + $0x74] sm:$0xf]
        %v251 = vld [vmem:[%s216 + $0x78] sm:$0xf]
        %v252 = vld [vmem:[%s216 + $0x7c] sm:$0xf]
        %v253 = vld [vmem:[%s216 + $0x80] sm:$0xf]
        %v254 = vld [vmem:[%s216 + $0x84] sm:$0xf]
        %v255 = vld [vmem:[%s216 + $0x88] sm:$0xf]
        %v256 = vld [vmem:[%s216 + $0x8c] sm:$0xf]
        %v257 = vld [vmem:[%s216 + $0x90] sm:$0xf]
        %v258 = vld [vmem:[%s216 + $0x94] sm:$0xf]
        %v259 = vld [vmem:[%s216 + $0x98] sm:$0xf]
        %v260 = vld [vmem:[%s216 + $0x9c] sm:$0xf]
        %v261 = vld [vmem:[%s216 + $0xa0] sm:$0xf]
        %v262 = vld [vmem:[%s216 + $0xa4] sm:$0xf]
        %v263 = vld [vmem:[%s216 + $0xa8] sm:$0xf]
        %v264 = vld [vmem:[%s216 + $0xac] sm:$0xf]
        %v265 = vld [vmem:[%s216 + $0xb0] sm:$0xf]
        %v266 = vld [vmem:[%s216 + $0xb4] sm:$0xf]
        %v267 = vld [vmem:[%s216 + $0xb8] sm:$0xf]
        %v268 = vld [vmem:[%s216 + $0xbc] sm:$0xf]
        %v269 = vld [vmem:[%s216 + $0xc0] sm:$0xf]
        %v270 = vld [vmem:[%s216 + $0xc4] sm:$0xf]
        %v271 = vld [vmem:[%s216 + $0xc8] sm:$0xf]
        %v272 = vld [vmem:[%s216 + $0xcc] sm:$0xf]
        %v273 = vld [vmem:[%s216 + $0xd0] sm:$0xf]
        %v274 = vld [vmem:[%s216 + $0xd4] sm:$0xf]
        %v275 = vld [vmem:[%s216 + $0xd8] sm:$0xf]
        %v276 = vld [vmem:[%s216 + $0xdc] sm:$0xf]
        %v277 = vld [vmem:[%s216 + $0xe0] sm:$0xf]
        %v278 = vld [vmem:[%s216 + $0xe4] sm:$0xf]
        %v279 = vld [vmem:[%s216 + $0xe8] sm:$0xf]
        %v280 = vld [vmem:[%s216 + $0xec] sm:$0xf]
        %v281 = vld [vmem:[%s216 + $0xf0] sm:$0xf]
        %v282 = vld [vmem:[%s216 + $0xf4] sm:$0xf]
        %v283 = vld [vmem:[%s216 + $0xf8] sm:$0xf]
        %v284 = vld [vmem:[%s216 + $0xfc] sm:$0xf]
        %v285 = vld [vmem:[%s216 + $0x100] sm:$0xf]
        %v286 = vld [vmem:[%s216 + $0x104] sm:$0xf]
        %v287 = vld [vmem:[%s216 + $0x108] sm:$0xf]
        %v288 = vld [vmem:[%s216 + $0x10c] sm:$0xf]
        %v289 = vld [vmem:[%s216 + $0x110] sm:$0xf]
        %v290 = vld [vmem:[%s216 + $0x114] sm:$0xf]
        %v291 = vld [vmem:[%s216 + $0x118] sm:$0xf]
        %v292 = vld [vmem:[%s216 + $0x11c] sm:$0xf]
        %v293 = vld [vmem:[%s216 + $0x120] sm:$0xf]
        %v294 = vld [vmem:[%s216 + $0x124] sm:$0xf]
        %v295 = vld [vmem:[%s216 + $0x128] sm:$0xf]
        %v296 = vld [vmem:[%s216 + $0x12c] sm:$0xf]
        %v297 = vld [vmem:[%s216 + $0x130] sm:$0xf]
        %v298 = vld [vmem:[%s216 + $0x134] sm:$0xf]
        %v299 = vld [vmem:[%s216 + $0x138] sm:$0xf]
        %v300 = vld [vmem:[%s216 + $0x13c] sm:$0xf]
        %v301 = vld [vmem:[%s216 + $0x140] sm:$0xf]
        %v302 = vld [vmem:[%s216 + $0x144] sm:$0xf]
        %v303 = vld [vmem:[%s216 + $0x148] sm:$0xf]
        %v304 = vld [vmem:[%s216 + $0x14c] sm:$0xf]
        %v305 = vld [vmem:[%s216 + $0x150] sm:$0xf]
        %v306 = vld [vmem:[%s216 + $0x154] sm:$0xf]
        %v307 = vld [vmem:[%s216 + $0x158] sm:$0xf]
        %v308 = vld [vmem:[%s216 + $0x15c] sm:$0xf]
        %v309 = vld [vmem:[%s216 + $0x160] sm:$0xf]
        %v310 = vld [vmem:[%s216 + $0x164] sm:$0xf]
        %v311 = vld [vmem:[%s216 + $0x168] sm:$0xf]
        %v312 = vld [vmem:[%s1] sm:$0xf]
        %v313 = vld [vmem:[%s1 + $0x4] sm:$0xf]
        %v314 = vld [vmem:[%s1 + $0x8] sm:$0xf]
        %v315 = vld [vmem:[%s1 + $0xc] sm:$0xf]
        %v316 = vld [vmem:[%s1 + $0x10] sm:$0xf]
        %v317 = vld [vmem:[%s1 + $0x14] sm:$0xf]
        %v318 = vld [vmem:[%s1 + $0x18] sm:$0xf]
        %v319 = vld [vmem:[%s1 + $0x1c] sm:$0xf]
        %v320 = vld [vmem:[%s1 + $0x20] sm:$0xf]
        %v321 = vld [vmem:[%s1 + $0x24] sm:$0xf]
        %v322 = vld [vmem:[%s1 + $0x28] sm:$0xf]
        %v323 = vld [vmem:[%s1 + $0x2c] sm:$0xf]
        %v324 = vld [vmem:[%s1 + $0x30] sm:$0xf]
        %v325 = vld [vmem:[%s1 + $0x34] sm:$0xf]
        %v326 = vld [vmem:[%s1 + $0x38] sm:$0xf]
        %v327 = vld [vmem:[%s1 + $0x3c] sm:$0xf]
        %s328 = scalar_lea.vmem %s1, 192
        %v329 = vld [vmem:[%s328] sm:$0xf]
        %v330 = vld [vmem:[%s328 + $0x4] sm:$0xf]
        %v331 = vld [vmem:[%s328 + $0x8] sm:$0xf]
        %v332 = vld [vmem:[%s328 + $0xc] sm:$0xf]
        %v333 = vld [vmem:[%s328 + $0x10] sm:$0xf]
        %v334 = vld [vmem:[%s328 + $0x14] sm:$0xf]
        %v335 = vld [vmem:[%s328 + $0x18] sm:$0xf]
        %v336 = vld [vmem:[%s328 + $0x1c] sm:$0xf]
        %v337 = vld [vmem:[%s328 + $0x20] sm:$0xf]
        %v338 = vld [vmem:[%s328 + $0x24] sm:$0xf]
        %v339 = vld [vmem:[%s328 + $0x28] sm:$0xf]
        %v340 = vld [vmem:[%s328 + $0x2c] sm:$0xf]
        %v341 = vld [vmem:[%s328 + $0x30] sm:$0xf]
        %v342 = vld [vmem:[%s328 + $0x34] sm:$0xf]
        %v343 = vld [vmem:[%s328 + $0x38] sm:$0xf]
        %v344 = vld [vmem:[%s328 + $0x3c] sm:$0xf]
        %v425 = vunpack.c.l.b16 %v226
        %v426 = vunpack.c.l.b16 %v227
        %v427 = vunpack.c.l.b16 %v228
        %v428 = vunpack.c.l.b16 %v229
        %v429 = vunpack.c.l.b16 %v230
        %v430 = vunpack.c.l.b16 %v231
        %v431 = vunpack.c.l.b16 %v232
        %v432 = vunpack.c.l.b16 %v233
        %v433 = vunpack.c.l.b16 %v234
        %v434 = vunpack.c.l.b16 %v235
        %v435 = vunpack.c.l.b16 %v236
        %v436 = vunpack.c.l.b16 %v237
        %v437 = vunpack.c.l.b16 %v238
        %v438 = vunpack.c.l.b16 %v239
        %v439 = vunpack.c.l.b16 %v240
        %v440 = vunpack.c.l.b16 %v241
        %v441 = vunpack.c.l.b16 %v242
        %v442 = vunpack.c.l.b16 %v243
        %v443 = vunpack.c.l.b16 %v244
        %v444 = vunpack.c.l.b16 %v245
        %v445 = vunpack.c.l.b16 %v246
        %v446 = vunpack.c.l.b16 %v247
        %v447 = vunpack.c.l.b16 %v248
        %v448 = vunpack.c.l.b16 %v249
        %v449 = vunpack.c.l.b16 %v250
        %v450 = vunpack.c.l.b16 %v251
        %v451 = vunpack.c.l.b16 %v252
        %v452 = vunpack.c.l.b16 %v253
        %v453 = vunpack.c.l.b16 %v254
        %v454 = vunpack.c.l.b16 %v255
        %v455 = vunpack.c.l.b16 %v256
        %v456 = vunpack.c.l.b16 %v257
        %v457 = vunpack.c.l.b16 %v258
        %v458 = vunpack.c.l.b16 %v259
        %v459 = vunpack.c.l.b16 %v260
        %v460 = vunpack.c.l.b16 %v261
        %v461 = vunpack.c.l.b16 %v262
        %v462 = vunpack.c.l.b16 %v263
        %v463 = vunpack.c.l.b16 %v264
        %v464 = vunpack.c.l.b16 %v265
        %v465 = vunpack.c.l.b16 %v266
        %v466 = vunpack.c.l.b16 %v267
        %v467 = vunpack.c.l.b16 %v268
        %v468 = vunpack.c.l.b16 %v269
        %v469 = vunpack.c.l.b16 %v270
        %v470 = vunpack.c.l.b16 %v271
        %v471 = vunpack.c.l.b16 %v272
        %v472 = vunpack.c.l.b16 %v273
        %v473 = vunpack.c.l.b16 %v274
        %v474 = vunpack.c.l.b16 %v275
        %v475 = vunpack.c.l.b16 %v276
        %v476 = vunpack.c.l.b16 %v277
        %v477 = vunpack.c.l.b16 %v278
        %v478 = vunpack.c.l.b16 %v279
        %v479 = vunpack.c.l.b16 %v280
        %v480 = vunpack.c.l.b16 %v281
        %v481 = vunpack.c.l.b16 %v282
        %v482 = vunpack.c.l.b16 %v283
        %v483 = vunpack.c.l.b16 %v284
        %v484 = vunpack.c.l.b16 %v285
        %v485 = vunpack.c.l.b16 %v286
        %v486 = vunpack.c.l.b16 %v287
        %v487 = vunpack.c.l.b16 %v288
        %v488 = vunpack.c.l.b16 %v289
        %v489 = vunpack.c.l.b16 %v290
        %v490 = vunpack.c.l.b16 %v291
        %v491 = vunpack.c.l.b16 %v292
        %v492 = vunpack.c.l.b16 %v293
        %v493 = vunpack.c.l.b16 %v294
        %v494 = vunpack.c.l.b16 %v295
        %v495 = vunpack.c.l.b16 %v296
        %v496 = vunpack.c.l.b16 %v297
        %v497 = vunpack.c.l.b16 %v298
        %v498 = vunpack.c.l.b16 %v299
        %v499 = vunpack.c.l.b16 %v300
        %v500 = vunpack.c.l.b16 %v301
        %v501 = vunpack.c.l.b16 %v302
        %v502 = vunpack.c.l.b16 %v303
        %v503 = vunpack.c.l.b16 %v304
        %v504 = vunpack.c.l.b16 %v305
        %v505 = vpack.c.b16 %v426, %v425
        %v506 = vpack.c.b16 %v428, %v427
        %v507 = vpack.c.b16 %v430, %v429
        %v508 = vpack.c.b16 %v432, %v431
        %v509 = vpack.c.b16 %v434, %v433
        %v510 = vpack.c.b16 %v436, %v435
        %v511 = vpack.c.b16 %v438, %v437
        %v512 = vpack.c.b16 %v440, %v439
        %v513 = vpack.c.b16 %v442, %v441
        %v514 = vpack.c.b16 %v444, %v443
        %v515 = vpack.c.b16 %v446, %v445
        %v516 = vpack.c.b16 %v448, %v447
        %v517 = vpack.c.b16 %v450, %v449
        %v518 = vpack.c.b16 %v452, %v451
        %v519 = vpack.c.b16 %v454, %v453
        %v520 = vpack.c.b16 %v456, %v455
        %v521 = vpack.c.b16 %v458, %v457
        %v522 = vpack.c.b16 %v460, %v459
        %v523 = vpack.c.b16 %v462, %v461
        %v524 = vpack.c.b16 %v464, %v463
        %v525 = vpack.c.b16 %v466, %v465
        %v526 = vpack.c.b16 %v468, %v467
        %v527 = vpack.c.b16 %v470, %v469
        %v528 = vpack.c.b16 %v472, %v471
        %v529 = vpack.c.b16 %v474, %v473
        %v530 = vpack.c.b16 %v476, %v475
        %v531 = vpack.c.b16 %v478, %v477
        %v532 = vpack.c.b16 %v480, %v479
        %v533 = vpack.c.b16 %v482, %v481
        %v534 = vpack.c.b16 %v484, %v483
        %v535 = vpack.c.b16 %v486, %v485
        %v536 = vpack.c.b16 %v488, %v487
        %v537 = vpack.c.b16 %v490, %v489
        %v538 = vpack.c.b16 %v492, %v491
        %v539 = vpack.c.b16 %v494, %v493
        %v540 = vpack.c.b16 %v496, %v495
        %v541 = vpack.c.b16 %v498, %v497
        %v542 = vpack.c.b16 %v500, %v499
        %v543 = vpack.c.b16 %v502, %v501
        %v544 = vpack.c.b16 %v504, %v503
        %v601 = vunpack.c.l.b16 %v329
        %v602 = vunpack.c.l.b16 %v330
        %v603 = vunpack.c.l.b16 %v331
        %v604 = vunpack.c.l.b16 %v332
        %v605 = vunpack.c.l.b16 %v333
        %v606 = vunpack.c.l.b16 %v334
        %v607 = vunpack.c.l.b16 %v335
        %v608 = vunpack.c.l.b16 %v336
        %v609 = vunpack.c.l.b16 %v337
        %v610 = vunpack.c.l.b16 %v338
        %v611 = vunpack.c.l.b16 %v339
        %v612 = vunpack.c.l.b16 %v340
        %v613 = vunpack.c.l.b16 %v341
        %v614 = vunpack.c.l.b16 %v342
        %v615 = vunpack.c.l.b16 %v343
        %v616 = vunpack.c.l.b16 %v344
        %v617 = vpack.c.b16 %v602, %v601
        %v618 = vpack.c.b16 %v604, %v603
        %v619 = vpack.c.b16 %v606, %v605
        %v620 = vpack.c.b16 %v608, %v607
        %v621 = vpack.c.b16 %v610, %v609
        %v622 = vpack.c.b16 %v612, %v611
        %v623 = vpack.c.b16 %v614, %v613
        %v624 = vpack.c.b16 %v616, %v615
        %633 = vmatpush.bf16.msra.mxu0 %v624
        %634 = vmatpush.bf16.msra.mxu0 %v623
        %635 = vmatpush.bf16.msra.mxu0 %v622
        %636 = vmatpush.bf16.msra.mxu0 %v621
        %637 = vmatpush.bf16.msra.mxu0 %v620
        %638 = vmatpush.bf16.msra.mxu0 %v619
        %639 = vmatpush.bf16.msra.mxu0 %v618
        %640 = vmatpush.bf16.msra.mxu0 %v617
        %641 = vmatmul.bf16.gmra.mxu0 %v505
        %v642 = vpop.f32.mrf.mxu0
        %v643 = vadd.f32 0.0, %v642
        %v644 = vpop.f32.mrf.mxu0
        %v645 = vadd.f32 0.0, %v644
        %646 = vmatmul.bf16.gmra.mxu0 %v506
        %v647 = vpop.f32.mrf.mxu0
        %v648 = vadd.f32 0.0, %v647
        %v649 = vpop.f32.mrf.mxu0
        %v650 = vadd.f32 0.0, %v649
        %651 = vmatmul.bf16.gmra.mxu0 %v507
        %v652 = vpop.f32.mrf.mxu0
        %v653 = vpop.f32.mrf.mxu0
        %v654 = vadd.f32 0.0, %v653
        %655 = vmatmul.bf16.gmra.mxu0 %v508
        %v656 = vpop.f32.mrf.mxu0
        %v657 = vadd.f32 0.0, %v656
        %v658 = vpop.f32.mrf.mxu0
        %v659 = vadd.f32 0.0, %v658
        %660 = vmatmul.bf16.gmra.mxu0 %v509
        %v661 = vpop.f32.mrf.mxu0
        %v662 = vadd.f32 0.0, %v661
        %v663 = vpop.f32.mrf.mxu0
        %664 = vmatmul.bf16.gmra.mxu0 %v510
        %v665 = vpop.f32.mrf.mxu0
        %v666 = vadd.f32 0.0, %v665
        %v667 = vpop.f32.mrf.mxu0
        %v668 = vadd.f32 0.0, %v667
        %669 = vmatmul.bf16.gmra.mxu0 %v511
        %v670 = vpop.f32.mrf.mxu0
        %v671 = vadd.f32 0.0, %v670
        %v672 = vpop.f32.mrf.mxu0
        %v673 = vadd.f32 0.0, %v672
        %674 = vmatmul.bf16.gmra.mxu0 %v512
        %v675 = vpop.f32.mrf.mxu0
        %v676 = vpop.f32.mrf.mxu0
        %v677 = vadd.f32 0.0, %v676
        %678 = vmatmul.bf16.gmra.mxu0 %v513
        %v679 = vpop.f32.mrf.mxu0
        %v680 = vadd.f32 0.0, %v679
        %v681 = vpop.f32.mrf.mxu0
        %v682 = vadd.f32 0.0, %v681
        %683 = vmatmul.bf16.gmra.mxu0 %v514
        %v684 = vpop.f32.mrf.mxu0
        %v685 = vadd.f32 0.0, %v684
        %v686 = vpop.f32.mrf.mxu0
        %687 = vmatmul.bf16.gmra.mxu0 %v515
        %v688 = vpop.f32.mrf.mxu0
        %v689 = vadd.f32 0.0, %v688
        %v690 = vpop.f32.mrf.mxu0
        %v691 = vadd.f32 0.0, %v690
        %692 = vmatmul.bf16.gmra.mxu0 %v516
        %v693 = vpop.f32.mrf.mxu0
        %v694 = vadd.f32 0.0, %v693
        %v695 = vpop.f32.mrf.mxu0
        %v696 = vadd.f32 0.0, %v695
        %697 = vmatmul.bf16.gmra.mxu0 %v517
        %v698 = vpop.f32.mrf.mxu0
        %v699 = vpop.f32.mrf.mxu0
        %v700 = vadd.f32 0.0, %v699
        %701 = vmatmul.bf16.gmra.mxu0 %v518
        %v702 = vpop.f32.mrf.mxu0
        %v703 = vadd.f32 0.0, %v702
        %v704 = vpop.f32.mrf.mxu0
        %v705 = vadd.f32 0.0, %v704
        %706 = vmatmul.bf16.gmra.mxu0 %v519
        %v707 = vpop.f32.mrf.mxu0
        %v708 = vadd.f32 0.0, %v707
        %v709 = vpop.f32.mrf.mxu0
        %710 = vmatmul.bf16.gmra.mxu0 %v520
        %v711 = vpop.f32.mrf.mxu0
        %v712 = vadd.f32 0.0, %v711
        %v713 = vpop.f32.mrf.mxu0
        %v714 = vadd.f32 0.0, %v713
        %715 = vmatmul.bf16.gmra.mxu0 %v521
        %v716 = vpop.f32.mrf.mxu0
        %v717 = vadd.f32 0.0, %v716
        %v718 = vpop.f32.mrf.mxu0
        %v719 = vadd.f32 0.0, %v718
        %720 = vmatmul.bf16.gmra.mxu0 %v522
        %v721 = vpop.f32.mrf.mxu0
        %v722 = vpop.f32.mrf.mxu0
        %v723 = vadd.f32 0.0, %v722
        %724 = vmatmul.bf16.gmra.mxu0 %v523
        %v725 = vpop.f32.mrf.mxu0
        %v726 = vadd.f32 0.0, %v725
        %v727 = vpop.f32.mrf.mxu0
        %v728 = vadd.f32 0.0, %v727
        %729 = vmatmul.bf16.gmra.mxu0 %v524
        %v730 = vpop.f32.mrf.mxu0
        %v731 = vadd.f32 0.0, %v730
        %v732 = vpop.f32.mrf.mxu0
        %733 = vmatmul.bf16.gmra.mxu0 %v525
        %v734 = vpop.f32.mrf.mxu0
        %v735 = vadd.f32 0.0, %v734
        %v736 = vpop.f32.mrf.mxu0
        %v737 = vadd.f32 0.0, %v736
        %738 = vmatmul.bf16.gmra.mxu0 %v526
        %v739 = vpop.f32.mrf.mxu0
        %v740 = vadd.f32 0.0, %v739
        %v741 = vpop.f32.mrf.mxu0
        %v742 = vadd.f32 0.0, %v741
        %743 = vmatmul.bf16.gmra.mxu0 %v527
        %v744 = vpop.f32.mrf.mxu0
        %v745 = vpop.f32.mrf.mxu0
        %v746 = vadd.f32 0.0, %v745
        %747 = vmatmul.bf16.gmra.mxu0 %v528
        %v748 = vpop.f32.mrf.mxu0
        %v749 = vadd.f32 0.0, %v748
        %v750 = vpop.f32.mrf.mxu0
        %v751 = vadd.f32 0.0, %v750
        %752 = vmatmul.bf16.gmra.mxu0 %v529
        %v753 = vpop.f32.mrf.mxu0
        %v754 = vadd.f32 0.0, %v753
        %v755 = vpop.f32.mrf.mxu0
        %756 = vmatmul.bf16.gmra.mxu0 %v530
        %v757 = vpop.f32.mrf.mxu0
        %v758 = vadd.f32 0.0, %v757
        %v759 = vpop.f32.mrf.mxu0
        %v760 = vadd.f32 0.0, %v759
        %761 = vmatmul.bf16.gmra.mxu0 %v531
        %v762 = vpop.f32.mrf.mxu0
        %v763 = vadd.f32 0.0, %v762
        %v764 = vpop.f32.mrf.mxu0
        %v765 = vadd.f32 0.0, %v764
        %766 = vmatmul.bf16.gmra.mxu0 %v532
        %v767 = vpop.f32.mrf.mxu0
        %v768 = vpop.f32.mrf.mxu0
        %v769 = vadd.f32 0.0, %v768
        %770 = vmatmul.bf16.gmra.mxu0 %v533
        %v771 = vpop.f32.mrf.mxu0
        %v772 = vadd.f32 0.0, %v771
        %v773 = vpop.f32.mrf.mxu0
        %v774 = vadd.f32 0.0, %v773
        %775 = vmatmul.bf16.gmra.mxu0 %v534
        %v776 = vpop.f32.mrf.mxu0
        %v777 = vadd.f32 0.0, %v776
        %v778 = vpop.f32.mrf.mxu0
        %779 = vmatmul.bf16.gmra.mxu0 %v535
        %v780 = vpop.f32.mrf.mxu0
        %v781 = vadd.f32 0.0, %v780
        %v782 = vpop.f32.mrf.mxu0
        %v783 = vadd.f32 0.0, %v782
        %784 = vmatmul.bf16.gmra.mxu0 %v536
        %v785 = vpop.f32.mrf.mxu0
        %v786 = vadd.f32 0.0, %v785
        %v787 = vpop.f32.mrf.mxu0
        %v788 = vadd.f32 0.0, %v787
        %789 = vmatmul.bf16.gmra.mxu0 %v537
        %v790 = vpop.f32.mrf.mxu0
        %v791 = vpop.f32.mrf.mxu0
        %v792 = vadd.f32 0.0, %v791
        %793 = vmatmul.bf16.gmra.mxu0 %v538
        %v794 = vpop.f32.mrf.mxu0
        %v795 = vadd.f32 0.0, %v794
        %v796 = vpop.f32.mrf.mxu0
        %v797 = vadd.f32 0.0, %v796
        %798 = vmatmul.bf16.gmra.mxu0 %v539
        %v799 = vpop.f32.mrf.mxu0
        %v800 = vadd.f32 0.0, %v799
        %v801 = vpop.f32.mrf.mxu0
        %802 = vmatmul.bf16.gmra.mxu0 %v540
        %v803 = vpop.f32.mrf.mxu0
        %v804 = vadd.f32 0.0, %v803
        %v805 = vpop.f32.mrf.mxu0
        %v806 = vadd.f32 0.0, %v805
        %807 = vmatmul.bf16.gmra.mxu0 %v541
        %v808 = vpop.f32.mrf.mxu0
        %v809 = vadd.f32 0.0, %v808
        %v810 = vpop.f32.mrf.mxu0
        %v811 = vadd.f32 0.0, %v810
        %812 = vmatmul.bf16.gmra.mxu0 %v542
        %v813 = vpop.f32.mrf.mxu0
        %v814 = vpop.f32.mrf.mxu0
        %v815 = vadd.f32 0.0, %v814
        %816 = vmatmul.bf16.gmra.mxu0 %v543
        %v817 = vpop.f32.mrf.mxu0
        %v818 = vadd.f32 0.0, %v817
        %v819 = vpop.f32.mrf.mxu0
        %v820 = vadd.f32 0.0, %v819
        %821 = vmatmul.bf16.gmra.mxu0 %v544
        %v822 = vpop.f32.mrf.mxu0
        %v823 = vadd.f32 0.0, %v822
        %v824 = vpop.f32.mrf.mxu0
        %825 = vdwg.mxu0
        %v831 = vunpack.c.l.b16 %v221
        %v832 = vunpack.c.l.b16 %v222
        %v833 = vunpack.c.l.b16 %v223
        %v834 = vunpack.c.l.b16 %v224
        %v835 = vunpack.c.l.b16 %v225
        %v836 = vpack.c.b16 %v832, %v831
        %v837 = vpack.c.b16 %v834, %v833
        %v838 = vpack.c.b16 %v425, %v835
        %v839 = vpack.c.b16 %v427, %v426
        %v840 = vpack.c.b16 %v429, %v428
        %v841 = vpack.c.b16 %v431, %v430
        %v842 = vpack.c.b16 %v433, %v432
        %v843 = vpack.c.b16 %v435, %v434
        %v844 = vpack.c.b16 %v437, %v436
        %v845 = vpack.c.b16 %v439, %v438
        %v846 = vpack.c.b16 %v441, %v440
        %v847 = vpack.c.b16 %v443, %v442
        %v848 = vpack.c.b16 %v445, %v444
        %v849 = vpack.c.b16 %v447, %v446
        %v850 = vpack.c.b16 %v449, %v448
        %v851 = vpack.c.b16 %v451, %v450
        %v852 = vpack.c.b16 %v453, %v452
        %v853 = vpack.c.b16 %v455, %v454
        %v854 = vpack.c.b16 %v457, %v456
        %v855 = vpack.c.b16 %v459, %v458
        %v856 = vpack.c.b16 %v461, %v460
        %v857 = vpack.c.b16 %v463, %v462
        %v858 = vpack.c.b16 %v465, %v464
        %v859 = vpack.c.b16 %v467, %v466
        %v860 = vpack.c.b16 %v469, %v468
        %v861 = vpack.c.b16 %v471, %v470
        %v862 = vpack.c.b16 %v473, %v472
        %v863 = vpack.c.b16 %v475, %v474
        %v864 = vpack.c.b16 %v477, %v476
        %v865 = vpack.c.b16 %v479, %v478
        %v866 = vpack.c.b16 %v481, %v480
        %v867 = vpack.c.b16 %v483, %v482
        %v868 = vpack.c.b16 %v485, %v484
        %v869 = vpack.c.b16 %v487, %v486
        %v870 = vpack.c.b16 %v489, %v488
        %v871 = vpack.c.b16 %v491, %v490
        %v872 = vpack.c.b16 %v493, %v492
        %v873 = vpack.c.b16 %v495, %v494
        %v874 = vpack.c.b16 %v497, %v496
        %v875 = vpack.c.b16 %v499, %v498
        %v932 = vunpack.c.l.b16 %v312
        %v933 = vunpack.c.l.b16 %v313
        %v934 = vunpack.c.l.b16 %v314
        %v935 = vunpack.c.l.b16 %v315
        %v936 = vunpack.c.l.b16 %v316
        %v937 = vunpack.c.l.b16 %v317
        %v938 = vunpack.c.l.b16 %v318
        %v939 = vunpack.c.l.b16 %v319
        %v940 = vunpack.c.l.b16 %v320
        %v941 = vunpack.c.l.b16 %v321
        %v942 = vunpack.c.l.b16 %v322
        %v943 = vunpack.c.l.b16 %v323
        %v944 = vunpack.c.l.b16 %v324
        %v945 = vunpack.c.l.b16 %v325
        %v946 = vunpack.c.l.b16 %v326
        %v947 = vunpack.c.l.b16 %v327
        %v948 = vpack.c.b16 %v933, %v932
        %v949 = vpack.c.b16 %v935, %v934
        %v950 = vpack.c.b16 %v937, %v936
        %v951 = vpack.c.b16 %v939, %v938
        %v952 = vpack.c.b16 %v941, %v940
        %v953 = vpack.c.b16 %v943, %v942
        %v954 = vpack.c.b16 %v945, %v944
        %v955 = vpack.c.b16 %v947, %v946
        %964 = vmatpush.bf16.msra.mxu0 %v955
        %965 = vmatpush.bf16.msra.mxu0 %v954
        %966 = vmatpush.bf16.msra.mxu0 %v953
        %967 = vmatpush.bf16.msra.mxu0 %v952
        %968 = vmatpush.bf16.msra.mxu0 %v951
        %969 = vmatpush.bf16.msra.mxu0 %v950
        %970 = vmatpush.bf16.msra.mxu0 %v949
        %971 = vmatpush.bf16.msra.mxu0 %v948
        %972 = vmatmul.bf16.gmra.mxu0 %v836
        %v973 = vpop.f32.mrf.mxu0
        %v974 = vadd.f32 %v643, %v973
        %v975 = vpop.f32.mrf.mxu0
        %v976 = vadd.f32 %v645, %v975
        %977 = vmatmul.bf16.gmra.mxu0 %v837
        %v978 = vpop.f32.mrf.mxu0
        %v979 = vadd.f32 %v648, %v978
        %v980 = vpop.f32.mrf.mxu0
        %v981 = vadd.f32 %v650, %v980
        %982 = vmatmul.bf16.gmra.mxu0 %v838
        %v983 = vpop.f32.mrf.mxu0
        %v984 = vpop.f32.mrf.mxu0
        %v985 = vadd.f32 %v654, %v984
        %986 = vmatmul.bf16.gmra.mxu0 %v839
        %v987 = vpop.f32.mrf.mxu0
        %v988 = vadd.f32 %v657, %v987
        %v989 = vpop.f32.mrf.mxu0
        %v990 = vadd.f32 %v659, %v989
        %991 = vmatmul.bf16.gmra.mxu0 %v840
        %v992 = vpop.f32.mrf.mxu0
        %v993 = vadd.f32 %v662, %v992
        %v994 = vpop.f32.mrf.mxu0
        %995 = vmatmul.bf16.gmra.mxu0 %v841
        %v996 = vpop.f32.mrf.mxu0
        %v997 = vadd.f32 %v666, %v996
        %v998 = vpop.f32.mrf.mxu0
        %v999 = vadd.f32 %v668, %v998
        %1000 = vmatmul.bf16.gmra.mxu0 %v842
        %v1001 = vpop.f32.mrf.mxu0
        %v1002 = vadd.f32 %v671, %v1001
        %v1003 = vpop.f32.mrf.mxu0
        %v1004 = vadd.f32 %v673, %v1003
        %1005 = vmatmul.bf16.gmra.mxu0 %v843
        %v1006 = vpop.f32.mrf.mxu0
        %v1007 = vpop.f32.mrf.mxu0
        %v1008 = vadd.f32 %v677, %v1007
        %1009 = vmatmul.bf16.gmra.mxu0 %v844
        %v1010 = vpop.f32.mrf.mxu0
        %v1011 = vadd.f32 %v680, %v1010
        %v1012 = vpop.f32.mrf.mxu0
        %v1013 = vadd.f32 %v682, %v1012
        %1014 = vmatmul.bf16.gmra.mxu0 %v845
        %v1015 = vpop.f32.mrf.mxu0
        %v1016 = vadd.f32 %v685, %v1015
        %v1017 = vpop.f32.mrf.mxu0
        %1018 = vmatmul.bf16.gmra.mxu0 %v846
        %v1019 = vpop.f32.mrf.mxu0
        %v1020 = vadd.f32 %v689, %v1019
        %v1021 = vpop.f32.mrf.mxu0
        %v1022 = vadd.f32 %v691, %v1021
        %1023 = vmatmul.bf16.gmra.mxu0 %v847
        %v1024 = vpop.f32.mrf.mxu0
        %v1025 = vadd.f32 %v694, %v1024
        %v1026 = vpop.f32.mrf.mxu0
        %v1027 = vadd.f32 %v696, %v1026
        %1028 = vmatmul.bf16.gmra.mxu0 %v848
        %v1029 = vpop.f32.mrf.mxu0
        %v1030 = vpop.f32.mrf.mxu0
        %v1031 = vadd.f32 %v700, %v1030
        %1032 = vmatmul.bf16.gmra.mxu0 %v849
        %v1033 = vpop.f32.mrf.mxu0
        %v1034 = vadd.f32 %v703, %v1033
        %v1035 = vpop.f32.mrf.mxu0
        %v1036 = vadd.f32 %v705, %v1035
        %1037 = vmatmul.bf16.gmra.mxu0 %v850
        %v1038 = vpop.f32.mrf.mxu0
        %v1039 = vadd.f32 %v708, %v1038
        %v1040 = vpop.f32.mrf.mxu0
        %1041 = vmatmul.bf16.gmra.mxu0 %v851
        %v1042 = vpop.f32.mrf.mxu0
        %v1043 = vadd.f32 %v712, %v1042
        %v1044 = vpop.f32.mrf.mxu0
        %v1045 = vadd.f32 %v714, %v1044
        %1046 = vmatmul.bf16.gmra.mxu0 %v852
        %v1047 = vpop.f32.mrf.mxu0
        %v1048 = vadd.f32 %v717, %v1047
        %v1049 = vpop.f32.mrf.mxu0
        %v1050 = vadd.f32 %v719, %v1049
        %1051 = vmatmul.bf16.gmra.mxu0 %v853
        %v1052 = vpop.f32.mrf.mxu0
        %v1053 = vpop.f32.mrf.mxu0
        %v1054 = vadd.f32 %v723, %v1053
        %1055 = vmatmul.bf16.gmra.mxu0 %v854
        %v1056 = vpop.f32.mrf.mxu0
        %v1057 = vadd.f32 %v726, %v1056
        %v1058 = vpop.f32.mrf.mxu0
        %v1059 = vadd.f32 %v728, %v1058
        %1060 = vmatmul.bf16.gmra.mxu0 %v855
        %v1061 = vpop.f32.mrf.mxu0
        %v1062 = vadd.f32 %v731, %v1061
        %v1063 = vpop.f32.mrf.mxu0
        %1064 = vmatmul.bf16.gmra.mxu0 %v856
        %v1065 = vpop.f32.mrf.mxu0
        %v1066 = vadd.f32 %v735, %v1065
        %v1067 = vpop.f32.mrf.mxu0
        %v1068 = vadd.f32 %v737, %v1067
        %1069 = vmatmul.bf16.gmra.mxu0 %v857
        %v1070 = vpop.f32.mrf.mxu0
        %v1071 = vadd.f32 %v740, %v1070
        %v1072 = vpop.f32.mrf.mxu0
        %v1073 = vadd.f32 %v742, %v1072
        %1074 = vmatmul.bf16.gmra.mxu0 %v858
        %v1075 = vpop.f32.mrf.mxu0
        %v1076 = vpop.f32.mrf.mxu0
        %v1077 = vadd.f32 %v746, %v1076
        %1078 = vmatmul.bf16.gmra.mxu0 %v859
        %v1079 = vpop.f32.mrf.mxu0
        %v1080 = vadd.f32 %v749, %v1079
        %v1081 = vpop.f32.mrf.mxu0
        %v1082 = vadd.f32 %v751, %v1081
        %1083 = vmatmul.bf16.gmra.mxu0 %v860
        %v1084 = vpop.f32.mrf.mxu0
        %v1085 = vadd.f32 %v754, %v1084
        %v1086 = vpop.f32.mrf.mxu0
        %1087 = vmatmul.bf16.gmra.mxu0 %v861
        %v1088 = vpop.f32.mrf.mxu0
        %v1089 = vadd.f32 %v758, %v1088
        %v1090 = vpop.f32.mrf.mxu0
        %v1091 = vadd.f32 %v760, %v1090
        %1092 = vmatmul.bf16.gmra.mxu0 %v862
        %v1093 = vpop.f32.mrf.mxu0
        %v1094 = vadd.f32 %v763, %v1093
        %v1095 = vpop.f32.mrf.mxu0
        %v1096 = vadd.f32 %v765, %v1095
        %1097 = vmatmul.bf16.gmra.mxu0 %v863
        %v1098 = vpop.f32.mrf.mxu0
        %v1099 = vpop.f32.mrf.mxu0
        %v1100 = vadd.f32 %v769, %v1099
        %1101 = vmatmul.bf16.gmra.mxu0 %v864
        %v1102 = vpop.f32.mrf.mxu0
        %v1103 = vadd.f32 %v772, %v1102
        %v1104 = vpop.f32.mrf.mxu0
        %v1105 = vadd.f32 %v774, %v1104
        %1106 = vmatmul.bf16.gmra.mxu0 %v865
        %v1107 = vpop.f32.mrf.mxu0
        %v1108 = vadd.f32 %v777, %v1107
        %v1109 = vpop.f32.mrf.mxu0
        %1110 = vmatmul.bf16.gmra.mxu0 %v866
        %v1111 = vpop.f32.mrf.mxu0
        %v1112 = vadd.f32 %v781, %v1111
        %v1113 = vpop.f32.mrf.mxu0
        %v1114 = vadd.f32 %v783, %v1113
        %1115 = vmatmul.bf16.gmra.mxu0 %v867
        %v1116 = vpop.f32.mrf.mxu0
        %v1117 = vadd.f32 %v786, %v1116
        %v1118 = vpop.f32.mrf.mxu0
        %v1119 = vadd.f32 %v788, %v1118
        %1120 = vmatmul.bf16.gmra.mxu0 %v868
        %v1121 = vpop.f32.mrf.mxu0
        %v1122 = vpop.f32.mrf.mxu0
        %v1123 = vadd.f32 %v792, %v1122
        %1124 = vmatmul.bf16.gmra.mxu0 %v869
        %v1125 = vpop.f32.mrf.mxu0
        %v1126 = vadd.f32 %v795, %v1125
        %v1127 = vpop.f32.mrf.mxu0
        %v1128 = vadd.f32 %v797, %v1127
        %1129 = vmatmul.bf16.gmra.mxu0 %v870
        %v1130 = vpop.f32.mrf.mxu0
        %v1131 = vadd.f32 %v800, %v1130
        %v1132 = vpop.f32.mrf.mxu0
        %1133 = vmatmul.bf16.gmra.mxu0 %v871
        %v1134 = vpop.f32.mrf.mxu0
        %v1135 = vadd.f32 %v804, %v1134
        %v1136 = vpop.f32.mrf.mxu0
        %v1137 = vadd.f32 %v806, %v1136
        %1138 = vmatmul.bf16.gmra.mxu0 %v872
        %v1139 = vpop.f32.mrf.mxu0
        %v1140 = vadd.f32 %v809, %v1139
        %v1141 = vpop.f32.mrf.mxu0
        %v1142 = vadd.f32 %v811, %v1141
        %1143 = vmatmul.bf16.gmra.mxu0 %v873
        %v1144 = vpop.f32.mrf.mxu0
        %v1145 = vpop.f32.mrf.mxu0
        %v1146 = vadd.f32 %v815, %v1145
        %1147 = vmatmul.bf16.gmra.mxu0 %v874
        %v1148 = vpop.f32.mrf.mxu0
        %v1149 = vadd.f32 %v818, %v1148
        %v1150 = vpop.f32.mrf.mxu0
        %v1151 = vadd.f32 %v820, %v1150
        %1152 = vmatmul.bf16.gmra.mxu0 %v875
        %v1153 = vpop.f32.mrf.mxu0
        %v1154 = vadd.f32 %v823, %v1153
        %v1155 = vpop.f32.mrf.mxu0
        %1156 = vdwg.mxu0
        %s1157 = scalar_lea.vmem %s1, 384
        %v1158 = vld [vmem:[%s1157] sm:$0xf]
        %v1159 = vld [vmem:[%s1157 + $0x4] sm:$0xf]
        %v1160 = vld [vmem:[%s1157 + $0x8] sm:$0xf]
        %v1161 = vld [vmem:[%s1157 + $0xc] sm:$0xf]
        %v1162 = vld [vmem:[%s1157 + $0x10] sm:$0xf]
        %v1163 = vld [vmem:[%s1157 + $0x14] sm:$0xf]
        %v1164 = vld [vmem:[%s1157 + $0x18] sm:$0xf]
        %v1165 = vld [vmem:[%s1157 + $0x1c] sm:$0xf]
        %v1166 = vld [vmem:[%s1157 + $0x20] sm:$0xf]
        %v1167 = vld [vmem:[%s1157 + $0x24] sm:$0xf]
        %v1168 = vld [vmem:[%s1157 + $0x28] sm:$0xf]
        %v1169 = vld [vmem:[%s1157 + $0x2c] sm:$0xf]
        %v1170 = vld [vmem:[%s1157 + $0x30] sm:$0xf]
        %v1171 = vld [vmem:[%s1157 + $0x34] sm:$0xf]
        %v1172 = vld [vmem:[%s1157 + $0x38] sm:$0xf]
        %v1173 = vld [vmem:[%s1157 + $0x3c] sm:$0xf]
        %v1179 = vunpack.c.l.b16 %v306
        %v1180 = vunpack.c.l.b16 %v307
        %v1181 = vunpack.c.l.b16 %v308
        %v1182 = vunpack.c.l.b16 %v309
        %v1183 = vunpack.c.l.b16 %v310
        %v1184 = vpack.c.b16 %v501, %v500
        %v1185 = vpack.c.b16 %v503, %v502
        %v1186 = vpack.c.b16 %v1179, %v504
        %v1187 = vpack.c.b16 %v1181, %v1180
        %v1188 = vpack.c.b16 %v1183, %v1182
        %v1210 = vunpack.c.l.b16 %v1158
        %v1211 = vunpack.c.l.b16 %v1159
        %v1212 = vunpack.c.l.b16 %v1160
        %v1213 = vunpack.c.l.b16 %v1161
        %v1214 = vunpack.c.l.b16 %v1162
        %v1215 = vunpack.c.l.b16 %v1163
        %v1216 = vunpack.c.l.b16 %v1164
        %v1217 = vunpack.c.l.b16 %v1165
        %v1218 = vunpack.c.l.b16 %v1166
        %v1219 = vunpack.c.l.b16 %v1167
        %v1220 = vunpack.c.l.b16 %v1168
        %v1221 = vunpack.c.l.b16 %v1169
        %v1222 = vunpack.c.l.b16 %v1170
        %v1223 = vunpack.c.l.b16 %v1171
        %v1224 = vunpack.c.l.b16 %v1172
        %v1225 = vunpack.c.l.b16 %v1173
        %v1226 = vpack.c.b16 %v1211, %v1210
        %v1227 = vpack.c.b16 %v1213, %v1212
        %v1228 = vpack.c.b16 %v1215, %v1214
        %v1229 = vpack.c.b16 %v1217, %v1216
        %v1230 = vpack.c.b16 %v1219, %v1218
        %v1231 = vpack.c.b16 %v1221, %v1220
        %v1232 = vpack.c.b16 %v1223, %v1222
        %v1233 = vpack.c.b16 %v1225, %v1224
        %1242 = vmatpush.bf16.msra.mxu0 %v1233
        %1243 = vmatpush.bf16.msra.mxu0 %v1232
        %1244 = vmatpush.bf16.msra.mxu0 %v1231
        %1245 = vmatpush.bf16.msra.mxu0 %v1230
        %1246 = vmatpush.bf16.msra.mxu0 %v1229
        %1247 = vmatpush.bf16.msra.mxu0 %v1228
        %1248 = vmatpush.bf16.msra.mxu0 %v1227
        %1249 = vmatpush.bf16.msra.mxu0 %v1226
        %1250 = vmatmul.bf16.gmra.mxu0 %v841
        %v1251 = vpop.f32.mrf.mxu0
        %v1252 = vadd.f32 0.0, %v1251
        %v1253 = vpop.f32.mrf.mxu0
        %v1254 = vadd.f32 0.0, %v1253
        %1255 = vmatmul.bf16.gmra.mxu0 %v842
        %v1256 = vpop.f32.mrf.mxu0
        %v1257 = vadd.f32 0.0, %v1256
        %v1258 = vpop.f32.mrf.mxu0
        %v1259 = vadd.f32 0.0, %v1258
        %1260 = vmatmul.bf16.gmra.mxu0 %v843
        %v1261 = vpop.f32.mrf.mxu0
        %v1262 = vpop.f32.mrf.mxu0
        %v1263 = vadd.f32 0.0, %v1262
        %1264 = vmatmul.bf16.gmra.mxu0 %v844
        %v1265 = vpop.f32.mrf.mxu0
        %v1266 = vadd.f32 0.0, %v1265
        %v1267 = vpop.f32.mrf.mxu0
        %v1268 = vadd.f32 0.0, %v1267
        %1269 = vmatmul.bf16.gmra.mxu0 %v845
        %v1270 = vpop.f32.mrf.mxu0
        %v1271 = vadd.f32 0.0, %v1270
        %v1272 = vpop.f32.mrf.mxu0
        %1273 = vmatmul.bf16.gmra.mxu0 %v846
        %v1274 = vpop.f32.mrf.mxu0
        %v1275 = vadd.f32 0.0, %v1274
        %v1276 = vpop.f32.mrf.mxu0
        %v1277 = vadd.f32 0.0, %v1276
        %1278 = vmatmul.bf16.gmra.mxu0 %v847
        %v1279 = vpop.f32.mrf.mxu0
        %v1280 = vadd.f32 0.0, %v1279
        %v1281 = vpop.f32.mrf.mxu0
        %v1282 = vadd.f32 0.0, %v1281
        %1283 = vmatmul.bf16.gmra.mxu0 %v848
        %v1284 = vpop.f32.mrf.mxu0
        %v1285 = vpop.f32.mrf.mxu0
        %v1286 = vadd.f32 0.0, %v1285
        %1287 = vmatmul.bf16.gmra.mxu0 %v849
        %v1288 = vpop.f32.mrf.mxu0
        %v1289 = vadd.f32 0.0, %v1288
        %v1290 = vpop.f32.mrf.mxu0
        %v1291 = vadd.f32 0.0, %v1290
        %1292 = vmatmul.bf16.gmra.mxu0 %v850
        %v1293 = vpop.f32.mrf.mxu0
        %v1294 = vadd.f32 0.0, %v1293
        %v1295 = vpop.f32.mrf.mxu0
        %1296 = vmatmul.bf16.gmra.mxu0 %v851
        %v1297 = vpop.f32.mrf.mxu0
        %v1298 = vadd.f32 0.0, %v1297
        %v1299 = vpop.f32.mrf.mxu0
        %v1300 = vadd.f32 0.0, %v1299
        %1301 = vmatmul.bf16.gmra.mxu0 %v852
        %v1302 = vpop.f32.mrf.mxu0
        %v1303 = vadd.f32 0.0, %v1302
        %v1304 = vpop.f32.mrf.mxu0
        %v1305 = vadd.f32 0.0, %v1304
        %1306 = vmatmul.bf16.gmra.mxu0 %v853
        %v1307 = vpop.f32.mrf.mxu0
        %v1308 = vpop.f32.mrf.mxu0
        %v1309 = vadd.f32 0.0, %v1308
        %1310 = vmatmul.bf16.gmra.mxu0 %v854
        %v1311 = vpop.f32.mrf.mxu0
        %v1312 = vadd.f32 0.0, %v1311
        %v1313 = vpop.f32.mrf.mxu0
        %v1314 = vadd.f32 0.0, %v1313
        %1315 = vmatmul.bf16.gmra.mxu0 %v855
        %v1316 = vpop.f32.mrf.mxu0
        %v1317 = vadd.f32 0.0, %v1316
        %v1318 = vpop.f32.mrf.mxu0
        %1319 = vmatmul.bf16.gmra.mxu0 %v856
        %v1320 = vpop.f32.mrf.mxu0
        %v1321 = vadd.f32 0.0, %v1320
        %v1322 = vpop.f32.mrf.mxu0
        %v1323 = vadd.f32 0.0, %v1322
        %1324 = vmatmul.bf16.gmra.mxu0 %v857
        %v1325 = vpop.f32.mrf.mxu0
        %v1326 = vadd.f32 0.0, %v1325
        %v1327 = vpop.f32.mrf.mxu0
        %v1328 = vadd.f32 0.0, %v1327
        %1329 = vmatmul.bf16.gmra.mxu0 %v858
        %v1330 = vpop.f32.mrf.mxu0
        %v1331 = vpop.f32.mrf.mxu0
        %v1332 = vadd.f32 0.0, %v1331
        %1333 = vmatmul.bf16.gmra.mxu0 %v859
        %v1334 = vpop.f32.mrf.mxu0
        %v1335 = vadd.f32 0.0, %v1334
        %v1336 = vpop.f32.mrf.mxu0
        %v1337 = vadd.f32 0.0, %v1336
        %1338 = vmatmul.bf16.gmra.mxu0 %v860
        %v1339 = vpop.f32.mrf.mxu0
        %v1340 = vadd.f32 0.0, %v1339
        %v1341 = vpop.f32.mrf.mxu0
        %1342 = vmatmul.bf16.gmra.mxu0 %v861
        %v1343 = vpop.f32.mrf.mxu0
        %v1344 = vadd.f32 0.0, %v1343
        %v1345 = vpop.f32.mrf.mxu0
        %v1346 = vadd.f32 0.0, %v1345
        %1347 = vmatmul.bf16.gmra.mxu0 %v862
        %v1348 = vpop.f32.mrf.mxu0
        %v1349 = vadd.f32 0.0, %v1348
        %v1350 = vpop.f32.mrf.mxu0
        %v1351 = vadd.f32 0.0, %v1350
        %1352 = vmatmul.bf16.gmra.mxu0 %v863
        %v1353 = vpop.f32.mrf.mxu0
        %v1354 = vpop.f32.mrf.mxu0
        %v1355 = vadd.f32 0.0, %v1354
        %1356 = vmatmul.bf16.gmra.mxu0 %v864
        %v1357 = vpop.f32.mrf.mxu0
        %v1358 = vadd.f32 0.0, %v1357
        %v1359 = vpop.f32.mrf.mxu0
        %v1360 = vadd.f32 0.0, %v1359
        %1361 = vmatmul.bf16.gmra.mxu0 %v865
        %v1362 = vpop.f32.mrf.mxu0
        %v1363 = vadd.f32 0.0, %v1362
        %v1364 = vpop.f32.mrf.mxu0
        %1365 = vmatmul.bf16.gmra.mxu0 %v866
        %v1366 = vpop.f32.mrf.mxu0
        %v1367 = vadd.f32 0.0, %v1366
        %v1368 = vpop.f32.mrf.mxu0
        %v1369 = vadd.f32 0.0, %v1368
        %1370 = vmatmul.bf16.gmra.mxu0 %v867
        %v1371 = vpop.f32.mrf.mxu0
        %v1372 = vadd.f32 0.0, %v1371
        %v1373 = vpop.f32.mrf.mxu0
        %v1374 = vadd.f32 0.0, %v1373
        %1375 = vmatmul.bf16.gmra.mxu0 %v868
        %v1376 = vpop.f32.mrf.mxu0
        %v1377 = vpop.f32.mrf.mxu0
        %v1378 = vadd.f32 0.0, %v1377
        %1379 = vmatmul.bf16.gmra.mxu0 %v869
        %v1380 = vpop.f32.mrf.mxu0
        %v1381 = vadd.f32 0.0, %v1380
        %v1382 = vpop.f32.mrf.mxu0
        %v1383 = vadd.f32 0.0, %v1382
        %1384 = vmatmul.bf16.gmra.mxu0 %v870
        %v1385 = vpop.f32.mrf.mxu0
        %v1386 = vadd.f32 0.0, %v1385
        %v1387 = vpop.f32.mrf.mxu0
        %1388 = vmatmul.bf16.gmra.mxu0 %v871
        %v1389 = vpop.f32.mrf.mxu0
        %v1390 = vadd.f32 0.0, %v1389
        %v1391 = vpop.f32.mrf.mxu0
        %v1392 = vadd.f32 0.0, %v1391
        %1393 = vmatmul.bf16.gmra.mxu0 %v872
        %v1394 = vpop.f32.mrf.mxu0
        %v1395 = vadd.f32 0.0, %v1394
        %v1396 = vpop.f32.mrf.mxu0
        %v1397 = vadd.f32 0.0, %v1396
        %1398 = vmatmul.bf16.gmra.mxu0 %v873
        %v1399 = vpop.f32.mrf.mxu0
        %v1400 = vpop.f32.mrf.mxu0
        %v1401 = vadd.f32 0.0, %v1400
        %1402 = vmatmul.bf16.gmra.mxu0 %v874
        %v1403 = vpop.f32.mrf.mxu0
        %v1404 = vadd.f32 0.0, %v1403
        %v1405 = vpop.f32.mrf.mxu0
        %v1406 = vadd.f32 0.0, %v1405
        %1407 = vmatmul.bf16.gmra.mxu0 %v875
        %v1408 = vpop.f32.mrf.mxu0
        %v1409 = vadd.f32 0.0, %v1408
        %v1410 = vpop.f32.mrf.mxu0
        %1411 = vmatmul.bf16.gmra.mxu0 %v1184
        %v1412 = vpop.f32.mrf.mxu0
        %v1413 = vadd.f32 0.0, %v1412
        %v1414 = vpop.f32.mrf.mxu0
        %v1415 = vadd.f32 0.0, %v1414
        %1416 = vmatmul.bf16.gmra.mxu0 %v1185
        %v1417 = vpop.f32.mrf.mxu0
        %v1418 = vadd.f32 0.0, %v1417
        %v1419 = vpop.f32.mrf.mxu0
        %v1420 = vadd.f32 0.0, %v1419
        %1421 = vmatmul.bf16.gmra.mxu0 %v1186
        %v1422 = vpop.f32.mrf.mxu0
        %v1423 = vpop.f32.mrf.mxu0
        %v1424 = vadd.f32 0.0, %v1423
        %1425 = vmatmul.bf16.gmra.mxu0 %v1187
        %v1426 = vpop.f32.mrf.mxu0
        %v1427 = vadd.f32 0.0, %v1426
        %v1428 = vpop.f32.mrf.mxu0
        %v1429 = vadd.f32 0.0, %v1428
        %1430 = vmatmul.bf16.gmra.mxu0 %v1188
        %v1431 = vpop.f32.mrf.mxu0
        %v1432 = vadd.f32 0.0, %v1431
        %v1433 = vpop.f32.mrf.mxu0
        %1434 = vdwg.mxu0
        %v1435 = vadd.f32 %v974, %v1252
        %v1436 = vadd.f32 %v976, %v1254
        %v1437 = vadd.f32 %v979, %v1257
        %v1438 = vadd.f32 %v981, %v1259
        %v1439 = vadd.f32 %v985, %v1263
        %v1440 = vadd.f32 %v988, %v1266
        %v1441 = vadd.f32 %v990, %v1268
        %v1442 = vadd.f32 %v993, %v1271
        %v1443 = vadd.f32 %v997, %v1275
        %v1444 = vadd.f32 %v999, %v1277
        %v1445 = vadd.f32 %v1002, %v1280
        %v1446 = vadd.f32 %v1004, %v1282
        %v1447 = vadd.f32 %v1008, %v1286
        %v1448 = vadd.f32 %v1011, %v1289
        %v1449 = vadd.f32 %v1013, %v1291
        %v1450 = vadd.f32 %v1016, %v1294
        %v1451 = vadd.f32 %v1020, %v1298
        %v1452 = vadd.f32 %v1022, %v1300
        %v1453 = vadd.f32 %v1025, %v1303
        %v1454 = vadd.f32 %v1027, %v1305
        %v1455 = vadd.f32 %v1031, %v1309
        %v1456 = vadd.f32 %v1034, %v1312
        %v1457 = vadd.f32 %v1036, %v1314
        %v1458 = vadd.f32 %v1039, %v1317
        %v1459 = vadd.f32 %v1043, %v1321
        %v1460 = vadd.f32 %v1045, %v1323
        %v1461 = vadd.f32 %v1048, %v1326
        %v1462 = vadd.f32 %v1050, %v1328
        %v1463 = vadd.f32 %v1054, %v1332
        %v1464 = vadd.f32 %v1057, %v1335
        %v1465 = vadd.f32 %v1059, %v1337
        %v1466 = vadd.f32 %v1062, %v1340
        %v1467 = vadd.f32 %v1066, %v1344
        %v1468 = vadd.f32 %v1068, %v1346
        %v1469 = vadd.f32 %v1071, %v1349
        %v1470 = vadd.f32 %v1073, %v1351
        %v1471 = vadd.f32 %v1077, %v1355
        %v1472 = vadd.f32 %v1080, %v1358
        %v1473 = vadd.f32 %v1082, %v1360
        %v1474 = vadd.f32 %v1085, %v1363
        %v1475 = vadd.f32 %v1089, %v1367
        %v1476 = vadd.f32 %v1091, %v1369
        %v1477 = vadd.f32 %v1094, %v1372
        %v1478 = vadd.f32 %v1096, %v1374
        %v1479 = vadd.f32 %v1100, %v1378
        %v1480 = vadd.f32 %v1103, %v1381
        %v1481 = vadd.f32 %v1105, %v1383
        %v1482 = vadd.f32 %v1108, %v1386
        %v1483 = vadd.f32 %v1112, %v1390
        %v1484 = vadd.f32 %v1114, %v1392
        %v1485 = vadd.f32 %v1117, %v1395
        %v1486 = vadd.f32 %v1119, %v1397
        %v1487 = vadd.f32 %v1123, %v1401
        %v1488 = vadd.f32 %v1126, %v1404
        %v1489 = vadd.f32 %v1128, %v1406
        %v1490 = vadd.f32 %v1131, %v1409
        %v1491 = vadd.f32 %v1135, %v1413
        %v1492 = vadd.f32 %v1137, %v1415
        %v1493 = vadd.f32 %v1140, %v1418
        %v1494 = vadd.f32 %v1142, %v1420
        %v1495 = vadd.f32 %v1146, %v1424
        %v1496 = vadd.f32 %v1149, %v1427
        %v1497 = vadd.f32 %v1151, %v1429
        %v1498 = vadd.f32 %v1154, %v1432
        %s1499 = scalar_lea.vmem %s1, 64
        %v1500 = vld [vmem:[%s1499] sm:$0xf]
        %v1501 = vld [vmem:[%s1499 + $0x4] sm:$0xf]
        %v1502 = vld [vmem:[%s1499 + $0x8] sm:$0xf]
        %v1503 = vld [vmem:[%s1499 + $0xc] sm:$0xf]
        %v1504 = vld [vmem:[%s1499 + $0x10] sm:$0xf]
        %v1505 = vld [vmem:[%s1499 + $0x14] sm:$0xf]
        %v1506 = vld [vmem:[%s1499 + $0x18] sm:$0xf]
        %v1507 = vld [vmem:[%s1499 + $0x1c] sm:$0xf]
        %v1508 = vld [vmem:[%s1499 + $0x20] sm:$0xf]
        %v1509 = vld [vmem:[%s1499 + $0x24] sm:$0xf]
        %v1510 = vld [vmem:[%s1499 + $0x28] sm:$0xf]
        %v1511 = vld [vmem:[%s1499 + $0x2c] sm:$0xf]
        %v1512 = vld [vmem:[%s1499 + $0x30] sm:$0xf]
        %v1513 = vld [vmem:[%s1499 + $0x34] sm:$0xf]
        %v1514 = vld [vmem:[%s1499 + $0x38] sm:$0xf]
        %v1515 = vld [vmem:[%s1499 + $0x3c] sm:$0xf]
        %v1516 = vpack.c.b16 %v500, %v500
        %vm1517 = vsmask.f32 7424
        %v1519 = vshrl.u32 %v836, 16
        %v1521 = vshll.u32 %v836, 16
        %v1523 = vrot.slane %v1521, 1
        %v1524 = vor.u32 %v1519, %v1523
        %v1526 = vshll.u32 %v837, 16
        %v1528 = vrot.slane %v1526, 1
        %v1529 = vsel %vm1517, %v1524, %v1528
        %v1530 = vshrl.u32 %v837, 16
        %v1532 = vor.u32 %v1530, %v1528
        %v1534 = vshll.u32 %v838, 16
        %v1536 = vrot.slane %v1534, 1
        %v1537 = vsel %vm1517, %v1532, %v1536
        %v1538 = vshrl.u32 %v838, 16
        %v1540 = vor.u32 %v1538, %v1536
        %v1542 = vshll.u32 %v839, 16
        %v1544 = vrot.slane %v1542, 1
        %v1545 = vsel %vm1517, %v1540, %v1544
        %v1546 = vshrl.u32 %v839, 16
        %v1548 = vor.u32 %v1546, %v1544
        %v1550 = vshll.u32 %v840, 16
        %v1552 = vrot.slane %v1550, 1
        %v1553 = vsel %vm1517, %v1548, %v1552
        %v1554 = vshrl.u32 %v840, 16
        %v1556 = vor.u32 %v1554, %v1552
        %v1558 = vshll.u32 %v841, 16
        %v1560 = vrot.slane %v1558, 1
        %v1561 = vsel %vm1517, %v1556, %v1560
        %v1562 = vshrl.u32 %v841, 16
        %v1564 = vor.u32 %v1562, %v1560
        %v1566 = vshll.u32 %v842, 16
        %v1568 = vrot.slane %v1566, 1
        %v1569 = vsel %vm1517, %v1564, %v1568
        %v1570 = vshrl.u32 %v842, 16
        %v1572 = vor.u32 %v1570, %v1568
        %v1574 = vshll.u32 %v843, 16
        %v1576 = vrot.slane %v1574, 1
        %v1577 = vsel %vm1517, %v1572, %v1576
        %v1578 = vshrl.u32 %v843, 16
        %v1580 = vor.u32 %v1578, %v1576
        %v1582 = vshll.u32 %v844, 16
        %v1584 = vrot.slane %v1582, 1
        %v1585 = vsel %vm1517, %v1580, %v1584
        %v1586 = vshrl.u32 %v844, 16
        %v1588 = vor.u32 %v1586, %v1584
        %v1590 = vshll.u32 %v845, 16
        %v1592 = vrot.slane %v1590, 1
        %v1593 = vsel %vm1517, %v1588, %v1592
        %v1594 = vshrl.u32 %v845, 16
        %v1596 = vor.u32 %v1594, %v1592
        %v1598 = vshll.u32 %v846, 16
        %v1600 = vrot.slane %v1598, 1
        %v1601 = vsel %vm1517, %v1596, %v1600
        %v1602 = vshrl.u32 %v846, 16
        %v1604 = vor.u32 %v1602, %v1600
        %v1606 = vshll.u32 %v847, 16
        %v1608 = vrot.slane %v1606, 1
        %v1609 = vsel %vm1517, %v1604, %v1608
        %v1610 = vshrl.u32 %v847, 16
        %v1612 = vor.u32 %v1610, %v1608
        %v1614 = vshll.u32 %v848, 16
        %v1616 = vrot.slane %v1614, 1
        %v1617 = vsel %vm1517, %v1612, %v1616
        %v1618 = vshrl.u32 %v848, 16
        %v1620 = vor.u32 %v1618, %v1616
        %v1622 = vshll.u32 %v849, 16
        %v1624 = vrot.slane %v1622, 1
        %v1625 = vsel %vm1517, %v1620, %v1624
        %v1626 = vshrl.u32 %v849, 16
        %v1628 = vor.u32 %v1626, %v1624
        %v1630 = vshll.u32 %v850, 16
        %v1632 = vrot.slane %v1630, 1
        %v1633 = vsel %vm1517, %v1628, %v1632
        %v1634 = vshrl.u32 %v850, 16
        %v1636 = vor.u32 %v1634, %v1632
        %v1638 = vshll.u32 %v851, 16
        %v1640 = vrot.slane %v1638, 1
        %v1641 = vsel %vm1517, %v1636, %v1640
        %v1642 = vshrl.u32 %v851, 16
        %v1644 = vor.u32 %v1642, %v1640
        %v1646 = vshll.u32 %v852, 16
        %v1648 = vrot.slane %v1646, 1
        %v1649 = vsel %vm1517, %v1644, %v1648
        %v1650 = vshrl.u32 %v852, 16
        %v1652 = vor.u32 %v1650, %v1648
        %v1654 = vshll.u32 %v853, 16
        %v1656 = vrot.slane %v1654, 1
        %v1657 = vsel %vm1517, %v1652, %v1656
        %v1658 = vshrl.u32 %v853, 16
        %v1660 = vor.u32 %v1658, %v1656
        %v1662 = vshll.u32 %v854, 16
        %v1664 = vrot.slane %v1662, 1
        %v1665 = vsel %vm1517, %v1660, %v1664
        %v1666 = vshrl.u32 %v854, 16
        %v1668 = vor.u32 %v1666, %v1664
        %v1670 = vshll.u32 %v855, 16
        %v1672 = vrot.slane %v1670, 1
        %v1673 = vsel %vm1517, %v1668, %v1672
        %v1674 = vshrl.u32 %v855, 16
        %v1676 = vor.u32 %v1674, %v1672
        %v1678 = vshll.u32 %v856, 16
        %v1680 = vrot.slane %v1678, 1
        %v1681 = vsel %vm1517, %v1676, %v1680
        %v1682 = vshrl.u32 %v856, 16
        %v1684 = vor.u32 %v1682, %v1680
        %v1686 = vshll.u32 %v857, 16
        %v1688 = vrot.slane %v1686, 1
        %v1689 = vsel %vm1517, %v1684, %v1688
        %v1690 = vshrl.u32 %v857, 16
        %v1692 = vor.u32 %v1690, %v1688
        %v1694 = vshll.u32 %v858, 16
        %v1696 = vrot.slane %v1694, 1
        %v1697 = vsel %vm1517, %v1692, %v1696
        %v1698 = vshrl.u32 %v858, 16
        %v1700 = vor.u32 %v1698, %v1696
        %v1702 = vshll.u32 %v859, 16
        %v1704 = vrot.slane %v1702, 1
        %v1705 = vsel %vm1517, %v1700, %v1704
        %v1706 = vshrl.u32 %v859, 16
        %v1708 = vor.u32 %v1706, %v1704
        %v1710 = vshll.u32 %v860, 16
        %v1712 = vrot.slane %v1710, 1
        %v1713 = vsel %vm1517, %v1708, %v1712
        %v1714 = vshrl.u32 %v860, 16
        %v1716 = vor.u32 %v1714, %v1712
        %v1718 = vshll.u32 %v861, 16
        %v1720 = vrot.slane %v1718, 1
        %v1721 = vsel %vm1517, %v1716, %v1720
        %v1722 = vshrl.u32 %v861, 16
        %v1724 = vor.u32 %v1722, %v1720
        %v1726 = vshll.u32 %v862, 16
        %v1728 = vrot.slane %v1726, 1
        %v1729 = vsel %vm1517, %v1724, %v1728
        %v1730 = vshrl.u32 %v862, 16
        %v1732 = vor.u32 %v1730, %v1728
        %v1734 = vshll.u32 %v863, 16
        %v1736 = vrot.slane %v1734, 1
        %v1737 = vsel %vm1517, %v1732, %v1736
        %v1738 = vshrl.u32 %v863, 16
        %v1740 = vor.u32 %v1738, %v1736
        %v1742 = vshll.u32 %v864, 16
        %v1744 = vrot.slane %v1742, 1
        %v1745 = vsel %vm1517, %v1740, %v1744
        %v1746 = vshrl.u32 %v864, 16
        %v1748 = vor.u32 %v1746, %v1744
        %v1750 = vshll.u32 %v865, 16
        %v1752 = vrot.slane %v1750, 1
        %v1753 = vsel %vm1517, %v1748, %v1752
        %v1754 = vshrl.u32 %v865, 16
        %v1756 = vor.u32 %v1754, %v1752
        %v1758 = vshll.u32 %v866, 16
        %v1760 = vrot.slane %v1758, 1
        %v1761 = vsel %vm1517, %v1756, %v1760
        %v1762 = vshrl.u32 %v866, 16
        %v1764 = vor.u32 %v1762, %v1760
        %v1766 = vshll.u32 %v867, 16
        %v1768 = vrot.slane %v1766, 1
        %v1769 = vsel %vm1517, %v1764, %v1768
        %v1770 = vshrl.u32 %v867, 16
        %v1772 = vor.u32 %v1770, %v1768
        %v1774 = vshll.u32 %v868, 16
        %v1776 = vrot.slane %v1774, 1
        %v1777 = vsel %vm1517, %v1772, %v1776
        %v1778 = vshrl.u32 %v868, 16
        %v1780 = vor.u32 %v1778, %v1776
        %v1782 = vshll.u32 %v869, 16
        %v1784 = vrot.slane %v1782, 1
        %v1785 = vsel %vm1517, %v1780, %v1784
        %v1786 = vshrl.u32 %v869, 16
        %v1788 = vor.u32 %v1786, %v1784
        %v1790 = vshll.u32 %v870, 16
        %v1792 = vrot.slane %v1790, 1
        %v1793 = vsel %vm1517, %v1788, %v1792
        %v1794 = vshrl.u32 %v870, 16
        %v1796 = vor.u32 %v1794, %v1792
        %v1798 = vshll.u32 %v871, 16
        %v1800 = vrot.slane %v1798, 1
        %v1801 = vsel %vm1517, %v1796, %v1800
        %v1802 = vshrl.u32 %v871, 16
        %v1804 = vor.u32 %v1802, %v1800
        %v1806 = vshll.u32 %v872, 16
        %v1808 = vrot.slane %v1806, 1
        %v1809 = vsel %vm1517, %v1804, %v1808
        %v1810 = vshrl.u32 %v872, 16
        %v1812 = vor.u32 %v1810, %v1808
        %v1814 = vshll.u32 %v873, 16
        %v1816 = vrot.slane %v1814, 1
        %v1817 = vsel %vm1517, %v1812, %v1816
        %v1818 = vshrl.u32 %v873, 16
        %v1820 = vor.u32 %v1818, %v1816
        %v1822 = vshll.u32 %v874, 16
        %v1824 = vrot.slane %v1822, 1
        %v1825 = vsel %vm1517, %v1820, %v1824
        %v1826 = vshrl.u32 %v874, 16
        %v1828 = vor.u32 %v1826, %v1824
        %v1830 = vshll.u32 %v875, 16
        %v1832 = vrot.slane %v1830, 1
        %v1833 = vsel %vm1517, %v1828, %v1832
        %v1834 = vshrl.u32 %v875, 16
        %v1836 = vor.u32 %v1834, %v1832
        %v1838 = vshll.u32 %v1516, 16
        %v1840 = vrot.slane %v1838, 1
        %v1841 = vsel %vm1517, %v1836, %v1840
        %v1898 = vunpack.c.l.b16 %v1500
        %v1899 = vunpack.c.l.b16 %v1501
        %v1900 = vunpack.c.l.b16 %v1502
        %v1901 = vunpack.c.l.b16 %v1503
        %v1902 = vunpack.c.l.b16 %v1504
        %v1903 = vunpack.c.l.b16 %v1505
        %v1904 = vunpack.c.l.b16 %v1506
        %v1905 = vunpack.c.l.b16 %v1507
        %v1906 = vunpack.c.l.b16 %v1508
        %v1907 = vunpack.c.l.b16 %v1509
        %v1908 = vunpack.c.l.b16 %v1510
        %v1909 = vunpack.c.l.b16 %v1511
        %v1910 = vunpack.c.l.b16 %v1512
        %v1911 = vunpack.c.l.b16 %v1513
        %v1912 = vunpack.c.l.b16 %v1514
        %v1913 = vunpack.c.l.b16 %v1515
        %v1914 = vpack.c.b16 %v1899, %v1898
        %v1915 = vpack.c.b16 %v1901, %v1900
        %v1916 = vpack.c.b16 %v1903, %v1902
        %v1917 = vpack.c.b16 %v1905, %v1904
        %v1918 = vpack.c.b16 %v1907, %v1906
        %v1919 = vpack.c.b16 %v1909, %v1908
        %v1920 = vpack.c.b16 %v1911, %v1910
        %v1921 = vpack.c.b16 %v1913, %v1912
        %1930 = vmatpush.bf16.msra.mxu0 %v1921
        %1931 = vmatpush.bf16.msra.mxu0 %v1920
        %1932 = vmatpush.bf16.msra.mxu0 %v1919
        %1933 = vmatpush.bf16.msra.mxu0 %v1918
        %1934 = vmatpush.bf16.msra.mxu0 %v1917
        %1935 = vmatpush.bf16.msra.mxu0 %v1916
        %1936 = vmatpush.bf16.msra.mxu0 %v1915
        %1937 = vmatpush.bf16.msra.mxu0 %v1914
        %1938 = vmatmul.bf16.gmra.mxu0 %v1529
        %v1939 = vpop.f32.mrf.mxu0
        %v1940 = vadd.f32 0.0, %v1939
        %v1941 = vpop.f32.mrf.mxu0
        %v1942 = vadd.f32 0.0, %v1941
        %1943 = vmatmul.bf16.gmra.mxu0 %v1537
        %v1944 = vpop.f32.mrf.mxu0
        %v1945 = vadd.f32 0.0, %v1944
        %v1946 = vpop.f32.mrf.mxu0
        %v1947 = vadd.f32 0.0, %v1946
        %1948 = vmatmul.bf16.gmra.mxu0 %v1545
        %v1949 = vpop.f32.mrf.mxu0
        %v1950 = vpop.f32.mrf.mxu0
        %v1951 = vadd.f32 0.0, %v1950
        %1952 = vmatmul.bf16.gmra.mxu0 %v1553
        %v1953 = vpop.f32.mrf.mxu0
        %v1954 = vadd.f32 0.0, %v1953
        %v1955 = vpop.f32.mrf.mxu0
        %v1956 = vadd.f32 0.0, %v1955
        %1957 = vmatmul.bf16.gmra.mxu0 %v1561
        %v1958 = vpop.f32.mrf.mxu0
        %v1959 = vadd.f32 0.0, %v1958
        %v1960 = vpop.f32.mrf.mxu0
        %1961 = vmatmul.bf16.gmra.mxu0 %v1569
        %v1962 = vpop.f32.mrf.mxu0
        %v1963 = vadd.f32 0.0, %v1962
        %v1964 = vpop.f32.mrf.mxu0
        %v1965 = vadd.f32 0.0, %v1964
        %1966 = vmatmul.bf16.gmra.mxu0 %v1577
        %v1967 = vpop.f32.mrf.mxu0
        %v1968 = vadd.f32 0.0, %v1967
        %v1969 = vpop.f32.mrf.mxu0
        %v1970 = vadd.f32 0.0, %v1969
        %1971 = vmatmul.bf16.gmra.mxu0 %v1585
        %v1972 = vpop.f32.mrf.mxu0
        %v1973 = vpop.f32.mrf.mxu0
        %v1974 = vadd.f32 0.0, %v1973
        %1975 = vmatmul.bf16.gmra.mxu0 %v1593
        %v1976 = vpop.f32.mrf.mxu0
        %v1977 = vadd.f32 0.0, %v1976
        %v1978 = vpop.f32.mrf.mxu0
        %v1979 = vadd.f32 0.0, %v1978
        %1980 = vmatmul.bf16.gmra.mxu0 %v1601
        %v1981 = vpop.f32.mrf.mxu0
        %v1982 = vadd.f32 0.0, %v1981
        %v1983 = vpop.f32.mrf.mxu0
        %1984 = vmatmul.bf16.gmra.mxu0 %v1609
        %v1985 = vpop.f32.mrf.mxu0
        %v1986 = vadd.f32 0.0, %v1985
        %v1987 = vpop.f32.mrf.mxu0
        %v1988 = vadd.f32 0.0, %v1987
        %1989 = vmatmul.bf16.gmra.mxu0 %v1617
        %v1990 = vpop.f32.mrf.mxu0
        %v1991 = vadd.f32 0.0, %v1990
        %v1992 = vpop.f32.mrf.mxu0
        %v1993 = vadd.f32 0.0, %v1992
        %1994 = vmatmul.bf16.gmra.mxu0 %v1625
        %v1995 = vpop.f32.mrf.mxu0
        %v1996 = vpop.f32.mrf.mxu0
        %v1997 = vadd.f32 0.0, %v1996
        %1998 = vmatmul.bf16.gmra.mxu0 %v1633
        %v1999 = vpop.f32.mrf.mxu0
        %v2000 = vadd.f32 0.0, %v1999
        %v2001 = vpop.f32.mrf.mxu0
        %v2002 = vadd.f32 0.0, %v2001
        %2003 = vmatmul.bf16.gmra.mxu0 %v1641
        %v2004 = vpop.f32.mrf.mxu0
        %v2005 = vadd.f32 0.0, %v2004
        %v2006 = vpop.f32.mrf.mxu0
        %2007 = vmatmul.bf16.gmra.mxu0 %v1649
        %v2008 = vpop.f32.mrf.mxu0
        %v2009 = vadd.f32 0.0, %v2008
        %v2010 = vpop.f32.mrf.mxu0
        %v2011 = vadd.f32 0.0, %v2010
        %2012 = vmatmul.bf16.gmra.mxu0 %v1657
        %v2013 = vpop.f32.mrf.mxu0
        %v2014 = vadd.f32 0.0, %v2013
        %v2015 = vpop.f32.mrf.mxu0
        %v2016 = vadd.f32 0.0, %v2015
        %2017 = vmatmul.bf16.gmra.mxu0 %v1665
        %v2018 = vpop.f32.mrf.mxu0
        %v2019 = vpop.f32.mrf.mxu0
        %v2020 = vadd.f32 0.0, %v2019
        %2021 = vmatmul.bf16.gmra.mxu0 %v1673
        %v2022 = vpop.f32.mrf.mxu0
        %v2023 = vadd.f32 0.0, %v2022
        %v2024 = vpop.f32.mrf.mxu0
        %v2025 = vadd.f32 0.0, %v2024
        %2026 = vmatmul.bf16.gmra.mxu0 %v1681
        %v2027 = vpop.f32.mrf.mxu0
        %v2028 = vadd.f32 0.0, %v2027
        %v2029 = vpop.f32.mrf.mxu0
        %2030 = vmatmul.bf16.gmra.mxu0 %v1689
        %v2031 = vpop.f32.mrf.mxu0
        %v2032 = vadd.f32 0.0, %v2031
        %v2033 = vpop.f32.mrf.mxu0
        %v2034 = vadd.f32 0.0, %v2033
        %2035 = vmatmul.bf16.gmra.mxu0 %v1697
        %v2036 = vpop.f32.mrf.mxu0
        %v2037 = vadd.f32 0.0, %v2036
        %v2038 = vpop.f32.mrf.mxu0
        %v2039 = vadd.f32 0.0, %v2038
        %2040 = vmatmul.bf16.gmra.mxu0 %v1705
        %v2041 = vpop.f32.mrf.mxu0
        %v2042 = vpop.f32.mrf.mxu0
        %v2043 = vadd.f32 0.0, %v2042
        %2044 = vmatmul.bf16.gmra.mxu0 %v1713
        %v2045 = vpop.f32.mrf.mxu0
        %v2046 = vadd.f32 0.0, %v2045
        %v2047 = vpop.f32.mrf.mxu0
        %v2048 = vadd.f32 0.0, %v2047
        %2049 = vmatmul.bf16.gmra.mxu0 %v1721
        %v2050 = vpop.f32.mrf.mxu0
        %v2051 = vadd.f32 0.0, %v2050
        %v2052 = vpop.f32.mrf.mxu0
        %2053 = vmatmul.bf16.gmra.mxu0 %v1729
        %v2054 = vpop.f32.mrf.mxu0
        %v2055 = vadd.f32 0.0, %v2054
        %v2056 = vpop.f32.mrf.mxu0
        %v2057 = vadd.f32 0.0, %v2056
        %2058 = vmatmul.bf16.gmra.mxu0 %v1737
        %v2059 = vpop.f32.mrf.mxu0
        %v2060 = vadd.f32 0.0, %v2059
        %v2061 = vpop.f32.mrf.mxu0
        %v2062 = vadd.f32 0.0, %v2061
        %2063 = vmatmul.bf16.gmra.mxu0 %v1745
        %v2064 = vpop.f32.mrf.mxu0
        %v2065 = vpop.f32.mrf.mxu0
        %v2066 = vadd.f32 0.0, %v2065
        %2067 = vmatmul.bf16.gmra.mxu0 %v1753
        %v2068 = vpop.f32.mrf.mxu0
        %v2069 = vadd.f32 0.0, %v2068
        %v2070 = vpop.f32.mrf.mxu0
        %v2071 = vadd.f32 0.0, %v2070
        %2072 = vmatmul.bf16.gmra.mxu0 %v1761
        %v2073 = vpop.f32.mrf.mxu0
        %v2074 = vadd.f32 0.0, %v2073
        %v2075 = vpop.f32.mrf.mxu0
        %2076 = vmatmul.bf16.gmra.mxu0 %v1769
        %v2077 = vpop.f32.mrf.mxu0
        %v2078 = vadd.f32 0.0, %v2077
        %v2079 = vpop.f32.mrf.mxu0
        %v2080 = vadd.f32 0.0, %v2079
        %2081 = vmatmul.bf16.gmra.mxu0 %v1777
        %v2082 = vpop.f32.mrf.mxu0
        %v2083 = vadd.f32 0.0, %v2082
        %v2084 = vpop.f32.mrf.mxu0
        %v2085 = vadd.f32 0.0, %v2084
        %2086 = vmatmul.bf16.gmra.mxu0 %v1785
        %v2087 = vpop.f32.mrf.mxu0
        %v2088 = vpop.f32.mrf.mxu0
        %v2089 = vadd.f32 0.0, %v2088
        %2090 = vmatmul.bf16.gmra.mxu0 %v1793
        %v2091 = vpop.f32.mrf.mxu0
        %v2092 = vadd.f32 0.0, %v2091
        %v2093 = vpop.f32.mrf.mxu0
        %v2094 = vadd.f32 0.0, %v2093
        %2095 = vmatmul.bf16.gmra.mxu0 %v1801
        %v2096 = vpop.f32.mrf.mxu0
        %v2097 = vadd.f32 0.0, %v2096
        %v2098 = vpop.f32.mrf.mxu0
        %2099 = vmatmul.bf16.gmra.mxu0 %v1809
        %v2100 = vpop.f32.mrf.mxu0
        %v2101 = vadd.f32 0.0, %v2100
        %v2102 = vpop.f32.mrf.mxu0
        %v2103 = vadd.f32 0.0, %v2102
        %2104 = vmatmul.bf16.gmra.mxu0 %v1817
        %v2105 = vpop.f32.mrf.mxu0
        %v2106 = vadd.f32 0.0, %v2105
        %v2107 = vpop.f32.mrf.mxu0
        %v2108 = vadd.f32 0.0, %v2107
        %2109 = vmatmul.bf16.gmra.mxu0 %v1825
        %v2110 = vpop.f32.mrf.mxu0
        %v2111 = vpop.f32.mrf.mxu0
        %v2112 = vadd.f32 0.0, %v2111
        %2113 = vmatmul.bf16.gmra.mxu0 %v1833
        %v2114 = vpop.f32.mrf.mxu0
        %v2115 = vadd.f32 0.0, %v2114
        %v2116 = vpop.f32.mrf.mxu0
        %v2117 = vadd.f32 0.0, %v2116
        %2118 = vmatmul.bf16.gmra.mxu0 %v1841
        %v2119 = vpop.f32.mrf.mxu0
        %v2120 = vadd.f32 0.0, %v2119
        %v2121 = vpop.f32.mrf.mxu0
        %2122 = vdwg.mxu0
        %v2123 = vadd.f32 %v1435, %v1940
        %v2124 = vadd.f32 %v1436, %v1942
        %v2125 = vadd.f32 %v1437, %v1945
        %v2126 = vadd.f32 %v1438, %v1947
        %v2127 = vadd.f32 %v1439, %v1951
        %v2128 = vadd.f32 %v1440, %v1954
        %v2129 = vadd.f32 %v1441, %v1956
        %v2130 = vadd.f32 %v1442, %v1959
        %v2131 = vadd.f32 %v1443, %v1963
        %v2132 = vadd.f32 %v1444, %v1965
        %v2133 = vadd.f32 %v1445, %v1968
        %v2134 = vadd.f32 %v1446, %v1970
        %v2135 = vadd.f32 %v1447, %v1974
        %v2136 = vadd.f32 %v1448, %v1977
        %v2137 = vadd.f32 %v1449, %v1979
        %v2138 = vadd.f32 %v1450, %v1982
        %v2139 = vadd.f32 %v1451, %v1986
        %v2140 = vadd.f32 %v1452, %v1988
        %v2141 = vadd.f32 %v1453, %v1991
        %v2142 = vadd.f32 %v1454, %v1993
        %v2143 = vadd.f32 %v1455, %v1997
        %v2144 = vadd.f32 %v1456, %v2000
        %v2145 = vadd.f32 %v1457, %v2002
        %v2146 = vadd.f32 %v1458, %v2005
        %v2147 = vadd.f32 %v1459, %v2009
        %v2148 = vadd.f32 %v1460, %v2011
        %v2149 = vadd.f32 %v1461, %v2014
        %v2150 = vadd.f32 %v1462, %v2016
        %v2151 = vadd.f32 %v1463, %v2020
        %v2152 = vadd.f32 %v1464, %v2023
        %v2153 = vadd.f32 %v1465, %v2025
        %v2154 = vadd.f32 %v1466, %v2028
        %v2155 = vadd.f32 %v1467, %v2032
        %v2156 = vadd.f32 %v1468, %v2034
        %v2157 = vadd.f32 %v1469, %v2037
        %v2158 = vadd.f32 %v1470, %v2039
        %v2159 = vadd.f32 %v1471, %v2043
        %v2160 = vadd.f32 %v1472, %v2046
        %v2161 = vadd.f32 %v1473, %v2048
        %v2162 = vadd.f32 %v1474, %v2051
        %v2163 = vadd.f32 %v1475, %v2055
        %v2164 = vadd.f32 %v1476, %v2057
        %v2165 = vadd.f32 %v1477, %v2060
        %v2166 = vadd.f32 %v1478, %v2062
        %v2167 = vadd.f32 %v1479, %v2066
        %v2168 = vadd.f32 %v1480, %v2069
        %v2169 = vadd.f32 %v1481, %v2071
        %v2170 = vadd.f32 %v1482, %v2074
        %v2171 = vadd.f32 %v1483, %v2078
        %v2172 = vadd.f32 %v1484, %v2080
        %v2173 = vadd.f32 %v1485, %v2083
        %v2174 = vadd.f32 %v1486, %v2085
        %v2175 = vadd.f32 %v1487, %v2089
        %v2176 = vadd.f32 %v1488, %v2092
        %v2177 = vadd.f32 %v1489, %v2094
        %v2178 = vadd.f32 %v1490, %v2097
        %v2179 = vadd.f32 %v1491, %v2101
        %v2180 = vadd.f32 %v1492, %v2103
        %v2181 = vadd.f32 %v1493, %v2106
        %v2182 = vadd.f32 %v1494, %v2108
        %v2183 = vadd.f32 %v1495, %v2112
        %v2184 = vadd.f32 %v1496, %v2115
        %v2185 = vadd.f32 %v1497, %v2117
        %v2186 = vadd.f32 %v1498, %v2120
        %s2187 = scalar_lea.vmem %s1, 256
        %v2188 = vld [vmem:[%s2187] sm:$0xf]
        %v2189 = vld [vmem:[%s2187 + $0x4] sm:$0xf]
        %v2190 = vld [vmem:[%s2187 + $0x8] sm:$0xf]
        %v2191 = vld [vmem:[%s2187 + $0xc] sm:$0xf]
        %v2192 = vld [vmem:[%s2187 + $0x10] sm:$0xf]
        %v2193 = vld [vmem:[%s2187 + $0x14] sm:$0xf]
        %v2194 = vld [vmem:[%s2187 + $0x18] sm:$0xf]
        %v2195 = vld [vmem:[%s2187 + $0x1c] sm:$0xf]
        %v2196 = vld [vmem:[%s2187 + $0x20] sm:$0xf]
        %v2197 = vld [vmem:[%s2187 + $0x24] sm:$0xf]
        %v2198 = vld [vmem:[%s2187 + $0x28] sm:$0xf]
        %v2199 = vld [vmem:[%s2187 + $0x2c] sm:$0xf]
        %v2200 = vld [vmem:[%s2187 + $0x30] sm:$0xf]
        %v2201 = vld [vmem:[%s2187 + $0x34] sm:$0xf]
        %v2202 = vld [vmem:[%s2187 + $0x38] sm:$0xf]
        %v2203 = vld [vmem:[%s2187 + $0x3c] sm:$0xf]
        %v2204 = vpack.c.b16 %v1179, %v1179
        %v2206 = vshrl.u32 %v505, 16
        %v2208 = vshll.u32 %v505, 16
        %v2210 = vrot.slane %v2208, 1
        %v2211 = vor.u32 %v2206, %v2210
        %v2213 = vshll.u32 %v506, 16
        %v2215 = vrot.slane %v2213, 1
        %v2216 = vsel %vm1517, %v2211, %v2215
        %v2217 = vshrl.u32 %v506, 16
        %v2219 = vor.u32 %v2217, %v2215
        %v2221 = vshll.u32 %v507, 16
        %v2223 = vrot.slane %v2221, 1
        %v2224 = vsel %vm1517, %v2219, %v2223
        %v2225 = vshrl.u32 %v507, 16
        %v2227 = vor.u32 %v2225, %v2223
        %v2229 = vshll.u32 %v508, 16
        %v2231 = vrot.slane %v2229, 1
        %v2232 = vsel %vm1517, %v2227, %v2231
        %v2233 = vshrl.u32 %v508, 16
        %v2235 = vor.u32 %v2233, %v2231
        %v2237 = vshll.u32 %v509, 16
        %v2239 = vrot.slane %v2237, 1
        %v2240 = vsel %vm1517, %v2235, %v2239
        %v2241 = vshrl.u32 %v509, 16
        %v2243 = vor.u32 %v2241, %v2239
        %v2245 = vshll.u32 %v510, 16
        %v2247 = vrot.slane %v2245, 1
        %v2248 = vsel %vm1517, %v2243, %v2247
        %v2249 = vshrl.u32 %v510, 16
        %v2251 = vor.u32 %v2249, %v2247
        %v2253 = vshll.u32 %v511, 16
        %v2255 = vrot.slane %v2253, 1
        %v2256 = vsel %vm1517, %v2251, %v2255
        %v2257 = vshrl.u32 %v511, 16
        %v2259 = vor.u32 %v2257, %v2255
        %v2261 = vshll.u32 %v512, 16
        %v2263 = vrot.slane %v2261, 1
        %v2264 = vsel %vm1517, %v2259, %v2263
        %v2265 = vshrl.u32 %v512, 16
        %v2267 = vor.u32 %v2265, %v2263
        %v2269 = vshll.u32 %v513, 16
        %v2271 = vrot.slane %v2269, 1
        %v2272 = vsel %vm1517, %v2267, %v2271
        %v2273 = vshrl.u32 %v513, 16
        %v2275 = vor.u32 %v2273, %v2271
        %v2277 = vshll.u32 %v514, 16
        %v2279 = vrot.slane %v2277, 1
        %v2280 = vsel %vm1517, %v2275, %v2279
        %v2281 = vshrl.u32 %v514, 16
        %v2283 = vor.u32 %v2281, %v2279
        %v2285 = vshll.u32 %v515, 16
        %v2287 = vrot.slane %v2285, 1
        %v2288 = vsel %vm1517, %v2283, %v2287
        %v2289 = vshrl.u32 %v515, 16
        %v2291 = vor.u32 %v2289, %v2287
        %v2293 = vshll.u32 %v516, 16
        %v2295 = vrot.slane %v2293, 1
        %v2296 = vsel %vm1517, %v2291, %v2295
        %v2297 = vshrl.u32 %v516, 16
        %v2299 = vor.u32 %v2297, %v2295
        %v2301 = vshll.u32 %v517, 16
        %v2303 = vrot.slane %v2301, 1
        %v2304 = vsel %vm1517, %v2299, %v2303
        %v2305 = vshrl.u32 %v517, 16
        %v2307 = vor.u32 %v2305, %v2303
        %v2309 = vshll.u32 %v518, 16
        %v2311 = vrot.slane %v2309, 1
        %v2312 = vsel %vm1517, %v2307, %v2311
        %v2313 = vshrl.u32 %v518, 16
        %v2315 = vor.u32 %v2313, %v2311
        %v2317 = vshll.u32 %v519, 16
        %v2319 = vrot.slane %v2317, 1
        %v2320 = vsel %vm1517, %v2315, %v2319
        %v2321 = vshrl.u32 %v519, 16
        %v2323 = vor.u32 %v2321, %v2319
        %v2325 = vshll.u32 %v520, 16
        %v2327 = vrot.slane %v2325, 1
        %v2328 = vsel %vm1517, %v2323, %v2327
        %v2329 = vshrl.u32 %v520, 16
        %v2331 = vor.u32 %v2329, %v2327
        %v2333 = vshll.u32 %v521, 16
        %v2335 = vrot.slane %v2333, 1
        %v2336 = vsel %vm1517, %v2331, %v2335
        %v2337 = vshrl.u32 %v521, 16
        %v2339 = vor.u32 %v2337, %v2335
        %v2341 = vshll.u32 %v522, 16
        %v2343 = vrot.slane %v2341, 1
        %v2344 = vsel %vm1517, %v2339, %v2343
        %v2345 = vshrl.u32 %v522, 16
        %v2347 = vor.u32 %v2345, %v2343
        %v2349 = vshll.u32 %v523, 16
        %v2351 = vrot.slane %v2349, 1
        %v2352 = vsel %vm1517, %v2347, %v2351
        %v2353 = vshrl.u32 %v523, 16
        %v2355 = vor.u32 %v2353, %v2351
        %v2357 = vshll.u32 %v524, 16
        %v2359 = vrot.slane %v2357, 1
        %v2360 = vsel %vm1517, %v2355, %v2359
        %v2361 = vshrl.u32 %v524, 16
        %v2363 = vor.u32 %v2361, %v2359
        %v2365 = vshll.u32 %v525, 16
        %v2367 = vrot.slane %v2365, 1
        %v2368 = vsel %vm1517, %v2363, %v2367
        %v2369 = vshrl.u32 %v525, 16
        %v2371 = vor.u32 %v2369, %v2367
        %v2373 = vshll.u32 %v526, 16
        %v2375 = vrot.slane %v2373, 1
        %v2376 = vsel %vm1517, %v2371, %v2375
        %v2377 = vshrl.u32 %v526, 16
        %v2379 = vor.u32 %v2377, %v2375
        %v2381 = vshll.u32 %v527, 16
        %v2383 = vrot.slane %v2381, 1
        %v2384 = vsel %vm1517, %v2379, %v2383
        %v2385 = vshrl.u32 %v527, 16
        %v2387 = vor.u32 %v2385, %v2383
        %v2389 = vshll.u32 %v528, 16
        %v2391 = vrot.slane %v2389, 1
        %v2392 = vsel %vm1517, %v2387, %v2391
        %v2393 = vshrl.u32 %v528, 16
        %v2395 = vor.u32 %v2393, %v2391
        %v2397 = vshll.u32 %v529, 16
        %v2399 = vrot.slane %v2397, 1
        %v2400 = vsel %vm1517, %v2395, %v2399
        %v2401 = vshrl.u32 %v529, 16
        %v2403 = vor.u32 %v2401, %v2399
        %v2405 = vshll.u32 %v530, 16
        %v2407 = vrot.slane %v2405, 1
        %v2408 = vsel %vm1517, %v2403, %v2407
        %v2409 = vshrl.u32 %v530, 16
        %v2411 = vor.u32 %v2409, %v2407
        %v2413 = vshll.u32 %v531, 16
        %v2415 = vrot.slane %v2413, 1
        %v2416 = vsel %vm1517, %v2411, %v2415
        %v2417 = vshrl.u32 %v531, 16
        %v2419 = vor.u32 %v2417, %v2415
        %v2421 = vshll.u32 %v532, 16
        %v2423 = vrot.slane %v2421, 1
        %v2424 = vsel %vm1517, %v2419, %v2423
        %v2425 = vshrl.u32 %v532, 16
        %v2427 = vor.u32 %v2425, %v2423
        %v2429 = vshll.u32 %v533, 16
        %v2431 = vrot.slane %v2429, 1
        %v2432 = vsel %vm1517, %v2427, %v2431
        %v2433 = vshrl.u32 %v533, 16
        %v2435 = vor.u32 %v2433, %v2431
        %v2437 = vshll.u32 %v534, 16
        %v2439 = vrot.slane %v2437, 1
        %v2440 = vsel %vm1517, %v2435, %v2439
        %v2441 = vshrl.u32 %v534, 16
        %v2443 = vor.u32 %v2441, %v2439
        %v2445 = vshll.u32 %v535, 16
        %v2447 = vrot.slane %v2445, 1
        %v2448 = vsel %vm1517, %v2443, %v2447
        %v2449 = vshrl.u32 %v535, 16
        %v2451 = vor.u32 %v2449, %v2447
        %v2453 = vshll.u32 %v536, 16
        %v2455 = vrot.slane %v2453, 1
        %v2456 = vsel %vm1517, %v2451, %v2455
        %v2457 = vshrl.u32 %v536, 16
        %v2459 = vor.u32 %v2457, %v2455
        %v2461 = vshll.u32 %v537, 16
        %v2463 = vrot.slane %v2461, 1
        %v2464 = vsel %vm1517, %v2459, %v2463
        %v2465 = vshrl.u32 %v537, 16
        %v2467 = vor.u32 %v2465, %v2463
        %v2469 = vshll.u32 %v538, 16
        %v2471 = vrot.slane %v2469, 1
        %v2472 = vsel %vm1517, %v2467, %v2471
        %v2473 = vshrl.u32 %v538, 16
        %v2475 = vor.u32 %v2473, %v2471
        %v2477 = vshll.u32 %v539, 16
        %v2479 = vrot.slane %v2477, 1
        %v2480 = vsel %vm1517, %v2475, %v2479
        %v2481 = vshrl.u32 %v539, 16
        %v2483 = vor.u32 %v2481, %v2479
        %v2485 = vshll.u32 %v540, 16
        %v2487 = vrot.slane %v2485, 1
        %v2488 = vsel %vm1517, %v2483, %v2487
        %v2489 = vshrl.u32 %v540, 16
        %v2491 = vor.u32 %v2489, %v2487
        %v2493 = vshll.u32 %v541, 16
        %v2495 = vrot.slane %v2493, 1
        %v2496 = vsel %vm1517, %v2491, %v2495
        %v2497 = vshrl.u32 %v541, 16
        %v2499 = vor.u32 %v2497, %v2495
        %v2501 = vshll.u32 %v542, 16
        %v2503 = vrot.slane %v2501, 1
        %v2504 = vsel %vm1517, %v2499, %v2503
        %v2505 = vshrl.u32 %v542, 16
        %v2507 = vor.u32 %v2505, %v2503
        %v2509 = vshll.u32 %v543, 16
        %v2511 = vrot.slane %v2509, 1
        %v2512 = vsel %vm1517, %v2507, %v2511
        %v2513 = vshrl.u32 %v543, 16
        %v2515 = vor.u32 %v2513, %v2511
        %v2517 = vshll.u32 %v544, 16
        %v2519 = vrot.slane %v2517, 1
        %v2520 = vsel %vm1517, %v2515, %v2519
        %v2521 = vshrl.u32 %v544, 16
        %v2523 = vor.u32 %v2521, %v2519
        %v2525 = vshll.u32 %v2204, 16
        %v2527 = vrot.slane %v2525, 1
        %v2528 = vsel %vm1517, %v2523, %v2527
        %v2585 = vunpack.c.l.b16 %v2188
        %v2586 = vunpack.c.l.b16 %v2189
        %v2587 = vunpack.c.l.b16 %v2190
        %v2588 = vunpack.c.l.b16 %v2191
        %v2589 = vunpack.c.l.b16 %v2192
        %v2590 = vunpack.c.l.b16 %v2193
        %v2591 = vunpack.c.l.b16 %v2194
        %v2592 = vunpack.c.l.b16 %v2195
        %v2593 = vunpack.c.l.b16 %v2196
        %v2594 = vunpack.c.l.b16 %v2197
        %v2595 = vunpack.c.l.b16 %v2198
        %v2596 = vunpack.c.l.b16 %v2199
        %v2597 = vunpack.c.l.b16 %v2200
        %v2598 = vunpack.c.l.b16 %v2201
        %v2599 = vunpack.c.l.b16 %v2202
        %v2600 = vunpack.c.l.b16 %v2203
        %v2601 = vpack.c.b16 %v2586, %v2585
        %v2602 = vpack.c.b16 %v2588, %v2587
        %v2603 = vpack.c.b16 %v2590, %v2589
        %v2604 = vpack.c.b16 %v2592, %v2591
        %v2605 = vpack.c.b16 %v2594, %v2593
        %v2606 = vpack.c.b16 %v2596, %v2595
        %v2607 = vpack.c.b16 %v2598, %v2597
        %v2608 = vpack.c.b16 %v2600, %v2599
        %2617 = vmatpush.bf16.msra.mxu0 %v2608
        %2618 = vmatpush.bf16.msra.mxu0 %v2607
        %2619 = vmatpush.bf16.msra.mxu0 %v2606
        %2620 = vmatpush.bf16.msra.mxu0 %v2605
        %2621 = vmatpush.bf16.msra.mxu0 %v2604
        %2622 = vmatpush.bf16.msra.mxu0 %v2603
        %2623 = vmatpush.bf16.msra.mxu0 %v2602
        %2624 = vmatpush.bf16.msra.mxu0 %v2601
        %2625 = vmatmul.bf16.gmra.mxu0 %v2216
        %v2626 = vpop.f32.mrf.mxu0
        %v2627 = vadd.f32 0.0, %v2626
        %v2628 = vpop.f32.mrf.mxu0
        %v2629 = vadd.f32 0.0, %v2628
        %2630 = vmatmul.bf16.gmra.mxu0 %v2224
        %v2631 = vpop.f32.mrf.mxu0
        %v2632 = vadd.f32 0.0, %v2631
        %v2633 = vpop.f32.mrf.mxu0
        %v2634 = vadd.f32 0.0, %v2633
        %2635 = vmatmul.bf16.gmra.mxu0 %v2232
        %v2636 = vpop.f32.mrf.mxu0
        %v2637 = vpop.f32.mrf.mxu0
        %v2638 = vadd.f32 0.0, %v2637
        %2639 = vmatmul.bf16.gmra.mxu0 %v2240
        %v2640 = vpop.f32.mrf.mxu0
        %v2641 = vadd.f32 0.0, %v2640
        %v2642 = vpop.f32.mrf.mxu0
        %v2643 = vadd.f32 0.0, %v2642
        %2644 = vmatmul.bf16.gmra.mxu0 %v2248
        %v2645 = vpop.f32.mrf.mxu0
        %v2646 = vadd.f32 0.0, %v2645
        %v2647 = vpop.f32.mrf.mxu0
        %2648 = vmatmul.bf16.gmra.mxu0 %v2256
        %v2649 = vpop.f32.mrf.mxu0
        %v2650 = vadd.f32 0.0, %v2649
        %v2651 = vpop.f32.mrf.mxu0
        %v2652 = vadd.f32 0.0, %v2651
        %2653 = vmatmul.bf16.gmra.mxu0 %v2264
        %v2654 = vpop.f32.mrf.mxu0
        %v2655 = vadd.f32 0.0, %v2654
        %v2656 = vpop.f32.mrf.mxu0
        %v2657 = vadd.f32 0.0, %v2656
        %2658 = vmatmul.bf16.gmra.mxu0 %v2272
        %v2659 = vpop.f32.mrf.mxu0
        %v2660 = vpop.f32.mrf.mxu0
        %v2661 = vadd.f32 0.0, %v2660
        %2662 = vmatmul.bf16.gmra.mxu0 %v2280
        %v2663 = vpop.f32.mrf.mxu0
        %v2664 = vadd.f32 0.0, %v2663
        %v2665 = vpop.f32.mrf.mxu0
        %v2666 = vadd.f32 0.0, %v2665
        %2667 = vmatmul.bf16.gmra.mxu0 %v2288
        %v2668 = vpop.f32.mrf.mxu0
        %v2669 = vadd.f32 0.0, %v2668
        %v2670 = vpop.f32.mrf.mxu0
        %2671 = vmatmul.bf16.gmra.mxu0 %v2296
        %v2672 = vpop.f32.mrf.mxu0
        %v2673 = vadd.f32 0.0, %v2672
        %v2674 = vpop.f32.mrf.mxu0
        %v2675 = vadd.f32 0.0, %v2674
        %2676 = vmatmul.bf16.gmra.mxu0 %v2304
        %v2677 = vpop.f32.mrf.mxu0
        %v2678 = vadd.f32 0.0, %v2677
        %v2679 = vpop.f32.mrf.mxu0
        %v2680 = vadd.f32 0.0, %v2679
        %2681 = vmatmul.bf16.gmra.mxu0 %v2312
        %v2682 = vpop.f32.mrf.mxu0
        %v2683 = vpop.f32.mrf.mxu0
        %v2684 = vadd.f32 0.0, %v2683
        %2685 = vmatmul.bf16.gmra.mxu0 %v2320
        %v2686 = vpop.f32.mrf.mxu0
        %v2687 = vadd.f32 0.0, %v2686
        %v2688 = vpop.f32.mrf.mxu0
        %v2689 = vadd.f32 0.0, %v2688
        %2690 = vmatmul.bf16.gmra.mxu0 %v2328
        %v2691 = vpop.f32.mrf.mxu0
        %v2692 = vadd.f32 0.0, %v2691
        %v2693 = vpop.f32.mrf.mxu0
        %2694 = vmatmul.bf16.gmra.mxu0 %v2336
        %v2695 = vpop.f32.mrf.mxu0
        %v2696 = vadd.f32 0.0, %v2695
        %v2697 = vpop.f32.mrf.mxu0
        %v2698 = vadd.f32 0.0, %v2697
        %2699 = vmatmul.bf16.gmra.mxu0 %v2344
        %v2700 = vpop.f32.mrf.mxu0
        %v2701 = vadd.f32 0.0, %v2700
        %v2702 = vpop.f32.mrf.mxu0
        %v2703 = vadd.f32 0.0, %v2702
        %2704 = vmatmul.bf16.gmra.mxu0 %v2352
        %v2705 = vpop.f32.mrf.mxu0
        %v2706 = vpop.f32.mrf.mxu0
        %v2707 = vadd.f32 0.0, %v2706
        %2708 = vmatmul.bf16.gmra.mxu0 %v2360
        %v2709 = vpop.f32.mrf.mxu0
        %v2710 = vadd.f32 0.0, %v2709
        %v2711 = vpop.f32.mrf.mxu0
        %v2712 = vadd.f32 0.0, %v2711
        %2713 = vmatmul.bf16.gmra.mxu0 %v2368
        %v2714 = vpop.f32.mrf.mxu0
        %v2715 = vadd.f32 0.0, %v2714
        %v2716 = vpop.f32.mrf.mxu0
        %2717 = vmatmul.bf16.gmra.mxu0 %v2376
        %v2718 = vpop.f32.mrf.mxu0
        %v2719 = vadd.f32 0.0, %v2718
        %v2720 = vpop.f32.mrf.mxu0
        %v2721 = vadd.f32 0.0, %v2720
        %2722 = vmatmul.bf16.gmra.mxu0 %v2384
        %v2723 = vpop.f32.mrf.mxu0
        %v2724 = vadd.f32 0.0, %v2723
        %v2725 = vpop.f32.mrf.mxu0
        %v2726 = vadd.f32 0.0, %v2725
        %2727 = vmatmul.bf16.gmra.mxu0 %v2392
        %v2728 = vpop.f32.mrf.mxu0
        %v2729 = vpop.f32.mrf.mxu0
        %v2730 = vadd.f32 0.0, %v2729
        %2731 = vmatmul.bf16.gmra.mxu0 %v2400
        %v2732 = vpop.f32.mrf.mxu0
        %v2733 = vadd.f32 0.0, %v2732
        %v2734 = vpop.f32.mrf.mxu0
        %v2735 = vadd.f32 0.0, %v2734
        %2736 = vmatmul.bf16.gmra.mxu0 %v2408
        %v2737 = vpop.f32.mrf.mxu0
        %v2738 = vadd.f32 0.0, %v2737
        %v2739 = vpop.f32.mrf.mxu0
        %2740 = vmatmul.bf16.gmra.mxu0 %v2416
        %v2741 = vpop.f32.mrf.mxu0
        %v2742 = vadd.f32 0.0, %v2741
        %v2743 = vpop.f32.mrf.mxu0
        %v2744 = vadd.f32 0.0, %v2743
        %2745 = vmatmul.bf16.gmra.mxu0 %v2424
        %v2746 = vpop.f32.mrf.mxu0
        %v2747 = vadd.f32 0.0, %v2746
        %v2748 = vpop.f32.mrf.mxu0
        %v2749 = vadd.f32 0.0, %v2748
        %2750 = vmatmul.bf16.gmra.mxu0 %v2432
        %v2751 = vpop.f32.mrf.mxu0
        %v2752 = vpop.f32.mrf.mxu0
        %v2753 = vadd.f32 0.0, %v2752
        %2754 = vmatmul.bf16.gmra.mxu0 %v2440
        %v2755 = vpop.f32.mrf.mxu0
        %v2756 = vadd.f32 0.0, %v2755
        %v2757 = vpop.f32.mrf.mxu0
        %v2758 = vadd.f32 0.0, %v2757
        %2759 = vmatmul.bf16.gmra.mxu0 %v2448
        %v2760 = vpop.f32.mrf.mxu0
        %v2761 = vadd.f32 0.0, %v2760
        %v2762 = vpop.f32.mrf.mxu0
        %2763 = vmatmul.bf16.gmra.mxu0 %v2456
        %v2764 = vpop.f32.mrf.mxu0
        %v2765 = vadd.f32 0.0, %v2764
        %v2766 = vpop.f32.mrf.mxu0
        %v2767 = vadd.f32 0.0, %v2766
        %2768 = vmatmul.bf16.gmra.mxu0 %v2464
        %v2769 = vpop.f32.mrf.mxu0
        %v2770 = vadd.f32 0.0, %v2769
        %v2771 = vpop.f32.mrf.mxu0
        %v2772 = vadd.f32 0.0, %v2771
        %2773 = vmatmul.bf16.gmra.mxu0 %v2472
        %v2774 = vpop.f32.mrf.mxu0
        %v2775 = vpop.f32.mrf.mxu0
        %v2776 = vadd.f32 0.0, %v2775
        %2777 = vmatmul.bf16.gmra.mxu0 %v2480
        %v2778 = vpop.f32.mrf.mxu0
        %v2779 = vadd.f32 0.0, %v2778
        %v2780 = vpop.f32.mrf.mxu0
        %v2781 = vadd.f32 0.0, %v2780
        %2782 = vmatmul.bf16.gmra.mxu0 %v2488
        %v2783 = vpop.f32.mrf.mxu0
        %v2784 = vadd.f32 0.0, %v2783
        %v2785 = vpop.f32.mrf.mxu0
        %2786 = vmatmul.bf16.gmra.mxu0 %v2496
        %v2787 = vpop.f32.mrf.mxu0
        %v2788 = vadd.f32 0.0, %v2787
        %v2789 = vpop.f32.mrf.mxu0
        %v2790 = vadd.f32 0.0, %v2789
        %2791 = vmatmul.bf16.gmra.mxu0 %v2504
        %v2792 = vpop.f32.mrf.mxu0
        %v2793 = vadd.f32 0.0, %v2792
        %v2794 = vpop.f32.mrf.mxu0
        %v2795 = vadd.f32 0.0, %v2794
        %2796 = vmatmul.bf16.gmra.mxu0 %v2512
        %v2797 = vpop.f32.mrf.mxu0
        %v2798 = vpop.f32.mrf.mxu0
        %v2799 = vadd.f32 0.0, %v2798
        %2800 = vmatmul.bf16.gmra.mxu0 %v2520
        %v2801 = vpop.f32.mrf.mxu0
        %v2802 = vadd.f32 0.0, %v2801
        %v2803 = vpop.f32.mrf.mxu0
        %v2804 = vadd.f32 0.0, %v2803
        %2805 = vmatmul.bf16.gmra.mxu0 %v2528
        %v2806 = vpop.f32.mrf.mxu0
        %v2807 = vadd.f32 0.0, %v2806
        %v2808 = vpop.f32.mrf.mxu0
        %2809 = vdwg.mxu0
        %v2810 = vadd.f32 %v2123, %v2627
        %v2811 = vadd.f32 %v2124, %v2629
        %v2812 = vadd.f32 %v2125, %v2632
        %v2813 = vadd.f32 %v2126, %v2634
        %v2814 = vadd.f32 %v2127, %v2638
        %v2815 = vadd.f32 %v2128, %v2641
        %v2816 = vadd.f32 %v2129, %v2643
        %v2817 = vadd.f32 %v2130, %v2646
        %v2818 = vadd.f32 %v2131, %v2650
        %v2819 = vadd.f32 %v2132, %v2652
        %v2820 = vadd.f32 %v2133, %v2655
        %v2821 = vadd.f32 %v2134, %v2657
        %v2822 = vadd.f32 %v2135, %v2661
        %v2823 = vadd.f32 %v2136, %v2664
        %v2824 = vadd.f32 %v2137, %v2666
        %v2825 = vadd.f32 %v2138, %v2669
        %v2826 = vadd.f32 %v2139, %v2673
        %v2827 = vadd.f32 %v2140, %v2675
        %v2828 = vadd.f32 %v2141, %v2678
        %v2829 = vadd.f32 %v2142, %v2680
        %v2830 = vadd.f32 %v2143, %v2684
        %v2831 = vadd.f32 %v2144, %v2687
        %v2832 = vadd.f32 %v2145, %v2689
        %v2833 = vadd.f32 %v2146, %v2692
        %v2834 = vadd.f32 %v2147, %v2696
        %v2835 = vadd.f32 %v2148, %v2698
        %v2836 = vadd.f32 %v2149, %v2701
        %v2837 = vadd.f32 %v2150, %v2703
        %v2838 = vadd.f32 %v2151, %v2707
        %v2839 = vadd.f32 %v2152, %v2710
        %v2840 = vadd.f32 %v2153, %v2712
        %v2841 = vadd.f32 %v2154, %v2715
        %v2842 = vadd.f32 %v2155, %v2719
        %v2843 = vadd.f32 %v2156, %v2721
        %v2844 = vadd.f32 %v2157, %v2724
        %v2845 = vadd.f32 %v2158, %v2726
        %v2846 = vadd.f32 %v2159, %v2730
        %v2847 = vadd.f32 %v2160, %v2733
        %v2848 = vadd.f32 %v2161, %v2735
        %v2849 = vadd.f32 %v2162, %v2738
        %v2850 = vadd.f32 %v2163, %v2742
        %v2851 = vadd.f32 %v2164, %v2744
        %v2852 = vadd.f32 %v2165, %v2747
        %v2853 = vadd.f32 %v2166, %v2749
        %v2854 = vadd.f32 %v2167, %v2753
        %v2855 = vadd.f32 %v2168, %v2756
        %v2856 = vadd.f32 %v2169, %v2758
        %v2857 = vadd.f32 %v2170, %v2761
        %v2858 = vadd.f32 %v2171, %v2765
        %v2859 = vadd.f32 %v2172, %v2767
        %v2860 = vadd.f32 %v2173, %v2770
        %v2861 = vadd.f32 %v2174, %v2772
        %v2862 = vadd.f32 %v2175, %v2776
        %v2863 = vadd.f32 %v2176, %v2779
        %v2864 = vadd.f32 %v2177, %v2781
        %v2865 = vadd.f32 %v2178, %v2784
        %v2866 = vadd.f32 %v2179, %v2788
        %v2867 = vadd.f32 %v2180, %v2790
        %v2868 = vadd.f32 %v2181, %v2793
        %v2869 = vadd.f32 %v2182, %v2795
        %v2870 = vadd.f32 %v2183, %v2799
        %v2871 = vadd.f32 %v2184, %v2802
        %v2872 = vadd.f32 %v2185, %v2804
        %v2873 = vadd.f32 %v2186, %v2807
        %s2874 = scalar_lea.vmem %s1, 448
        %v2875 = vld [vmem:[%s2874] sm:$0xf]
        %v2876 = vld [vmem:[%s2874 + $0x4] sm:$0xf]
        %v2877 = vld [vmem:[%s2874 + $0x8] sm:$0xf]
        %v2878 = vld [vmem:[%s2874 + $0xc] sm:$0xf]
        %v2879 = vld [vmem:[%s2874 + $0x10] sm:$0xf]
        %v2880 = vld [vmem:[%s2874 + $0x14] sm:$0xf]
        %v2881 = vld [vmem:[%s2874 + $0x18] sm:$0xf]
        %v2882 = vld [vmem:[%s2874 + $0x1c] sm:$0xf]
        %v2883 = vld [vmem:[%s2874 + $0x20] sm:$0xf]
        %v2884 = vld [vmem:[%s2874 + $0x24] sm:$0xf]
        %v2885 = vld [vmem:[%s2874 + $0x28] sm:$0xf]
        %v2886 = vld [vmem:[%s2874 + $0x2c] sm:$0xf]
        %v2887 = vld [vmem:[%s2874 + $0x30] sm:$0xf]
        %v2888 = vld [vmem:[%s2874 + $0x34] sm:$0xf]
        %v2889 = vld [vmem:[%s2874 + $0x38] sm:$0xf]
        %v2890 = vld [vmem:[%s2874 + $0x3c] sm:$0xf]
        %v2892 = vunpack.c.l.b16 %v311
        %v2893 = vpack.c.b16 %v2892, %v2892
        %v2895 = vshll.u32 %v1184, 16
        %v2897 = vrot.slane %v2895, 1
        %v2898 = vsel %vm1517, %v1836, %v2897
        %v2899 = vshrl.u32 %v1184, 16
        %v2901 = vor.u32 %v2899, %v2897
        %v2903 = vshll.u32 %v1185, 16
        %v2905 = vrot.slane %v2903, 1
        %v2906 = vsel %vm1517, %v2901, %v2905
        %v2907 = vshrl.u32 %v1185, 16
        %v2909 = vor.u32 %v2907, %v2905
        %v2911 = vshll.u32 %v1186, 16
        %v2913 = vrot.slane %v2911, 1
        %v2914 = vsel %vm1517, %v2909, %v2913
        %v2915 = vshrl.u32 %v1186, 16
        %v2917 = vor.u32 %v2915, %v2913
        %v2919 = vshll.u32 %v1187, 16
        %v2921 = vrot.slane %v2919, 1
        %v2922 = vsel %vm1517, %v2917, %v2921
        %v2923 = vshrl.u32 %v1187, 16
        %v2925 = vor.u32 %v2923, %v2921
        %v2927 = vshll.u32 %v1188, 16
        %v2929 = vrot.slane %v2927, 1
        %v2930 = vsel %vm1517, %v2925, %v2929
        %v2931 = vshrl.u32 %v1188, 16
        %v2933 = vor.u32 %v2931, %v2929
        %v2935 = vshll.u32 %v2893, 16
        %v2937 = vrot.slane %v2935, 1
        %v2938 = vsel %vm1517, %v2933, %v2937
        %v2961 = vunpack.c.l.b16 %v2875
        %v2962 = vunpack.c.l.b16 %v2876
        %v2963 = vunpack.c.l.b16 %v2877
        %v2964 = vunpack.c.l.b16 %v2878
        %v2965 = vunpack.c.l.b16 %v2879
        %v2966 = vunpack.c.l.b16 %v2880
        %v2967 = vunpack.c.l.b16 %v2881
        %v2968 = vunpack.c.l.b16 %v2882
        %v2969 = vunpack.c.l.b16 %v2883
        %v2970 = vunpack.c.l.b16 %v2884
        %v2971 = vunpack.c.l.b16 %v2885
        %v2972 = vunpack.c.l.b16 %v2886
        %v2973 = vunpack.c.l.b16 %v2887
        %v2974 = vunpack.c.l.b16 %v2888
        %v2975 = vunpack.c.l.b16 %v2889
        %v2976 = vunpack.c.l.b16 %v2890
        %v2977 = vpack.c.b16 %v2962, %v2961
        %v2978 = vpack.c.b16 %v2964, %v2963
        %v2979 = vpack.c.b16 %v2966, %v2965
        %v2980 = vpack.c.b16 %v2968, %v2967
        %v2981 = vpack.c.b16 %v2970, %v2969
        %v2982 = vpack.c.b16 %v2972, %v2971
        %v2983 = vpack.c.b16 %v2974, %v2973
        %v2984 = vpack.c.b16 %v2976, %v2975
        %2993 = vmatpush.bf16.msra.mxu0 %v2984
        %2994 = vmatpush.bf16.msra.mxu0 %v2983
        %2995 = vmatpush.bf16.msra.mxu0 %v2982
        %2996 = vmatpush.bf16.msra.mxu0 %v2981
        %2997 = vmatpush.bf16.msra.mxu0 %v2980
        %2998 = vmatpush.bf16.msra.mxu0 %v2979
        %2999 = vmatpush.bf16.msra.mxu0 %v2978
        %3000 = vmatpush.bf16.msra.mxu0 %v2977
        %3001 = vmatmul.bf16.gmra.mxu0 %v1569
        %v3002 = vpop.f32.mrf.mxu0
        %v3003 = vadd.f32 0.0, %v3002
        %v3004 = vpop.f32.mrf.mxu0
        %v3005 = vadd.f32 0.0, %v3004
        %3006 = vmatmul.bf16.gmra.mxu0 %v1577
        %v3007 = vpop.f32.mrf.mxu0
        %v3008 = vadd.f32 0.0, %v3007
        %v3009 = vpop.f32.mrf.mxu0
        %v3010 = vadd.f32 0.0, %v3009
        %3011 = vmatmul.bf16.gmra.mxu0 %v1585
        %v3012 = vpop.f32.mrf.mxu0
        %v3013 = vpop.f32.mrf.mxu0
        %v3014 = vadd.f32 0.0, %v3013
        %3015 = vmatmul.bf16.gmra.mxu0 %v1593
        %v3016 = vpop.f32.mrf.mxu0
        %v3017 = vadd.f32 0.0, %v3016
        %v3018 = vpop.f32.mrf.mxu0
        %v3019 = vadd.f32 0.0, %v3018
        %3020 = vmatmul.bf16.gmra.mxu0 %v1601
        %v3021 = vpop.f32.mrf.mxu0
        %v3022 = vadd.f32 0.0, %v3021
        %v3023 = vpop.f32.mrf.mxu0
        %3024 = vmatmul.bf16.gmra.mxu0 %v1609
        %v3025 = vpop.f32.mrf.mxu0
        %v3026 = vadd.f32 0.0, %v3025
        %v3027 = vpop.f32.mrf.mxu0
        %v3028 = vadd.f32 0.0, %v3027
        %3029 = vmatmul.bf16.gmra.mxu0 %v1617
        %v3030 = vpop.f32.mrf.mxu0
        %v3031 = vadd.f32 0.0, %v3030
        %v3032 = vpop.f32.mrf.mxu0
        %v3033 = vadd.f32 0.0, %v3032
        %3034 = vmatmul.bf16.gmra.mxu0 %v1625
        %v3035 = vpop.f32.mrf.mxu0
        %v3036 = vpop.f32.mrf.mxu0
        %v3037 = vadd.f32 0.0, %v3036
        %3038 = vmatmul.bf16.gmra.mxu0 %v1633
        %v3039 = vpop.f32.mrf.mxu0
        %v3040 = vadd.f32 0.0, %v3039
        %v3041 = vpop.f32.mrf.mxu0
        %v3042 = vadd.f32 0.0, %v3041
        %3043 = vmatmul.bf16.gmra.mxu0 %v1641
        %v3044 = vpop.f32.mrf.mxu0
        %v3045 = vadd.f32 0.0, %v3044
        %v3046 = vpop.f32.mrf.mxu0
        %3047 = vmatmul.bf16.gmra.mxu0 %v1649
        %v3048 = vpop.f32.mrf.mxu0
        %v3049 = vadd.f32 0.0, %v3048
        %v3050 = vpop.f32.mrf.mxu0
        %v3051 = vadd.f32 0.0, %v3050
        %3052 = vmatmul.bf16.gmra.mxu0 %v1657
        %v3053 = vpop.f32.mrf.mxu0
        %v3054 = vadd.f32 0.0, %v3053
        %v3055 = vpop.f32.mrf.mxu0
        %v3056 = vadd.f32 0.0, %v3055
        %3057 = vmatmul.bf16.gmra.mxu0 %v1665
        %v3058 = vpop.f32.mrf.mxu0
        %v3059 = vpop.f32.mrf.mxu0
        %v3060 = vadd.f32 0.0, %v3059
        %3061 = vmatmul.bf16.gmra.mxu0 %v1673
        %v3062 = vpop.f32.mrf.mxu0
        %v3063 = vadd.f32 0.0, %v3062
        %v3064 = vpop.f32.mrf.mxu0
        %v3065 = vadd.f32 0.0, %v3064
        %3066 = vmatmul.bf16.gmra.mxu0 %v1681
        %v3067 = vpop.f32.mrf.mxu0
        %v3068 = vadd.f32 0.0, %v3067
        %v3069 = vpop.f32.mrf.mxu0
        %3070 = vmatmul.bf16.gmra.mxu0 %v1689
        %v3071 = vpop.f32.mrf.mxu0
        %v3072 = vadd.f32 0.0, %v3071
        %v3073 = vpop.f32.mrf.mxu0
        %v3074 = vadd.f32 0.0, %v3073
        %3075 = vmatmul.bf16.gmra.mxu0 %v1697
        %v3076 = vpop.f32.mrf.mxu0
        %v3077 = vadd.f32 0.0, %v3076
        %v3078 = vpop.f32.mrf.mxu0
        %v3079 = vadd.f32 0.0, %v3078
        %3080 = vmatmul.bf16.gmra.mxu0 %v1705
        %v3081 = vpop.f32.mrf.mxu0
        %v3082 = vpop.f32.mrf.mxu0
        %v3083 = vadd.f32 0.0, %v3082
        %3084 = vmatmul.bf16.gmra.mxu0 %v1713
        %v3085 = vpop.f32.mrf.mxu0
        %v3086 = vadd.f32 0.0, %v3085
        %v3087 = vpop.f32.mrf.mxu0
        %v3088 = vadd.f32 0.0, %v3087
        %3089 = vmatmul.bf16.gmra.mxu0 %v1721
        %v3090 = vpop.f32.mrf.mxu0
        %v3091 = vadd.f32 0.0, %v3090
        %v3092 = vpop.f32.mrf.mxu0
        %3093 = vmatmul.bf16.gmra.mxu0 %v1729
        %v3094 = vpop.f32.mrf.mxu0
        %v3095 = vadd.f32 0.0, %v3094
        %v3096 = vpop.f32.mrf.mxu0
        %v3097 = vadd.f32 0.0, %v3096
        %3098 = vmatmul.bf16.gmra.mxu0 %v1737
        %v3099 = vpop.f32.mrf.mxu0
        %v3100 = vadd.f32 0.0, %v3099
        %v3101 = vpop.f32.mrf.mxu0
        %v3102 = vadd.f32 0.0, %v3101
        %3103 = vmatmul.bf16.gmra.mxu0 %v1745
        %v3104 = vpop.f32.mrf.mxu0
        %v3105 = vpop.f32.mrf.mxu0
        %v3106 = vadd.f32 0.0, %v3105
        %3107 = vmatmul.bf16.gmra.mxu0 %v1753
        %v3108 = vpop.f32.mrf.mxu0
        %v3109 = vadd.f32 0.0, %v3108
        %v3110 = vpop.f32.mrf.mxu0
        %v3111 = vadd.f32 0.0, %v3110
        %3112 = vmatmul.bf16.gmra.mxu0 %v1761
        %v3113 = vpop.f32.mrf.mxu0
        %v3114 = vadd.f32 0.0, %v3113
        %v3115 = vpop.f32.mrf.mxu0
        %3116 = vmatmul.bf16.gmra.mxu0 %v1769
        %v3117 = vpop.f32.mrf.mxu0
        %v3118 = vadd.f32 0.0, %v3117
        %v3119 = vpop.f32.mrf.mxu0
        %v3120 = vadd.f32 0.0, %v3119
        %3121 = vmatmul.bf16.gmra.mxu0 %v1777
        %v3122 = vpop.f32.mrf.mxu0
        %v3123 = vadd.f32 0.0, %v3122
        %v3124 = vpop.f32.mrf.mxu0
        %v3125 = vadd.f32 0.0, %v3124
        %3126 = vmatmul.bf16.gmra.mxu0 %v1785
        %v3127 = vpop.f32.mrf.mxu0
        %v3128 = vpop.f32.mrf.mxu0
        %v3129 = vadd.f32 0.0, %v3128
        %3130 = vmatmul.bf16.gmra.mxu0 %v1793
        %v3131 = vpop.f32.mrf.mxu0
        %v3132 = vadd.f32 0.0, %v3131
        %v3133 = vpop.f32.mrf.mxu0
        %v3134 = vadd.f32 0.0, %v3133
        %3135 = vmatmul.bf16.gmra.mxu0 %v1801
        %v3136 = vpop.f32.mrf.mxu0
        %v3137 = vadd.f32 0.0, %v3136
        %v3138 = vpop.f32.mrf.mxu0
        %3139 = vmatmul.bf16.gmra.mxu0 %v1809
        %v3140 = vpop.f32.mrf.mxu0
        %v3141 = vadd.f32 0.0, %v3140
        %v3142 = vpop.f32.mrf.mxu0
        %v3143 = vadd.f32 0.0, %v3142
        %3144 = vmatmul.bf16.gmra.mxu0 %v1817
        %v3145 = vpop.f32.mrf.mxu0
        %v3146 = vadd.f32 0.0, %v3145
        %v3147 = vpop.f32.mrf.mxu0
        %v3148 = vadd.f32 0.0, %v3147
        %3149 = vmatmul.bf16.gmra.mxu0 %v1825
        %v3150 = vpop.f32.mrf.mxu0
        %v3151 = vpop.f32.mrf.mxu0
        %v3152 = vadd.f32 0.0, %v3151
        %3153 = vmatmul.bf16.gmra.mxu0 %v1833
        %v3154 = vpop.f32.mrf.mxu0
        %v3155 = vadd.f32 0.0, %v3154
        %v3156 = vpop.f32.mrf.mxu0
        %v3157 = vadd.f32 0.0, %v3156
        %3158 = vmatmul.bf16.gmra.mxu0 %v2898
        %v3159 = vpop.f32.mrf.mxu0
        %v3160 = vadd.f32 0.0, %v3159
        %v3161 = vpop.f32.mrf.mxu0
        %3162 = vmatmul.bf16.gmra.mxu0 %v2906
        %v3163 = vpop.f32.mrf.mxu0
        %v3164 = vadd.f32 0.0, %v3163
        %v3165 = vpop.f32.mrf.mxu0
        %v3166 = vadd.f32 0.0, %v3165
        %3167 = vmatmul.bf16.gmra.mxu0 %v2914
        %v3168 = vpop.f32.mrf.mxu0
        %v3169 = vadd.f32 0.0, %v3168
        %v3170 = vpop.f32.mrf.mxu0
        %v3171 = vadd.f32 0.0, %v3170
        %3172 = vmatmul.bf16.gmra.mxu0 %v2922
        %v3173 = vpop.f32.mrf.mxu0
        %v3174 = vpop.f32.mrf.mxu0
        %v3175 = vadd.f32 0.0, %v3174
        %3176 = vmatmul.bf16.gmra.mxu0 %v2930
        %v3177 = vpop.f32.mrf.mxu0
        %v3178 = vadd.f32 0.0, %v3177
        %v3179 = vpop.f32.mrf.mxu0
        %v3180 = vadd.f32 0.0, %v3179
        %3181 = vmatmul.bf16.gmra.mxu0 %v2938
        %v3182 = vpop.f32.mrf.mxu0
        %v3183 = vadd.f32 0.0, %v3182
        %v3184 = vpop.f32.mrf.mxu0
        %3185 = vdwg.mxu0
        %v3186 = vadd.f32 %v2810, %v3003
        %v3187 = vadd.f32 %v2811, %v3005
        %v3188 = vadd.f32 %v2812, %v3008
        %v3189 = vadd.f32 %v2813, %v3010
        %v3190 = vadd.f32 %v2814, %v3014
        %v3191 = vadd.f32 %v2815, %v3017
        %v3192 = vadd.f32 %v2816, %v3019
        %v3193 = vadd.f32 %v2817, %v3022
        %v3194 = vadd.f32 %v2818, %v3026
        %v3195 = vadd.f32 %v2819, %v3028
        %v3196 = vadd.f32 %v2820, %v3031
        %v3197 = vadd.f32 %v2821, %v3033
        %v3198 = vadd.f32 %v2822, %v3037
        %v3199 = vadd.f32 %v2823, %v3040
        %v3200 = vadd.f32 %v2824, %v3042
        %v3201 = vadd.f32 %v2825, %v3045
        %v3202 = vadd.f32 %v2826, %v3049
        %v3203 = vadd.f32 %v2827, %v3051
        %v3204 = vadd.f32 %v2828, %v3054
        %v3205 = vadd.f32 %v2829, %v3056
        %v3206 = vadd.f32 %v2830, %v3060
        %v3207 = vadd.f32 %v2831, %v3063
        %v3208 = vadd.f32 %v2832, %v3065
        %v3209 = vadd.f32 %v2833, %v3068
        %v3210 = vadd.f32 %v2834, %v3072
        %v3211 = vadd.f32 %v2835, %v3074
        %v3212 = vadd.f32 %v2836, %v3077
        %v3213 = vadd.f32 %v2837, %v3079
        %v3214 = vadd.f32 %v2838, %v3083
        %v3215 = vadd.f32 %v2839, %v3086
        %v3216 = vadd.f32 %v2840, %v3088
        %v3217 = vadd.f32 %v2841, %v3091
        %v3218 = vadd.f32 %v2842, %v3095
        %v3219 = vadd.f32 %v2843, %v3097
        %v3220 = vadd.f32 %v2844, %v3100
        %v3221 = vadd.f32 %v2845, %v3102
        %v3222 = vadd.f32 %v2846, %v3106
        %v3223 = vadd.f32 %v2847, %v3109
        %v3224 = vadd.f32 %v2848, %v3111
        %v3225 = vadd.f32 %v2849, %v3114
        %v3226 = vadd.f32 %v2850, %v3118
        %v3227 = vadd.f32 %v2851, %v3120
        %v3228 = vadd.f32 %v2852, %v3123
        %v3229 = vadd.f32 %v2853, %v3125
        %v3230 = vadd.f32 %v2854, %v3129
        %v3231 = vadd.f32 %v2855, %v3132
        %v3232 = vadd.f32 %v2856, %v3134
        %v3233 = vadd.f32 %v2857, %v3137
        %v3234 = vadd.f32 %v2858, %v3141
        %v3235 = vadd.f32 %v2859, %v3143
        %v3236 = vadd.f32 %v2860, %v3146
        %v3237 = vadd.f32 %v2861, %v3148
        %v3238 = vadd.f32 %v2862, %v3152
        %v3239 = vadd.f32 %v2863, %v3155
        %v3240 = vadd.f32 %v2864, %v3157
        %v3241 = vadd.f32 %v2865, %v3160
        %v3242 = vadd.f32 %v2866, %v3164
        %v3243 = vadd.f32 %v2867, %v3166
        %v3244 = vadd.f32 %v2868, %v3169
        %v3245 = vadd.f32 %v2869, %v3171
        %v3246 = vadd.f32 %v2870, %v3175
        %v3247 = vadd.f32 %v2871, %v3178
        %v3248 = vadd.f32 %v2872, %v3180
        %v3249 = vadd.f32 %v2873, %v3183
        %s3250 = scalar_lea.vmem %s1, 128
        %v3251 = vld [vmem:[%s3250] sm:$0xf]
        %v3252 = vld [vmem:[%s3250 + $0x4] sm:$0xf]
        %v3253 = vld [vmem:[%s3250 + $0x8] sm:$0xf]
        %v3254 = vld [vmem:[%s3250 + $0xc] sm:$0xf]
        %v3255 = vld [vmem:[%s3250 + $0x10] sm:$0xf]
        %v3256 = vld [vmem:[%s3250 + $0x14] sm:$0xf]
        %v3257 = vld [vmem:[%s3250 + $0x18] sm:$0xf]
        %v3258 = vld [vmem:[%s3250 + $0x1c] sm:$0xf]
        %v3259 = vld [vmem:[%s3250 + $0x20] sm:$0xf]
        %v3260 = vld [vmem:[%s3250 + $0x24] sm:$0xf]
        %v3261 = vld [vmem:[%s3250 + $0x28] sm:$0xf]
        %v3262 = vld [vmem:[%s3250 + $0x2c] sm:$0xf]
        %v3263 = vld [vmem:[%s3250 + $0x30] sm:$0xf]
        %v3264 = vld [vmem:[%s3250 + $0x34] sm:$0xf]
        %v3265 = vld [vmem:[%s3250 + $0x38] sm:$0xf]
        %v3266 = vld [vmem:[%s3250 + $0x3c] sm:$0xf]
        %vm3267 = vcmask 1046528
        %v3268 = vrot.slane %v836, 1
        %v3269 = vrot.slane %v837, 1
        %v3270 = vsel %vm3267, %v3268, %v3269
        %v3271 = vrot.slane %v838, 1
        %v3272 = vsel %vm3267, %v3269, %v3271
        %v3273 = vrot.slane %v839, 1
        %v3274 = vsel %vm3267, %v3271, %v3273
        %v3275 = vrot.slane %v840, 1
        %v3276 = vsel %vm3267, %v3273, %v3275
        %v3277 = vrot.slane %v841, 1
        %v3278 = vsel %vm3267, %v3275, %v3277
        %v3279 = vrot.slane %v842, 1
        %v3280 = vsel %vm3267, %v3277, %v3279
        %v3281 = vrot.slane %v843, 1
        %v3282 = vsel %vm3267, %v3279, %v3281
        %v3283 = vrot.slane %v844, 1
        %v3284 = vsel %vm3267, %v3281, %v3283
        %v3285 = vrot.slane %v845, 1
        %v3286 = vsel %vm3267, %v3283, %v3285
        %v3287 = vrot.slane %v846, 1
        %v3288 = vsel %vm3267, %v3285, %v3287
        %v3289 = vrot.slane %v847, 1
        %v3290 = vsel %vm3267, %v3287, %v3289
        %v3291 = vrot.slane %v848, 1
        %v3292 = vsel %vm3267, %v3289, %v3291
        %v3293 = vrot.slane %v849, 1
        %v3294 = vsel %vm3267, %v3291, %v3293
        %v3295 = vrot.slane %v850, 1
        %v3296 = vsel %vm3267, %v3293, %v3295
        %v3297 = vrot.slane %v851, 1
        %v3298 = vsel %vm3267, %v3295, %v3297
        %v3299 = vrot.slane %v852, 1
        %v3300 = vsel %vm3267, %v3297, %v3299
        %v3301 = vrot.slane %v853, 1
        %v3302 = vsel %vm3267, %v3299, %v3301
        %v3303 = vrot.slane %v854, 1
        %v3304 = vsel %vm3267, %v3301, %v3303
        %v3305 = vrot.slane %v855, 1
        %v3306 = vsel %vm3267, %v3303, %v3305
        %v3307 = vrot.slane %v856, 1
        %v3308 = vsel %vm3267, %v3305, %v3307
        %v3309 = vrot.slane %v857, 1
        %v3310 = vsel %vm3267, %v3307, %v3309
        %v3311 = vrot.slane %v858, 1
        %v3312 = vsel %vm3267, %v3309, %v3311
        %v3313 = vrot.slane %v859, 1
        %v3314 = vsel %vm3267, %v3311, %v3313
        %v3315 = vrot.slane %v860, 1
        %v3316 = vsel %vm3267, %v3313, %v3315
        %v3317 = vrot.slane %v861, 1
        %v3318 = vsel %vm3267, %v3315, %v3317
        %v3319 = vrot.slane %v862, 1
        %v3320 = vsel %vm3267, %v3317, %v3319
        %v3321 = vrot.slane %v863, 1
        %v3322 = vsel %vm3267, %v3319, %v3321
        %v3323 = vrot.slane %v864, 1
        %v3324 = vsel %vm3267, %v3321, %v3323
        %v3325 = vrot.slane %v865, 1
        %v3326 = vsel %vm3267, %v3323, %v3325
        %v3327 = vrot.slane %v866, 1
        %v3328 = vsel %vm3267, %v3325, %v3327
        %v3329 = vrot.slane %v867, 1
        %v3330 = vsel %vm3267, %v3327, %v3329
        %v3331 = vrot.slane %v868, 1
        %v3332 = vsel %vm3267, %v3329, %v3331
        %v3333 = vrot.slane %v869, 1
        %v3334 = vsel %vm3267, %v3331, %v3333
        %v3335 = vrot.slane %v870, 1
        %v3336 = vsel %vm3267, %v3333, %v3335
        %v3337 = vrot.slane %v871, 1
        %v3338 = vsel %vm3267, %v3335, %v3337
        %v3339 = vrot.slane %v872, 1
        %v3340 = vsel %vm3267, %v3337, %v3339
        %v3341 = vrot.slane %v873, 1
        %v3342 = vsel %vm3267, %v3339, %v3341
        %v3343 = vrot.slane %v874, 1
        %v3344 = vsel %vm3267, %v3341, %v3343
        %v3345 = vrot.slane %v875, 1
        %v3346 = vsel %vm3267, %v3343, %v3345
        %v3347 = vrot.slane %v1516, 1
        %v3348 = vsel %vm3267, %v3345, %v3347
        %v3405 = vunpack.c.l.b16 %v3251
        %v3406 = vunpack.c.l.b16 %v3252
        %v3407 = vunpack.c.l.b16 %v3253
        %v3408 = vunpack.c.l.b16 %v3254
        %v3409 = vunpack.c.l.b16 %v3255
        %v3410 = vunpack.c.l.b16 %v3256
        %v3411 = vunpack.c.l.b16 %v3257
        %v3412 = vunpack.c.l.b16 %v3258
        %v3413 = vunpack.c.l.b16 %v3259
        %v3414 = vunpack.c.l.b16 %v3260
        %v3415 = vunpack.c.l.b16 %v3261
        %v3416 = vunpack.c.l.b16 %v3262
        %v3417 = vunpack.c.l.b16 %v3263
        %v3418 = vunpack.c.l.b16 %v3264
        %v3419 = vunpack.c.l.b16 %v3265
        %v3420 = vunpack.c.l.b16 %v3266
        %v3421 = vpack.c.b16 %v3406, %v3405
        %v3422 = vpack.c.b16 %v3408, %v3407
        %v3423 = vpack.c.b16 %v3410, %v3409
        %v3424 = vpack.c.b16 %v3412, %v3411
        %v3425 = vpack.c.b16 %v3414, %v3413
        %v3426 = vpack.c.b16 %v3416, %v3415
        %v3427 = vpack.c.b16 %v3418, %v3417
        %v3428 = vpack.c.b16 %v3420, %v3419
        %3437 = vmatpush.bf16.msra.mxu0 %v3428
        %3438 = vmatpush.bf16.msra.mxu0 %v3427
        %3439 = vmatpush.bf16.msra.mxu0 %v3426
        %3440 = vmatpush.bf16.msra.mxu0 %v3425
        %3441 = vmatpush.bf16.msra.mxu0 %v3424
        %3442 = vmatpush.bf16.msra.mxu0 %v3423
        %3443 = vmatpush.bf16.msra.mxu0 %v3422
        %3444 = vmatpush.bf16.msra.mxu0 %v3421
        %3445 = vmatmul.bf16.gmra.mxu0 %v3270
        %v3446 = vpop.f32.mrf.mxu0
        %v3447 = vadd.f32 0.0, %v3446
        %v3448 = vpop.f32.mrf.mxu0
        %v3449 = vadd.f32 0.0, %v3448
        %3450 = vmatmul.bf16.gmra.mxu0 %v3272
        %v3451 = vpop.f32.mrf.mxu0
        %v3452 = vadd.f32 0.0, %v3451
        %v3453 = vpop.f32.mrf.mxu0
        %v3454 = vadd.f32 0.0, %v3453
        %3455 = vmatmul.bf16.gmra.mxu0 %v3274
        %v3456 = vpop.f32.mrf.mxu0
        %v3457 = vpop.f32.mrf.mxu0
        %v3458 = vadd.f32 0.0, %v3457
        %3459 = vmatmul.bf16.gmra.mxu0 %v3276
        %v3460 = vpop.f32.mrf.mxu0
        %v3461 = vadd.f32 0.0, %v3460
        %v3462 = vpop.f32.mrf.mxu0
        %v3463 = vadd.f32 0.0, %v3462
        %3464 = vmatmul.bf16.gmra.mxu0 %v3278
        %v3465 = vpop.f32.mrf.mxu0
        %v3466 = vadd.f32 0.0, %v3465
        %v3467 = vpop.f32.mrf.mxu0
        %3468 = vmatmul.bf16.gmra.mxu0 %v3280
        %v3469 = vpop.f32.mrf.mxu0
        %v3470 = vadd.f32 0.0, %v3469
        %v3471 = vpop.f32.mrf.mxu0
        %v3472 = vadd.f32 0.0, %v3471
        %3473 = vmatmul.bf16.gmra.mxu0 %v3282
        %v3474 = vpop.f32.mrf.mxu0
        %v3475 = vadd.f32 0.0, %v3474
        %v3476 = vpop.f32.mrf.mxu0
        %v3477 = vadd.f32 0.0, %v3476
        %3478 = vmatmul.bf16.gmra.mxu0 %v3284
        %v3479 = vpop.f32.mrf.mxu0
        %v3480 = vpop.f32.mrf.mxu0
        %v3481 = vadd.f32 0.0, %v3480
        %3482 = vmatmul.bf16.gmra.mxu0 %v3286
        %v3483 = vpop.f32.mrf.mxu0
        %v3484 = vadd.f32 0.0, %v3483
        %v3485 = vpop.f32.mrf.mxu0
        %v3486 = vadd.f32 0.0, %v3485
        %3487 = vmatmul.bf16.gmra.mxu0 %v3288
        %v3488 = vpop.f32.mrf.mxu0
        %v3489 = vadd.f32 0.0, %v3488
        %v3490 = vpop.f32.mrf.mxu0
        %3491 = vmatmul.bf16.gmra.mxu0 %v3290
        %v3492 = vpop.f32.mrf.mxu0
        %v3493 = vadd.f32 0.0, %v3492
        %v3494 = vpop.f32.mrf.mxu0
        %v3495 = vadd.f32 0.0, %v3494
        %3496 = vmatmul.bf16.gmra.mxu0 %v3292
        %v3497 = vpop.f32.mrf.mxu0
        %v3498 = vadd.f32 0.0, %v3497
        %v3499 = vpop.f32.mrf.mxu0
        %v3500 = vadd.f32 0.0, %v3499
        %3501 = vmatmul.bf16.gmra.mxu0 %v3294
        %v3502 = vpop.f32.mrf.mxu0
        %v3503 = vpop.f32.mrf.mxu0
        %v3504 = vadd.f32 0.0, %v3503
        %3505 = vmatmul.bf16.gmra.mxu0 %v3296
        %v3506 = vpop.f32.mrf.mxu0
        %v3507 = vadd.f32 0.0, %v3506
        %v3508 = vpop.f32.mrf.mxu0
        %v3509 = vadd.f32 0.0, %v3508
        %3510 = vmatmul.bf16.gmra.mxu0 %v3298
        %v3511 = vpop.f32.mrf.mxu0
        %v3512 = vadd.f32 0.0, %v3511
        %v3513 = vpop.f32.mrf.mxu0
        %3514 = vmatmul.bf16.gmra.mxu0 %v3300
        %v3515 = vpop.f32.mrf.mxu0
        %v3516 = vadd.f32 0.0, %v3515
        %v3517 = vpop.f32.mrf.mxu0
        %v3518 = vadd.f32 0.0, %v3517
        %3519 = vmatmul.bf16.gmra.mxu0 %v3302
        %v3520 = vpop.f32.mrf.mxu0
        %v3521 = vadd.f32 0.0, %v3520
        %v3522 = vpop.f32.mrf.mxu0
        %v3523 = vadd.f32 0.0, %v3522
        %3524 = vmatmul.bf16.gmra.mxu0 %v3304
        %v3525 = vpop.f32.mrf.mxu0
        %v3526 = vpop.f32.mrf.mxu0
        %v3527 = vadd.f32 0.0, %v3526
        %3528 = vmatmul.bf16.gmra.mxu0 %v3306
        %v3529 = vpop.f32.mrf.mxu0
        %v3530 = vadd.f32 0.0, %v3529
        %v3531 = vpop.f32.mrf.mxu0
        %v3532 = vadd.f32 0.0, %v3531
        %3533 = vmatmul.bf16.gmra.mxu0 %v3308
        %v3534 = vpop.f32.mrf.mxu0
        %v3535 = vadd.f32 0.0, %v3534
        %v3536 = vpop.f32.mrf.mxu0
        %3537 = vmatmul.bf16.gmra.mxu0 %v3310
        %v3538 = vpop.f32.mrf.mxu0
        %v3539 = vadd.f32 0.0, %v3538
        %v3540 = vpop.f32.mrf.mxu0
        %v3541 = vadd.f32 0.0, %v3540
        %3542 = vmatmul.bf16.gmra.mxu0 %v3312
        %v3543 = vpop.f32.mrf.mxu0
        %v3544 = vadd.f32 0.0, %v3543
        %v3545 = vpop.f32.mrf.mxu0
        %v3546 = vadd.f32 0.0, %v3545
        %3547 = vmatmul.bf16.gmra.mxu0 %v3314
        %v3548 = vpop.f32.mrf.mxu0
        %v3549 = vpop.f32.mrf.mxu0
        %v3550 = vadd.f32 0.0, %v3549
        %3551 = vmatmul.bf16.gmra.mxu0 %v3316
        %v3552 = vpop.f32.mrf.mxu0
        %v3553 = vadd.f32 0.0, %v3552
        %v3554 = vpop.f32.mrf.mxu0
        %v3555 = vadd.f32 0.0, %v3554
        %3556 = vmatmul.bf16.gmra.mxu0 %v3318
        %v3557 = vpop.f32.mrf.mxu0
        %v3558 = vadd.f32 0.0, %v3557
        %v3559 = vpop.f32.mrf.mxu0
        %3560 = vmatmul.bf16.gmra.mxu0 %v3320
        %v3561 = vpop.f32.mrf.mxu0
        %v3562 = vadd.f32 0.0, %v3561
        %v3563 = vpop.f32.mrf.mxu0
        %v3564 = vadd.f32 0.0, %v3563
        %3565 = vmatmul.bf16.gmra.mxu0 %v3322
        %v3566 = vpop.f32.mrf.mxu0
        %v3567 = vadd.f32 0.0, %v3566
        %v3568 = vpop.f32.mrf.mxu0
        %v3569 = vadd.f32 0.0, %v3568
        %3570 = vmatmul.bf16.gmra.mxu0 %v3324
        %v3571 = vpop.f32.mrf.mxu0
        %v3572 = vpop.f32.mrf.mxu0
        %v3573 = vadd.f32 0.0, %v3572
        %3574 = vmatmul.bf16.gmra.mxu0 %v3326
        %v3575 = vpop.f32.mrf.mxu0
        %v3576 = vadd.f32 0.0, %v3575
        %v3577 = vpop.f32.mrf.mxu0
        %v3578 = vadd.f32 0.0, %v3577
        %3579 = vmatmul.bf16.gmra.mxu0 %v3328
        %v3580 = vpop.f32.mrf.mxu0
        %v3581 = vadd.f32 0.0, %v3580
        %v3582 = vpop.f32.mrf.mxu0
        %3583 = vmatmul.bf16.gmra.mxu0 %v3330
        %v3584 = vpop.f32.mrf.mxu0
        %v3585 = vadd.f32 0.0, %v3584
        %v3586 = vpop.f32.mrf.mxu0
        %v3587 = vadd.f32 0.0, %v3586
        %3588 = vmatmul.bf16.gmra.mxu0 %v3332
        %v3589 = vpop.f32.mrf.mxu0
        %v3590 = vadd.f32 0.0, %v3589
        %v3591 = vpop.f32.mrf.mxu0
        %v3592 = vadd.f32 0.0, %v3591
        %3593 = vmatmul.bf16.gmra.mxu0 %v3334
        %v3594 = vpop.f32.mrf.mxu0
        %v3595 = vpop.f32.mrf.mxu0
        %v3596 = vadd.f32 0.0, %v3595
        %3597 = vmatmul.bf16.gmra.mxu0 %v3336
        %v3598 = vpop.f32.mrf.mxu0
        %v3599 = vadd.f32 0.0, %v3598
        %v3600 = vpop.f32.mrf.mxu0
        %v3601 = vadd.f32 0.0, %v3600
        %3602 = vmatmul.bf16.gmra.mxu0 %v3338
        %v3603 = vpop.f32.mrf.mxu0
        %v3604 = vadd.f32 0.0, %v3603
        %v3605 = vpop.f32.mrf.mxu0
        %3606 = vmatmul.bf16.gmra.mxu0 %v3340
        %v3607 = vpop.f32.mrf.mxu0
        %v3608 = vadd.f32 0.0, %v3607
        %v3609 = vpop.f32.mrf.mxu0
        %v3610 = vadd.f32 0.0, %v3609
        %3611 = vmatmul.bf16.gmra.mxu0 %v3342
        %v3612 = vpop.f32.mrf.mxu0
        %v3613 = vadd.f32 0.0, %v3612
        %v3614 = vpop.f32.mrf.mxu0
        %v3615 = vadd.f32 0.0, %v3614
        %3616 = vmatmul.bf16.gmra.mxu0 %v3344
        %v3617 = vpop.f32.mrf.mxu0
        %v3618 = vpop.f32.mrf.mxu0
        %v3619 = vadd.f32 0.0, %v3618
        %3620 = vmatmul.bf16.gmra.mxu0 %v3346
        %v3621 = vpop.f32.mrf.mxu0
        %v3622 = vadd.f32 0.0, %v3621
        %v3623 = vpop.f32.mrf.mxu0
        %v3624 = vadd.f32 0.0, %v3623
        %3625 = vmatmul.bf16.gmra.mxu0 %v3348
        %v3626 = vpop.f32.mrf.mxu0
        %v3627 = vadd.f32 0.0, %v3626
        %v3628 = vpop.f32.mrf.mxu0
        %3629 = vdwg.mxu0
        %v3630 = vadd.f32 %v3186, %v3447
        %v3631 = vadd.f32 %v3187, %v3449
        %v3632 = vadd.f32 %v3188, %v3452
        %v3633 = vadd.f32 %v3189, %v3454
        %v3634 = vadd.f32 %v3190, %v3458
        %v3635 = vadd.f32 %v3191, %v3461
        %v3636 = vadd.f32 %v3192, %v3463
        %v3637 = vadd.f32 %v3193, %v3466
        %v3638 = vadd.f32 %v3194, %v3470
        %v3639 = vadd.f32 %v3195, %v3472
        %v3640 = vadd.f32 %v3196, %v3475
        %v3641 = vadd.f32 %v3197, %v3477
        %v3642 = vadd.f32 %v3198, %v3481
        %v3643 = vadd.f32 %v3199, %v3484
        %v3644 = vadd.f32 %v3200, %v3486
        %v3645 = vadd.f32 %v3201, %v3489
        %v3646 = vadd.f32 %v3202, %v3493
        %v3647 = vadd.f32 %v3203, %v3495
        %v3648 = vadd.f32 %v3204, %v3498
        %v3649 = vadd.f32 %v3205, %v3500
        %v3650 = vadd.f32 %v3206, %v3504
        %v3651 = vadd.f32 %v3207, %v3507
        %v3652 = vadd.f32 %v3208, %v3509
        %v3653 = vadd.f32 %v3209, %v3512
        %v3654 = vadd.f32 %v3210, %v3516
        %v3655 = vadd.f32 %v3211, %v3518
        %v3656 = vadd.f32 %v3212, %v3521
        %v3657 = vadd.f32 %v3213, %v3523
        %v3658 = vadd.f32 %v3214, %v3527
        %v3659 = vadd.f32 %v3215, %v3530
        %v3660 = vadd.f32 %v3216, %v3532
        %v3661 = vadd.f32 %v3217, %v3535
        %v3662 = vadd.f32 %v3218, %v3539
        %v3663 = vadd.f32 %v3219, %v3541
        %v3664 = vadd.f32 %v3220, %v3544
        %v3665 = vadd.f32 %v3221, %v3546
        %v3666 = vadd.f32 %v3222, %v3550
        %v3667 = vadd.f32 %v3223, %v3553
        %v3668 = vadd.f32 %v3224, %v3555
        %v3669 = vadd.f32 %v3225, %v3558
        %v3670 = vadd.f32 %v3226, %v3562
        %v3671 = vadd.f32 %v3227, %v3564
        %v3672 = vadd.f32 %v3228, %v3567
        %v3673 = vadd.f32 %v3229, %v3569
        %v3674 = vadd.f32 %v3230, %v3573
        %v3675 = vadd.f32 %v3231, %v3576
        %v3676 = vadd.f32 %v3232, %v3578
        %v3677 = vadd.f32 %v3233, %v3581
        %v3678 = vadd.f32 %v3234, %v3585
        %v3679 = vadd.f32 %v3235, %v3587
        %v3680 = vadd.f32 %v3236, %v3590
        %v3681 = vadd.f32 %v3237, %v3592
        %v3682 = vadd.f32 %v3238, %v3596
        %v3683 = vadd.f32 %v3239, %v3599
        %v3684 = vadd.f32 %v3240, %v3601
        %v3685 = vadd.f32 %v3241, %v3604
        %v3686 = vadd.f32 %v3242, %v3608
        %v3687 = vadd.f32 %v3243, %v3610
        %v3688 = vadd.f32 %v3244, %v3613
        %v3689 = vadd.f32 %v3245, %v3615
        %v3690 = vadd.f32 %v3246, %v3619
        %v3691 = vadd.f32 %v3247, %v3622
        %v3692 = vadd.f32 %v3248, %v3624
        %v3693 = vadd.f32 %v3249, %v3627
        %s3694 = scalar_lea.vmem %s1, 320
        %v3695 = vld [vmem:[%s3694] sm:$0xf]
        %v3696 = vld [vmem:[%s3694 + $0x4] sm:$0xf]
        %v3697 = vld [vmem:[%s3694 + $0x8] sm:$0xf]
        %v3698 = vld [vmem:[%s3694 + $0xc] sm:$0xf]
        %v3699 = vld [vmem:[%s3694 + $0x10] sm:$0xf]
        %v3700 = vld [vmem:[%s3694 + $0x14] sm:$0xf]
        %v3701 = vld [vmem:[%s3694 + $0x18] sm:$0xf]
        %v3702 = vld [vmem:[%s3694 + $0x1c] sm:$0xf]
        %v3703 = vld [vmem:[%s3694 + $0x20] sm:$0xf]
        %v3704 = vld [vmem:[%s3694 + $0x24] sm:$0xf]
        %v3705 = vld [vmem:[%s3694 + $0x28] sm:$0xf]
        %v3706 = vld [vmem:[%s3694 + $0x2c] sm:$0xf]
        %v3707 = vld [vmem:[%s3694 + $0x30] sm:$0xf]
        %v3708 = vld [vmem:[%s3694 + $0x34] sm:$0xf]
        %v3709 = vld [vmem:[%s3694 + $0x38] sm:$0xf]
        %v3710 = vld [vmem:[%s3694 + $0x3c] sm:$0xf]
        %v3711 = vrot.slane %v505, 1
        %v3712 = vrot.slane %v506, 1
        %v3713 = vsel %vm3267, %v3711, %v3712
        %v3714 = vrot.slane %v507, 1
        %v3715 = vsel %vm3267, %v3712, %v3714
        %v3716 = vrot.slane %v508, 1
        %v3717 = vsel %vm3267, %v3714, %v3716
        %v3718 = vrot.slane %v509, 1
        %v3719 = vsel %vm3267, %v3716, %v3718
        %v3720 = vrot.slane %v510, 1
        %v3721 = vsel %vm3267, %v3718, %v3720
        %v3722 = vrot.slane %v511, 1
        %v3723 = vsel %vm3267, %v3720, %v3722
        %v3724 = vrot.slane %v512, 1
        %v3725 = vsel %vm3267, %v3722, %v3724
        %v3726 = vrot.slane %v513, 1
        %v3727 = vsel %vm3267, %v3724, %v3726
        %v3728 = vrot.slane %v514, 1
        %v3729 = vsel %vm3267, %v3726, %v3728
        %v3730 = vrot.slane %v515, 1
        %v3731 = vsel %vm3267, %v3728, %v3730
        %v3732 = vrot.slane %v516, 1
        %v3733 = vsel %vm3267, %v3730, %v3732
        %v3734 = vrot.slane %v517, 1
        %v3735 = vsel %vm3267, %v3732, %v3734
        %v3736 = vrot.slane %v518, 1
        %v3737 = vsel %vm3267, %v3734, %v3736
        %v3738 = vrot.slane %v519, 1
        %v3739 = vsel %vm3267, %v3736, %v3738
        %v3740 = vrot.slane %v520, 1
        %v3741 = vsel %vm3267, %v3738, %v3740
        %v3742 = vrot.slane %v521, 1
        %v3743 = vsel %vm3267, %v3740, %v3742
        %v3744 = vrot.slane %v522, 1
        %v3745 = vsel %vm3267, %v3742, %v3744
        %v3746 = vrot.slane %v523, 1
        %v3747 = vsel %vm3267, %v3744, %v3746
        %v3748 = vrot.slane %v524, 1
        %v3749 = vsel %vm3267, %v3746, %v3748
        %v3750 = vrot.slane %v525, 1
        %v3751 = vsel %vm3267, %v3748, %v3750
        %v3752 = vrot.slane %v526, 1
        %v3753 = vsel %vm3267, %v3750, %v3752
        %v3754 = vrot.slane %v527, 1
        %v3755 = vsel %vm3267, %v3752, %v3754
        %v3756 = vrot.slane %v528, 1
        %v3757 = vsel %vm3267, %v3754, %v3756
        %v3758 = vrot.slane %v529, 1
        %v3759 = vsel %vm3267, %v3756, %v3758
        %v3760 = vrot.slane %v530, 1
        %v3761 = vsel %vm3267, %v3758, %v3760
        %v3762 = vrot.slane %v531, 1
        %v3763 = vsel %vm3267, %v3760, %v3762
        %v3764 = vrot.slane %v532, 1
        %v3765 = vsel %vm3267, %v3762, %v3764
        %v3766 = vrot.slane %v533, 1
        %v3767 = vsel %vm3267, %v3764, %v3766
        %v3768 = vrot.slane %v534, 1
        %v3769 = vsel %vm3267, %v3766, %v3768
        %v3770 = vrot.slane %v535, 1
        %v3771 = vsel %vm3267, %v3768, %v3770
        %v3772 = vrot.slane %v536, 1
        %v3773 = vsel %vm3267, %v3770, %v3772
        %v3774 = vrot.slane %v537, 1
        %v3775 = vsel %vm3267, %v3772, %v3774
        %v3776 = vrot.slane %v538, 1
        %v3777 = vsel %vm3267, %v3774, %v3776
        %v3778 = vrot.slane %v539, 1
        %v3779 = vsel %vm3267, %v3776, %v3778
        %v3780 = vrot.slane %v540, 1
        %v3781 = vsel %vm3267, %v3778, %v3780
        %v3782 = vrot.slane %v541, 1
        %v3783 = vsel %vm3267, %v3780, %v3782
        %v3784 = vrot.slane %v542, 1
        %v3785 = vsel %vm3267, %v3782, %v3784
        %v3786 = vrot.slane %v543, 1
        %v3787 = vsel %vm3267, %v3784, %v3786
        %v3788 = vrot.slane %v544, 1
        %v3789 = vsel %vm3267, %v3786, %v3788
        %v3790 = vrot.slane %v2204, 1
        %v3791 = vsel %vm3267, %v3788, %v3790
        %v3848 = vunpack.c.l.b16 %v3695
        %v3849 = vunpack.c.l.b16 %v3696
        %v3850 = vunpack.c.l.b16 %v3697
        %v3851 = vunpack.c.l.b16 %v3698
        %v3852 = vunpack.c.l.b16 %v3699
        %v3853 = vunpack.c.l.b16 %v3700
        %v3854 = vunpack.c.l.b16 %v3701
        %v3855 = vunpack.c.l.b16 %v3702
        %v3856 = vunpack.c.l.b16 %v3703
        %v3857 = vunpack.c.l.b16 %v3704
        %v3858 = vunpack.c.l.b16 %v3705
        %v3859 = vunpack.c.l.b16 %v3706
        %v3860 = vunpack.c.l.b16 %v3707
        %v3861 = vunpack.c.l.b16 %v3708
        %v3862 = vunpack.c.l.b16 %v3709
        %v3863 = vunpack.c.l.b16 %v3710
        %v3864 = vpack.c.b16 %v3849, %v3848
        %v3865 = vpack.c.b16 %v3851, %v3850
        %v3866 = vpack.c.b16 %v3853, %v3852
        %v3867 = vpack.c.b16 %v3855, %v3854
        %v3868 = vpack.c.b16 %v3857, %v3856
        %v3869 = vpack.c.b16 %v3859, %v3858
        %v3870 = vpack.c.b16 %v3861, %v3860
        %v3871 = vpack.c.b16 %v3863, %v3862
        %3880 = vmatpush.bf16.msra.mxu0 %v3871
        %3881 = vmatpush.bf16.msra.mxu0 %v3870
        %3882 = vmatpush.bf16.msra.mxu0 %v3869
        %3883 = vmatpush.bf16.msra.mxu0 %v3868
        %3884 = vmatpush.bf16.msra.mxu0 %v3867
        %3885 = vmatpush.bf16.msra.mxu0 %v3866
        %3886 = vmatpush.bf16.msra.mxu0 %v3865
        %3887 = vmatpush.bf16.msra.mxu0 %v3864
        %3888 = vmatmul.bf16.gmra.mxu0 %v3713
        %v3889 = vpop.f32.mrf.mxu0
        %v3890 = vadd.f32 0.0, %v3889
        %v3891 = vpop.f32.mrf.mxu0
        %v3892 = vadd.f32 0.0, %v3891
        %3893 = vmatmul.bf16.gmra.mxu0 %v3715
        %v3894 = vpop.f32.mrf.mxu0
        %v3895 = vadd.f32 0.0, %v3894
        %v3896 = vpop.f32.mrf.mxu0
        %v3897 = vadd.f32 0.0, %v3896
        %3898 = vmatmul.bf16.gmra.mxu0 %v3717
        %v3899 = vpop.f32.mrf.mxu0
        %v3900 = vpop.f32.mrf.mxu0
        %v3901 = vadd.f32 0.0, %v3900
        %3902 = vmatmul.bf16.gmra.mxu0 %v3719
        %v3903 = vpop.f32.mrf.mxu0
        %v3904 = vadd.f32 0.0, %v3903
        %v3905 = vpop.f32.mrf.mxu0
        %v3906 = vadd.f32 0.0, %v3905
        %3907 = vmatmul.bf16.gmra.mxu0 %v3721
        %v3908 = vpop.f32.mrf.mxu0
        %v3909 = vadd.f32 0.0, %v3908
        %v3910 = vpop.f32.mrf.mxu0
        %3911 = vmatmul.bf16.gmra.mxu0 %v3723
        %v3912 = vpop.f32.mrf.mxu0
        %v3913 = vadd.f32 0.0, %v3912
        %v3914 = vpop.f32.mrf.mxu0
        %v3915 = vadd.f32 0.0, %v3914
        %3916 = vmatmul.bf16.gmra.mxu0 %v3725
        %v3917 = vpop.f32.mrf.mxu0
        %v3918 = vadd.f32 0.0, %v3917
        %v3919 = vpop.f32.mrf.mxu0
        %v3920 = vadd.f32 0.0, %v3919
        %3921 = vmatmul.bf16.gmra.mxu0 %v3727
        %v3922 = vpop.f32.mrf.mxu0
        %v3923 = vpop.f32.mrf.mxu0
        %v3924 = vadd.f32 0.0, %v3923
        %3925 = vmatmul.bf16.gmra.mxu0 %v3729
        %v3926 = vpop.f32.mrf.mxu0
        %v3927 = vadd.f32 0.0, %v3926
        %v3928 = vpop.f32.mrf.mxu0
        %v3929 = vadd.f32 0.0, %v3928
        %3930 = vmatmul.bf16.gmra.mxu0 %v3731
        %v3931 = vpop.f32.mrf.mxu0
        %v3932 = vadd.f32 0.0, %v3931
        %v3933 = vpop.f32.mrf.mxu0
        %3934 = vmatmul.bf16.gmra.mxu0 %v3733
        %v3935 = vpop.f32.mrf.mxu0
        %v3936 = vadd.f32 0.0, %v3935
        %v3937 = vpop.f32.mrf.mxu0
        %v3938 = vadd.f32 0.0, %v3937
        %3939 = vmatmul.bf16.gmra.mxu0 %v3735
        %v3940 = vpop.f32.mrf.mxu0
        %v3941 = vadd.f32 0.0, %v3940
        %v3942 = vpop.f32.mrf.mxu0
        %v3943 = vadd.f32 0.0, %v3942
        %3944 = vmatmul.bf16.gmra.mxu0 %v3737
        %v3945 = vpop.f32.mrf.mxu0
        %v3946 = vpop.f32.mrf.mxu0
        %v3947 = vadd.f32 0.0, %v3946
        %3948 = vmatmul.bf16.gmra.mxu0 %v3739
        %v3949 = vpop.f32.mrf.mxu0
        %v3950 = vadd.f32 0.0, %v3949
        %v3951 = vpop.f32.mrf.mxu0
        %v3952 = vadd.f32 0.0, %v3951
        %3953 = vmatmul.bf16.gmra.mxu0 %v3741
        %v3954 = vpop.f32.mrf.mxu0
        %v3955 = vadd.f32 0.0, %v3954
        %v3956 = vpop.f32.mrf.mxu0
        %3957 = vmatmul.bf16.gmra.mxu0 %v3743
        %v3958 = vpop.f32.mrf.mxu0
        %v3959 = vadd.f32 0.0, %v3958
        %v3960 = vpop.f32.mrf.mxu0
        %v3961 = vadd.f32 0.0, %v3960
        %3962 = vmatmul.bf16.gmra.mxu0 %v3745
        %v3963 = vpop.f32.mrf.mxu0
        %v3964 = vadd.f32 0.0, %v3963
        %v3965 = vpop.f32.mrf.mxu0
        %v3966 = vadd.f32 0.0, %v3965
        %3967 = vmatmul.bf16.gmra.mxu0 %v3747
        %v3968 = vpop.f32.mrf.mxu0
        %v3969 = vpop.f32.mrf.mxu0
        %v3970 = vadd.f32 0.0, %v3969
        %3971 = vmatmul.bf16.gmra.mxu0 %v3749
        %v3972 = vpop.f32.mrf.mxu0
        %v3973 = vadd.f32 0.0, %v3972
        %v3974 = vpop.f32.mrf.mxu0
        %v3975 = vadd.f32 0.0, %v3974
        %3976 = vmatmul.bf16.gmra.mxu0 %v3751
        %v3977 = vpop.f32.mrf.mxu0
        %v3978 = vadd.f32 0.0, %v3977
        %v3979 = vpop.f32.mrf.mxu0
        %3980 = vmatmul.bf16.gmra.mxu0 %v3753
        %v3981 = vpop.f32.mrf.mxu0
        %v3982 = vadd.f32 0.0, %v3981
        %v3983 = vpop.f32.mrf.mxu0
        %v3984 = vadd.f32 0.0, %v3983
        %3985 = vmatmul.bf16.gmra.mxu0 %v3755
        %v3986 = vpop.f32.mrf.mxu0
        %v3987 = vadd.f32 0.0, %v3986
        %v3988 = vpop.f32.mrf.mxu0
        %v3989 = vadd.f32 0.0, %v3988
        %3990 = vmatmul.bf16.gmra.mxu0 %v3757
        %v3991 = vpop.f32.mrf.mxu0
        %v3992 = vpop.f32.mrf.mxu0
        %v3993 = vadd.f32 0.0, %v3992
        %3994 = vmatmul.bf16.gmra.mxu0 %v3759
        %v3995 = vpop.f32.mrf.mxu0
        %v3996 = vadd.f32 0.0, %v3995
        %v3997 = vpop.f32.mrf.mxu0
        %v3998 = vadd.f32 0.0, %v3997
        %3999 = vmatmul.bf16.gmra.mxu0 %v3761
        %v4000 = vpop.f32.mrf.mxu0
        %v4001 = vadd.f32 0.0, %v4000
        %v4002 = vpop.f32.mrf.mxu0
        %4003 = vmatmul.bf16.gmra.mxu0 %v3763
        %v4004 = vpop.f32.mrf.mxu0
        %v4005 = vadd.f32 0.0, %v4004
        %v4006 = vpop.f32.mrf.mxu0
        %v4007 = vadd.f32 0.0, %v4006
        %4008 = vmatmul.bf16.gmra.mxu0 %v3765
        %v4009 = vpop.f32.mrf.mxu0
        %v4010 = vadd.f32 0.0, %v4009
        %v4011 = vpop.f32.mrf.mxu0
        %v4012 = vadd.f32 0.0, %v4011
        %4013 = vmatmul.bf16.gmra.mxu0 %v3767
        %v4014 = vpop.f32.mrf.mxu0
        %v4015 = vpop.f32.mrf.mxu0
        %v4016 = vadd.f32 0.0, %v4015
        %4017 = vmatmul.bf16.gmra.mxu0 %v3769
        %v4018 = vpop.f32.mrf.mxu0
        %v4019 = vadd.f32 0.0, %v4018
        %v4020 = vpop.f32.mrf.mxu0
        %v4021 = vadd.f32 0.0, %v4020
        %4022 = vmatmul.bf16.gmra.mxu0 %v3771
        %v4023 = vpop.f32.mrf.mxu0
        %v4024 = vadd.f32 0.0, %v4023
        %v4025 = vpop.f32.mrf.mxu0
        %4026 = vmatmul.bf16.gmra.mxu0 %v3773
        %v4027 = vpop.f32.mrf.mxu0
        %v4028 = vadd.f32 0.0, %v4027
        %v4029 = vpop.f32.mrf.mxu0
        %v4030 = vadd.f32 0.0, %v4029
        %4031 = vmatmul.bf16.gmra.mxu0 %v3775
        %v4032 = vpop.f32.mrf.mxu0
        %v4033 = vadd.f32 0.0, %v4032
        %v4034 = vpop.f32.mrf.mxu0
        %v4035 = vadd.f32 0.0, %v4034
        %4036 = vmatmul.bf16.gmra.mxu0 %v3777
        %v4037 = vpop.f32.mrf.mxu0
        %v4038 = vpop.f32.mrf.mxu0
        %v4039 = vadd.f32 0.0, %v4038
        %4040 = vmatmul.bf16.gmra.mxu0 %v3779
        %v4041 = vpop.f32.mrf.mxu0
        %v4042 = vadd.f32 0.0, %v4041
        %v4043 = vpop.f32.mrf.mxu0
        %v4044 = vadd.f32 0.0, %v4043
        %4045 = vmatmul.bf16.gmra.mxu0 %v3781
        %v4046 = vpop.f32.mrf.mxu0
        %v4047 = vadd.f32 0.0, %v4046
        %v4048 = vpop.f32.mrf.mxu0
        %4049 = vmatmul.bf16.gmra.mxu0 %v3783
        %v4050 = vpop.f32.mrf.mxu0
        %v4051 = vadd.f32 0.0, %v4050
        %v4052 = vpop.f32.mrf.mxu0
        %v4053 = vadd.f32 0.0, %v4052
        %4054 = vmatmul.bf16.gmra.mxu0 %v3785
        %v4055 = vpop.f32.mrf.mxu0
        %v4056 = vadd.f32 0.0, %v4055
        %v4057 = vpop.f32.mrf.mxu0
        %v4058 = vadd.f32 0.0, %v4057
        %4059 = vmatmul.bf16.gmra.mxu0 %v3787
        %v4060 = vpop.f32.mrf.mxu0
        %v4061 = vpop.f32.mrf.mxu0
        %v4062 = vadd.f32 0.0, %v4061
        %4063 = vmatmul.bf16.gmra.mxu0 %v3789
        %v4064 = vpop.f32.mrf.mxu0
        %v4065 = vadd.f32 0.0, %v4064
        %v4066 = vpop.f32.mrf.mxu0
        %v4067 = vadd.f32 0.0, %v4066
        %4068 = vmatmul.bf16.gmra.mxu0 %v3791
        %v4069 = vpop.f32.mrf.mxu0
        %v4070 = vadd.f32 0.0, %v4069
        %v4071 = vpop.f32.mrf.mxu0
        %4072 = vdwg.mxu0
        %v4073 = vadd.f32 %v3630, %v3890
        %v4074 = vadd.f32 %v3631, %v3892
        %v4075 = vadd.f32 %v3632, %v3895
        %v4076 = vadd.f32 %v3633, %v3897
        %v4077 = vadd.f32 %v3634, %v3901
        %v4078 = vadd.f32 %v3635, %v3904
        %v4079 = vadd.f32 %v3636, %v3906
        %v4080 = vadd.f32 %v3637, %v3909
        %v4081 = vadd.f32 %v3638, %v3913
        %v4082 = vadd.f32 %v3639, %v3915
        %v4083 = vadd.f32 %v3640, %v3918
        %v4084 = vadd.f32 %v3641, %v3920
        %v4085 = vadd.f32 %v3642, %v3924
        %v4086 = vadd.f32 %v3643, %v3927
        %v4087 = vadd.f32 %v3644, %v3929
        %v4088 = vadd.f32 %v3645, %v3932
        %v4089 = vadd.f32 %v3646, %v3936
        %v4090 = vadd.f32 %v3647, %v3938
        %v4091 = vadd.f32 %v3648, %v3941
        %v4092 = vadd.f32 %v3649, %v3943
        %v4093 = vadd.f32 %v3650, %v3947
        %v4094 = vadd.f32 %v3651, %v3950
        %v4095 = vadd.f32 %v3652, %v3952
        %v4096 = vadd.f32 %v3653, %v3955
        %v4097 = vadd.f32 %v3654, %v3959
        %v4098 = vadd.f32 %v3655, %v3961
        %v4099 = vadd.f32 %v3656, %v3964
        %v4100 = vadd.f32 %v3657, %v3966
        %v4101 = vadd.f32 %v3658, %v3970
        %v4102 = vadd.f32 %v3659, %v3973
        %v4103 = vadd.f32 %v3660, %v3975
        %v4104 = vadd.f32 %v3661, %v3978
        %v4105 = vadd.f32 %v3662, %v3982
        %v4106 = vadd.f32 %v3663, %v3984
        %v4107 = vadd.f32 %v3664, %v3987
        %v4108 = vadd.f32 %v3665, %v3989
        %v4109 = vadd.f32 %v3666, %v3993
        %v4110 = vadd.f32 %v3667, %v3996
        %v4111 = vadd.f32 %v3668, %v3998
        %v4112 = vadd.f32 %v3669, %v4001
        %v4113 = vadd.f32 %v3670, %v4005
        %v4114 = vadd.f32 %v3671, %v4007
        %v4115 = vadd.f32 %v3672, %v4010
        %v4116 = vadd.f32 %v3673, %v4012
        %v4117 = vadd.f32 %v3674, %v4016
        %v4118 = vadd.f32 %v3675, %v4019
        %v4119 = vadd.f32 %v3676, %v4021
        %v4120 = vadd.f32 %v3677, %v4024
        %v4121 = vadd.f32 %v3678, %v4028
        %v4122 = vadd.f32 %v3679, %v4030
        %v4123 = vadd.f32 %v3680, %v4033
        %v4124 = vadd.f32 %v3681, %v4035
        %v4125 = vadd.f32 %v3682, %v4039
        %v4126 = vadd.f32 %v3683, %v4042
        %v4127 = vadd.f32 %v3684, %v4044
        %v4128 = vadd.f32 %v3685, %v4047
        %v4129 = vadd.f32 %v3686, %v4051
        %v4130 = vadd.f32 %v3687, %v4053
        %v4131 = vadd.f32 %v3688, %v4056
        %v4132 = vadd.f32 %v3689, %v4058
        %v4133 = vadd.f32 %v3690, %v4062
        %v4134 = vadd.f32 %v3691, %v4065
        %v4135 = vadd.f32 %v3692, %v4067
        %v4136 = vadd.f32 %v3693, %v4070
        %s4137 = scalar_lea.vmem %s1, 512
        %v4138 = vld [vmem:[%s4137] sm:$0xf]
        %v4139 = vld [vmem:[%s4137 + $0x4] sm:$0xf]
        %v4140 = vld [vmem:[%s4137 + $0x8] sm:$0xf]
        %v4141 = vld [vmem:[%s4137 + $0xc] sm:$0xf]
        %v4142 = vld [vmem:[%s4137 + $0x10] sm:$0xf]
        %v4143 = vld [vmem:[%s4137 + $0x14] sm:$0xf]
        %v4144 = vld [vmem:[%s4137 + $0x18] sm:$0xf]
        %v4145 = vld [vmem:[%s4137 + $0x1c] sm:$0xf]
        %v4146 = vld [vmem:[%s4137 + $0x20] sm:$0xf]
        %v4147 = vld [vmem:[%s4137 + $0x24] sm:$0xf]
        %v4148 = vld [vmem:[%s4137 + $0x28] sm:$0xf]
        %v4149 = vld [vmem:[%s4137 + $0x2c] sm:$0xf]
        %v4150 = vld [vmem:[%s4137 + $0x30] sm:$0xf]
        %v4151 = vld [vmem:[%s4137 + $0x34] sm:$0xf]
        %v4152 = vld [vmem:[%s4137 + $0x38] sm:$0xf]
        %v4153 = vld [vmem:[%s4137 + $0x3c] sm:$0xf]
        %v4154 = vrot.slane %v1184, 1
        %v4155 = vsel %vm3267, %v3345, %v4154
        %v4156 = vrot.slane %v1185, 1
        %v4157 = vsel %vm3267, %v4154, %v4156
        %v4158 = vrot.slane %v1186, 1
        %v4159 = vsel %vm3267, %v4156, %v4158
        %v4160 = vrot.slane %v1187, 1
        %v4161 = vsel %vm3267, %v4158, %v4160
        %v4162 = vrot.slane %v1188, 1
        %v4163 = vsel %vm3267, %v4160, %v4162
        %v4164 = vrot.slane %v2893, 1
        %v4165 = vsel %vm3267, %v4162, %v4164
        %v4188 = vunpack.c.l.b16 %v4138
        %v4189 = vunpack.c.l.b16 %v4139
        %v4190 = vunpack.c.l.b16 %v4140
        %v4191 = vunpack.c.l.b16 %v4141
        %v4192 = vunpack.c.l.b16 %v4142
        %v4193 = vunpack.c.l.b16 %v4143
        %v4194 = vunpack.c.l.b16 %v4144
        %v4195 = vunpack.c.l.b16 %v4145
        %v4196 = vunpack.c.l.b16 %v4146
        %v4197 = vunpack.c.l.b16 %v4147
        %v4198 = vunpack.c.l.b16 %v4148
        %v4199 = vunpack.c.l.b16 %v4149
        %v4200 = vunpack.c.l.b16 %v4150
        %v4201 = vunpack.c.l.b16 %v4151
        %v4202 = vunpack.c.l.b16 %v4152
        %v4203 = vunpack.c.l.b16 %v4153
        %v4204 = vpack.c.b16 %v4189, %v4188
        %v4205 = vpack.c.b16 %v4191, %v4190
        %v4206 = vpack.c.b16 %v4193, %v4192
        %v4207 = vpack.c.b16 %v4195, %v4194
        %v4208 = vpack.c.b16 %v4197, %v4196
        %v4209 = vpack.c.b16 %v4199, %v4198
        %v4210 = vpack.c.b16 %v4201, %v4200
        %v4211 = vpack.c.b16 %v4203, %v4202
        %4220 = vmatpush.bf16.msra.mxu0 %v4211
        %4221 = vmatpush.bf16.msra.mxu0 %v4210
        %4222 = vmatpush.bf16.msra.mxu0 %v4209
        %4223 = vmatpush.bf16.msra.mxu0 %v4208
        %4224 = vmatpush.bf16.msra.mxu0 %v4207
        %4225 = vmatpush.bf16.msra.mxu0 %v4206
        %4226 = vmatpush.bf16.msra.mxu0 %v4205
        %4227 = vmatpush.bf16.msra.mxu0 %v4204
        %4228 = vmatmul.bf16.gmra.mxu0 %v3280
        %v4229 = vpop.f32.mrf.mxu0
        %v4230 = vadd.f32 0.0, %v4229
        %v4231 = vpop.f32.mrf.mxu0
        %v4232 = vadd.f32 0.0, %v4231
        %4233 = vmatmul.bf16.gmra.mxu0 %v3282
        %v4234 = vpop.f32.mrf.mxu0
        %v4235 = vadd.f32 0.0, %v4234
        %v4236 = vpop.f32.mrf.mxu0
        %v4237 = vadd.f32 0.0, %v4236
        %4238 = vmatmul.bf16.gmra.mxu0 %v3284
        %v4239 = vpop.f32.mrf.mxu0
        %v4240 = vpop.f32.mrf.mxu0
        %v4241 = vadd.f32 0.0, %v4240
        %4242 = vmatmul.bf16.gmra.mxu0 %v3286
        %v4243 = vpop.f32.mrf.mxu0
        %v4244 = vadd.f32 0.0, %v4243
        %v4245 = vpop.f32.mrf.mxu0
        %v4246 = vadd.f32 0.0, %v4245
        %4247 = vmatmul.bf16.gmra.mxu0 %v3288
        %v4248 = vpop.f32.mrf.mxu0
        %v4249 = vadd.f32 0.0, %v4248
        %v4250 = vpop.f32.mrf.mxu0
        %4251 = vmatmul.bf16.gmra.mxu0 %v3290
        %v4252 = vpop.f32.mrf.mxu0
        %v4253 = vadd.f32 0.0, %v4252
        %v4254 = vpop.f32.mrf.mxu0
        %v4255 = vadd.f32 0.0, %v4254
        %4256 = vmatmul.bf16.gmra.mxu0 %v3292
        %v4257 = vpop.f32.mrf.mxu0
        %v4258 = vadd.f32 0.0, %v4257
        %v4259 = vpop.f32.mrf.mxu0
        %v4260 = vadd.f32 0.0, %v4259
        %4261 = vmatmul.bf16.gmra.mxu0 %v3294
        %v4262 = vpop.f32.mrf.mxu0
        %v4263 = vpop.f32.mrf.mxu0
        %v4264 = vadd.f32 0.0, %v4263
        %4265 = vmatmul.bf16.gmra.mxu0 %v3296
        %v4266 = vpop.f32.mrf.mxu0
        %v4267 = vadd.f32 0.0, %v4266
        %v4268 = vpop.f32.mrf.mxu0
        %v4269 = vadd.f32 0.0, %v4268
        %4270 = vmatmul.bf16.gmra.mxu0 %v3298
        %v4271 = vpop.f32.mrf.mxu0
        %v4272 = vadd.f32 0.0, %v4271
        %v4273 = vpop.f32.mrf.mxu0
        %4274 = vmatmul.bf16.gmra.mxu0 %v3300
        %v4275 = vpop.f32.mrf.mxu0
        %v4276 = vadd.f32 0.0, %v4275
        %v4277 = vpop.f32.mrf.mxu0
        %v4278 = vadd.f32 0.0, %v4277
        %4279 = vmatmul.bf16.gmra.mxu0 %v3302
        %v4280 = vpop.f32.mrf.mxu0
        %v4281 = vadd.f32 0.0, %v4280
        %v4282 = vpop.f32.mrf.mxu0
        %v4283 = vadd.f32 0.0, %v4282
        %4284 = vmatmul.bf16.gmra.mxu0 %v3304
        %v4285 = vpop.f32.mrf.mxu0
        %v4286 = vpop.f32.mrf.mxu0
        %v4287 = vadd.f32 0.0, %v4286
        %4288 = vmatmul.bf16.gmra.mxu0 %v3306
        %v4289 = vpop.f32.mrf.mxu0
        %v4290 = vadd.f32 0.0, %v4289
        %v4291 = vpop.f32.mrf.mxu0
        %v4292 = vadd.f32 0.0, %v4291
        %4293 = vmatmul.bf16.gmra.mxu0 %v3308
        %v4294 = vpop.f32.mrf.mxu0
        %v4295 = vadd.f32 0.0, %v4294
        %v4296 = vpop.f32.mrf.mxu0
        %4297 = vmatmul.bf16.gmra.mxu0 %v3310
        %v4298 = vpop.f32.mrf.mxu0
        %v4299 = vadd.f32 0.0, %v4298
        %v4300 = vpop.f32.mrf.mxu0
        %v4301 = vadd.f32 0.0, %v4300
        %4302 = vmatmul.bf16.gmra.mxu0 %v3312
        %v4303 = vpop.f32.mrf.mxu0
        %v4304 = vadd.f32 0.0, %v4303
        %v4305 = vpop.f32.mrf.mxu0
        %v4306 = vadd.f32 0.0, %v4305
        %4307 = vmatmul.bf16.gmra.mxu0 %v3314
        %v4308 = vpop.f32.mrf.mxu0
        %v4309 = vpop.f32.mrf.mxu0
        %v4310 = vadd.f32 0.0, %v4309
        %4311 = vmatmul.bf16.gmra.mxu0 %v3316
        %v4312 = vpop.f32.mrf.mxu0
        %v4313 = vadd.f32 0.0, %v4312
        %v4314 = vpop.f32.mrf.mxu0
        %v4315 = vadd.f32 0.0, %v4314
        %4316 = vmatmul.bf16.gmra.mxu0 %v3318
        %v4317 = vpop.f32.mrf.mxu0
        %v4318 = vadd.f32 0.0, %v4317
        %v4319 = vpop.f32.mrf.mxu0
        %4320 = vmatmul.bf16.gmra.mxu0 %v3320
        %v4321 = vpop.f32.mrf.mxu0
        %v4322 = vadd.f32 0.0, %v4321
        %v4323 = vpop.f32.mrf.mxu0
        %v4324 = vadd.f32 0.0, %v4323
        %4325 = vmatmul.bf16.gmra.mxu0 %v3322
        %v4326 = vpop.f32.mrf.mxu0
        %v4327 = vadd.f32 0.0, %v4326
        %v4328 = vpop.f32.mrf.mxu0
        %v4329 = vadd.f32 0.0, %v4328
        %4330 = vmatmul.bf16.gmra.mxu0 %v3324
        %v4331 = vpop.f32.mrf.mxu0
        %v4332 = vpop.f32.mrf.mxu0
        %v4333 = vadd.f32 0.0, %v4332
        %4334 = vmatmul.bf16.gmra.mxu0 %v3326
        %v4335 = vpop.f32.mrf.mxu0
        %v4336 = vadd.f32 0.0, %v4335
        %v4337 = vpop.f32.mrf.mxu0
        %v4338 = vadd.f32 0.0, %v4337
        %4339 = vmatmul.bf16.gmra.mxu0 %v3328
        %v4340 = vpop.f32.mrf.mxu0
        %v4341 = vadd.f32 0.0, %v4340
        %v4342 = vpop.f32.mrf.mxu0
        %4343 = vmatmul.bf16.gmra.mxu0 %v3330
        %v4344 = vpop.f32.mrf.mxu0
        %v4345 = vadd.f32 0.0, %v4344
        %v4346 = vpop.f32.mrf.mxu0
        %v4347 = vadd.f32 0.0, %v4346
        %4348 = vmatmul.bf16.gmra.mxu0 %v3332
        %v4349 = vpop.f32.mrf.mxu0
        %v4350 = vadd.f32 0.0, %v4349
        %v4351 = vpop.f32.mrf.mxu0
        %v4352 = vadd.f32 0.0, %v4351
        %4353 = vmatmul.bf16.gmra.mxu0 %v3334
        %v4354 = vpop.f32.mrf.mxu0
        %v4355 = vpop.f32.mrf.mxu0
        %v4356 = vadd.f32 0.0, %v4355
        %4357 = vmatmul.bf16.gmra.mxu0 %v3336
        %v4358 = vpop.f32.mrf.mxu0
        %v4359 = vadd.f32 0.0, %v4358
        %v4360 = vpop.f32.mrf.mxu0
        %v4361 = vadd.f32 0.0, %v4360
        %4362 = vmatmul.bf16.gmra.mxu0 %v3338
        %v4363 = vpop.f32.mrf.mxu0
        %v4364 = vadd.f32 0.0, %v4363
        %v4365 = vpop.f32.mrf.mxu0
        %4366 = vmatmul.bf16.gmra.mxu0 %v3340
        %v4367 = vpop.f32.mrf.mxu0
        %v4368 = vadd.f32 0.0, %v4367
        %v4369 = vpop.f32.mrf.mxu0
        %v4370 = vadd.f32 0.0, %v4369
        %4371 = vmatmul.bf16.gmra.mxu0 %v3342
        %v4372 = vpop.f32.mrf.mxu0
        %v4373 = vadd.f32 0.0, %v4372
        %v4374 = vpop.f32.mrf.mxu0
        %v4375 = vadd.f32 0.0, %v4374
        %4376 = vmatmul.bf16.gmra.mxu0 %v3344
        %v4377 = vpop.f32.mrf.mxu0
        %v4378 = vpop.f32.mrf.mxu0
        %v4379 = vadd.f32 0.0, %v4378
        %4380 = vmatmul.bf16.gmra.mxu0 %v3346
        %v4381 = vpop.f32.mrf.mxu0
        %v4382 = vadd.f32 0.0, %v4381
        %v4383 = vpop.f32.mrf.mxu0
        %v4384 = vadd.f32 0.0, %v4383
        %4385 = vmatmul.bf16.gmra.mxu0 %v4155
        %v4386 = vpop.f32.mrf.mxu0
        %v4387 = vadd.f32 0.0, %v4386
        %v4388 = vpop.f32.mrf.mxu0
        %4389 = vmatmul.bf16.gmra.mxu0 %v4157
        %v4390 = vpop.f32.mrf.mxu0
        %v4391 = vadd.f32 0.0, %v4390
        %v4392 = vpop.f32.mrf.mxu0
        %v4393 = vadd.f32 0.0, %v4392
        %4394 = vmatmul.bf16.gmra.mxu0 %v4159
        %v4395 = vpop.f32.mrf.mxu0
        %v4396 = vadd.f32 0.0, %v4395
        %v4397 = vpop.f32.mrf.mxu0
        %v4398 = vadd.f32 0.0, %v4397
        %4399 = vmatmul.bf16.gmra.mxu0 %v4161
        %v4400 = vpop.f32.mrf.mxu0
        %v4401 = vpop.f32.mrf.mxu0
        %v4402 = vadd.f32 0.0, %v4401
        %4403 = vmatmul.bf16.gmra.mxu0 %v4163
        %v4404 = vpop.f32.mrf.mxu0
        %v4405 = vadd.f32 0.0, %v4404
        %v4406 = vpop.f32.mrf.mxu0
        %v4407 = vadd.f32 0.0, %v4406
        %4408 = vmatmul.bf16.gmra.mxu0 %v4165
        %v4409 = vpop.f32.mrf.mxu0
        %v4410 = vadd.f32 0.0, %v4409
        %v4411 = vpop.f32.mrf.mxu0
        %4412 = vdwg.mxu0
        %v4413 = vadd.f32 %v4073, %v4230
        %v4414 = vadd.f32 %v4074, %v4232
        %v4415 = vadd.f32 %v4075, %v4235
        %v4416 = vadd.f32 %v4076, %v4237
        %v4417 = vadd.f32 %v4077, %v4241
        %v4418 = vadd.f32 %v4078, %v4244
        %v4419 = vadd.f32 %v4079, %v4246
        %v4420 = vadd.f32 %v4080, %v4249
        %v4421 = vadd.f32 %v4081, %v4253
        %v4422 = vadd.f32 %v4082, %v4255
        %v4423 = vadd.f32 %v4083, %v4258
        %v4424 = vadd.f32 %v4084, %v4260
        %v4425 = vadd.f32 %v4085, %v4264
        %v4426 = vadd.f32 %v4086, %v4267
        %v4427 = vadd.f32 %v4087, %v4269
        %v4428 = vadd.f32 %v4088, %v4272
        %v4429 = vadd.f32 %v4089, %v4276
        %v4430 = vadd.f32 %v4090, %v4278
        %v4431 = vadd.f32 %v4091, %v4281
        %v4432 = vadd.f32 %v4092, %v4283
        %v4433 = vadd.f32 %v4093, %v4287
        %v4434 = vadd.f32 %v4094, %v4290
        %v4435 = vadd.f32 %v4095, %v4292
        %v4436 = vadd.f32 %v4096, %v4295
        %v4437 = vadd.f32 %v4097, %v4299
        %v4438 = vadd.f32 %v4098, %v4301
        %v4439 = vadd.f32 %v4099, %v4304
        %v4440 = vadd.f32 %v4100, %v4306
        %v4441 = vadd.f32 %v4101, %v4310
        %v4442 = vadd.f32 %v4102, %v4313
        %v4443 = vadd.f32 %v4103, %v4315
        %v4444 = vadd.f32 %v4104, %v4318
        %v4445 = vadd.f32 %v4105, %v4322
        %v4446 = vadd.f32 %v4106, %v4324
        %v4447 = vadd.f32 %v4107, %v4327
        %v4448 = vadd.f32 %v4108, %v4329
        %v4449 = vadd.f32 %v4109, %v4333
        %v4450 = vadd.f32 %v4110, %v4336
        %v4451 = vadd.f32 %v4111, %v4338
        %v4452 = vadd.f32 %v4112, %v4341
        %v4453 = vadd.f32 %v4113, %v4345
        %v4454 = vadd.f32 %v4114, %v4347
        %v4455 = vadd.f32 %v4115, %v4350
        %v4456 = vadd.f32 %v4116, %v4352
        %v4457 = vadd.f32 %v4117, %v4356
        %v4458 = vadd.f32 %v4118, %v4359
        %v4459 = vadd.f32 %v4119, %v4361
        %v4460 = vadd.f32 %v4120, %v4364
        %v4461 = vadd.f32 %v4121, %v4368
        %v4462 = vadd.f32 %v4122, %v4370
        %v4463 = vadd.f32 %v4123, %v4373
        %v4464 = vadd.f32 %v4124, %v4375
        %v4465 = vadd.f32 %v4125, %v4379
        %v4466 = vadd.f32 %v4126, %v4382
        %v4467 = vadd.f32 %v4127, %v4384
        %v4468 = vadd.f32 %v4128, %v4387
        %v4469 = vadd.f32 %v4129, %v4391
        %v4470 = vadd.f32 %v4130, %v4393
        %v4471 = vadd.f32 %v4131, %v4396
        %v4472 = vadd.f32 %v4132, %v4398
        %v4473 = vadd.f32 %v4133, %v4402
        %v4474 = vadd.f32 %v4134, %v4405
        %v4475 = vadd.f32 %v4135, %v4407
        %v4476 = vadd.f32 %v4136, %v4410
        %v4477 = vld [vmem:[%s219] sm:$0x1]
        %v4479 = vperm.slane %v4477, 0
        %v4481 = vadd.f32 %v4413, %v4479
        %v4482 = vadd.f32 %v4414, %v4479
        %v4483 = vadd.f32 %v4415, %v4479
        %v4484 = vadd.f32 %v4416, %v4479
        %v4485 = vadd.f32 %v4417, %v4479
        %v4486 = vadd.f32 %v4418, %v4479
        %v4487 = vadd.f32 %v4419, %v4479
        %v4488 = vadd.f32 %v4420, %v4479
        %v4489 = vadd.f32 %v4421, %v4479
        %v4490 = vadd.f32 %v4422, %v4479
        %v4491 = vadd.f32 %v4423, %v4479
        %v4492 = vadd.f32 %v4424, %v4479
        %v4493 = vadd.f32 %v4425, %v4479
        %v4494 = vadd.f32 %v4426, %v4479
        %v4495 = vadd.f32 %v4427, %v4479
        %v4496 = vadd.f32 %v4428, %v4479
        %v4497 = vadd.f32 %v4429, %v4479
        %v4498 = vadd.f32 %v4430, %v4479
        %v4499 = vadd.f32 %v4431, %v4479
        %v4500 = vadd.f32 %v4432, %v4479
        %v4501 = vadd.f32 %v4433, %v4479
        %v4502 = vadd.f32 %v4434, %v4479
        %v4503 = vadd.f32 %v4435, %v4479
        %v4504 = vadd.f32 %v4436, %v4479
        %v4505 = vadd.f32 %v4437, %v4479
        %v4506 = vadd.f32 %v4438, %v4479
        %v4507 = vadd.f32 %v4439, %v4479
        %v4508 = vadd.f32 %v4440, %v4479
        %v4509 = vadd.f32 %v4441, %v4479
        %v4510 = vadd.f32 %v4442, %v4479
        %v4511 = vadd.f32 %v4443, %v4479
        %v4512 = vadd.f32 %v4444, %v4479
        %v4513 = vadd.f32 %v4445, %v4479
        %v4514 = vadd.f32 %v4446, %v4479
        %v4515 = vadd.f32 %v4447, %v4479
        %v4516 = vadd.f32 %v4448, %v4479
        %v4517 = vadd.f32 %v4449, %v4479
        %v4518 = vadd.f32 %v4450, %v4479
        %v4519 = vadd.f32 %v4451, %v4479
        %v4520 = vadd.f32 %v4452, %v4479
        %v4521 = vadd.f32 %v4453, %v4479
        %v4522 = vadd.f32 %v4454, %v4479
        %v4523 = vadd.f32 %v4455, %v4479
        %v4524 = vadd.f32 %v4456, %v4479
        %v4525 = vadd.f32 %v4457, %v4479
        %v4526 = vadd.f32 %v4458, %v4479
        %v4527 = vadd.f32 %v4459, %v4479
        %v4528 = vadd.f32 %v4460, %v4479
        %v4529 = vadd.f32 %v4461, %v4479
        %v4530 = vadd.f32 %v4462, %v4479
        %v4531 = vadd.f32 %v4463, %v4479
        %v4532 = vadd.f32 %v4464, %v4479
        %v4533 = vadd.f32 %v4465, %v4479
        %v4534 = vadd.f32 %v4466, %v4479
        %v4535 = vadd.f32 %v4467, %v4479
        %v4536 = vadd.f32 %v4468, %v4479
        %v4537 = vadd.f32 %v4469, %v4479
        %v4538 = vadd.f32 %v4470, %v4479
        %v4539 = vadd.f32 %v4471, %v4479
        %v4540 = vadd.f32 %v4472, %v4479
        %v4541 = vadd.f32 %v4473, %v4479
        %v4542 = vadd.f32 %v4474, %v4479
        %v4543 = vadd.f32 %v4475, %v4479
        %v4544 = vadd.f32 %v4476, %v4479
        %vm4545 = vcmp.gt.f32.partialorder %v4481, 0.0
        %vm4546 = vcmp.gt.f32.partialorder %v4482, 0.0
        %vm4547 = vcmp.gt.f32.partialorder %v4483, 0.0
        %vm4548 = vcmp.gt.f32.partialorder %v4484, 0.0
        %vm4549 = vcmp.gt.f32.partialorder %v4485, 0.0
        %vm4550 = vcmp.gt.f32.partialorder %v4486, 0.0
        %vm4551 = vcmp.gt.f32.partialorder %v4487, 0.0
        %vm4552 = vcmp.gt.f32.partialorder %v4488, 0.0
        %vm4553 = vcmp.gt.f32.partialorder %v4489, 0.0
        %vm4554 = vcmp.gt.f32.partialorder %v4490, 0.0
        %vm4555 = vcmp.gt.f32.partialorder %v4491, 0.0
        %vm4556 = vcmp.gt.f32.partialorder %v4492, 0.0
        %vm4557 = vcmp.gt.f32.partialorder %v4493, 0.0
        %vm4558 = vcmp.gt.f32.partialorder %v4494, 0.0
        %vm4559 = vcmp.gt.f32.partialorder %v4495, 0.0
        %vm4560 = vcmp.gt.f32.partialorder %v4496, 0.0
        %vm4561 = vcmp.gt.f32.partialorder %v4497, 0.0
        %vm4562 = vcmp.gt.f32.partialorder %v4498, 0.0
        %vm4563 = vcmp.gt.f32.partialorder %v4499, 0.0
        %vm4564 = vcmp.gt.f32.partialorder %v4500, 0.0
        %vm4565 = vcmp.gt.f32.partialorder %v4501, 0.0
        %vm4566 = vcmp.gt.f32.partialorder %v4502, 0.0
        %vm4567 = vcmp.gt.f32.partialorder %v4503, 0.0
        %vm4568 = vcmp.gt.f32.partialorder %v4504, 0.0
        %vm4569 = vcmp.gt.f32.partialorder %v4505, 0.0
        %vm4570 = vcmp.gt.f32.partialorder %v4506, 0.0
        %vm4571 = vcmp.gt.f32.partialorder %v4507, 0.0
        %vm4572 = vcmp.gt.f32.partialorder %v4508, 0.0
        %vm4573 = vcmp.gt.f32.partialorder %v4509, 0.0
        %vm4574 = vcmp.gt.f32.partialorder %v4510, 0.0
        %vm4575 = vcmp.gt.f32.partialorder %v4511, 0.0
        %vm4576 = vcmp.gt.f32.partialorder %v4512, 0.0
        %vm4577 = vcmp.gt.f32.partialorder %v4513, 0.0
        %vm4578 = vcmp.gt.f32.partialorder %v4514, 0.0
        %vm4579 = vcmp.gt.f32.partialorder %v4515, 0.0
        %vm4580 = vcmp.gt.f32.partialorder %v4516, 0.0
        %vm4581 = vcmp.gt.f32.partialorder %v4517, 0.0
        %vm4582 = vcmp.gt.f32.partialorder %v4518, 0.0
        %vm4583 = vcmp.gt.f32.partialorder %v4519, 0.0
        %vm4584 = vcmp.gt.f32.partialorder %v4520, 0.0
        %vm4585 = vcmp.gt.f32.partialorder %v4521, 0.0
        %vm4586 = vcmp.gt.f32.partialorder %v4522, 0.0
        %vm4587 = vcmp.gt.f32.partialorder %v4523, 0.0
        %vm4588 = vcmp.gt.f32.partialorder %v4524, 0.0
        %vm4589 = vcmp.gt.f32.partialorder %v4525, 0.0
        %vm4590 = vcmp.gt.f32.partialorder %v4526, 0.0
        %vm4591 = vcmp.gt.f32.partialorder %v4527, 0.0
        %vm4592 = vcmp.gt.f32.partialorder %v4528, 0.0
        %vm4593 = vcmp.gt.f32.partialorder %v4529, 0.0
        %vm4594 = vcmp.gt.f32.partialorder %v4530, 0.0
        %vm4595 = vcmp.gt.f32.partialorder %v4531, 0.0
        %vm4596 = vcmp.gt.f32.partialorder %v4532, 0.0
        %vm4597 = vcmp.gt.f32.partialorder %v4533, 0.0
        %vm4598 = vcmp.gt.f32.partialorder %v4534, 0.0
        %vm4599 = vcmp.gt.f32.partialorder %v4535, 0.0
        %vm4600 = vcmp.gt.f32.partialorder %v4536, 0.0
        %vm4601 = vcmp.gt.f32.partialorder %v4537, 0.0
        %vm4602 = vcmp.gt.f32.partialorder %v4538, 0.0
        %vm4603 = vcmp.gt.f32.partialorder %v4539, 0.0
        %vm4604 = vcmp.gt.f32.partialorder %v4540, 0.0
        %vm4605 = vcmp.gt.f32.partialorder %v4541, 0.0
        %vm4606 = vcmp.gt.f32.partialorder %v4542, 0.0
        %vm4607 = vcmp.gt.f32.partialorder %v4543, 0.0
        %vm4608 = vcmp.gt.f32.partialorder %v4544, 0.0
        %v4609 = vmul.f32 %v4481, 0.1
        %v4610 = vmul.f32 %v4482, 0.1
        %v4611 = vmul.f32 %v4483, 0.1
        %v4612 = vmul.f32 %v4484, 0.1
        %v4613 = vmul.f32 %v4485, 0.1
        %v4614 = vmul.f32 %v4486, 0.1
        %v4615 = vmul.f32 %v4487, 0.1
        %v4616 = vmul.f32 %v4488, 0.1
        %v4617 = vmul.f32 %v4489, 0.1
        %v4618 = vmul.f32 %v4490, 0.1
        %v4619 = vmul.f32 %v4491, 0.1
        %v4620 = vmul.f32 %v4492, 0.1
        %v4621 = vmul.f32 %v4493, 0.1
        %v4622 = vmul.f32 %v4494, 0.1
        %v4623 = vmul.f32 %v4495, 0.1
        %v4624 = vmul.f32 %v4496, 0.1
        %v4625 = vmul.f32 %v4497, 0.1
        %v4626 = vmul.f32 %v4498, 0.1
        %v4627 = vmul.f32 %v4499, 0.1
        %v4628 = vmul.f32 %v4500, 0.1
        %v4629 = vmul.f32 %v4501, 0.1
        %v4630 = vmul.f32 %v4502, 0.1
        %v4631 = vmul.f32 %v4503, 0.1
        %v4632 = vmul.f32 %v4504, 0.1
        %v4633 = vmul.f32 %v4505, 0.1
        %v4634 = vmul.f32 %v4506, 0.1
        %v4635 = vmul.f32 %v4507, 0.1
        %v4636 = vmul.f32 %v4508, 0.1
        %v4637 = vmul.f32 %v4509, 0.1
        %v4638 = vmul.f32 %v4510, 0.1
        %v4639 = vmul.f32 %v4511, 0.1
        %v4640 = vmul.f32 %v4512, 0.1
        %v4641 = vmul.f32 %v4513, 0.1
        %v4642 = vmul.f32 %v4514, 0.1
        %v4643 = vmul.f32 %v4515, 0.1
        %v4644 = vmul.f32 %v4516, 0.1
        %v4645 = vmul.f32 %v4517, 0.1
        %v4646 = vmul.f32 %v4518, 0.1
        %v4647 = vmul.f32 %v4519, 0.1
        %v4648 = vmul.f32 %v4520, 0.1
        %v4649 = vmul.f32 %v4521, 0.1
        %v4650 = vmul.f32 %v4522, 0.1
        %v4651 = vmul.f32 %v4523, 0.1
        %v4652 = vmul.f32 %v4524, 0.1
        %v4653 = vmul.f32 %v4525, 0.1
        %v4654 = vmul.f32 %v4526, 0.1
        %v4655 = vmul.f32 %v4527, 0.1
        %v4656 = vmul.f32 %v4528, 0.1
        %v4657 = vmul.f32 %v4529, 0.1
        %v4658 = vmul.f32 %v4530, 0.1
        %v4659 = vmul.f32 %v4531, 0.1
        %v4660 = vmul.f32 %v4532, 0.1
        %v4661 = vmul.f32 %v4533, 0.1
        %v4662 = vmul.f32 %v4534, 0.1
        %v4663 = vmul.f32 %v4535, 0.1
        %v4664 = vmul.f32 %v4536, 0.1
        %v4665 = vmul.f32 %v4537, 0.1
        %v4666 = vmul.f32 %v4538, 0.1
        %v4667 = vmul.f32 %v4539, 0.1
        %v4668 = vmul.f32 %v4540, 0.1
        %v4669 = vmul.f32 %v4541, 0.1
        %v4670 = vmul.f32 %v4542, 0.1
        %v4671 = vmul.f32 %v4543, 0.1
        %v4672 = vmul.f32 %v4544, 0.1
        %v4673 = vsel %vm4545, %v4481, %v4609
        %v4674 = vsel %vm4546, %v4482, %v4610
        %v4675 = vsel %vm4547, %v4483, %v4611
        %v4676 = vsel %vm4548, %v4484, %v4612
        %v4677 = vsel %vm4549, %v4485, %v4613
        %v4678 = vsel %vm4550, %v4486, %v4614
        %v4679 = vsel %vm4551, %v4487, %v4615
        %v4680 = vsel %vm4552, %v4488, %v4616
        %v4681 = vsel %vm4553, %v4489, %v4617
        %v4682 = vsel %vm4554, %v4490, %v4618
        %v4683 = vsel %vm4555, %v4491, %v4619
        %v4684 = vsel %vm4556, %v4492, %v4620
        %v4685 = vsel %vm4557, %v4493, %v4621
        %v4686 = vsel %vm4558, %v4494, %v4622
        %v4687 = vsel %vm4559, %v4495, %v4623
        %v4688 = vsel %vm4560, %v4496, %v4624
        %v4689 = vsel %vm4561, %v4497, %v4625
        %v4690 = vsel %vm4562, %v4498, %v4626
        %v4691 = vsel %vm4563, %v4499, %v4627
        %v4692 = vsel %vm4564, %v4500, %v4628
        %v4693 = vsel %vm4565, %v4501, %v4629
        %v4694 = vsel %vm4566, %v4502, %v4630
        %v4695 = vsel %vm4567, %v4503, %v4631
        %v4696 = vsel %vm4568, %v4504, %v4632
        %v4697 = vsel %vm4569, %v4505, %v4633
        %v4698 = vsel %vm4570, %v4506, %v4634
        %v4699 = vsel %vm4571, %v4507, %v4635
        %v4700 = vsel %vm4572, %v4508, %v4636
        %v4701 = vsel %vm4573, %v4509, %v4637
        %v4702 = vsel %vm4574, %v4510, %v4638
        %v4703 = vsel %vm4575, %v4511, %v4639
        %v4704 = vsel %vm4576, %v4512, %v4640
        %v4705 = vsel %vm4577, %v4513, %v4641
        %v4706 = vsel %vm4578, %v4514, %v4642
        %v4707 = vsel %vm4579, %v4515, %v4643
        %v4708 = vsel %vm4580, %v4516, %v4644
        %v4709 = vsel %vm4581, %v4517, %v4645
        %v4710 = vsel %vm4582, %v4518, %v4646
        %v4711 = vsel %vm4583, %v4519, %v4647
        %v4712 = vsel %vm4584, %v4520, %v4648
        %v4713 = vsel %vm4585, %v4521, %v4649
        %v4714 = vsel %vm4586, %v4522, %v4650
        %v4715 = vsel %vm4587, %v4523, %v4651
        %v4716 = vsel %vm4588, %v4524, %v4652
        %v4717 = vsel %vm4589, %v4525, %v4653
        %v4718 = vsel %vm4590, %v4526, %v4654
        %v4719 = vsel %vm4591, %v4527, %v4655
        %v4720 = vsel %vm4592, %v4528, %v4656
        %v4721 = vsel %vm4593, %v4529, %v4657
        %v4722 = vsel %vm4594, %v4530, %v4658
        %v4723 = vsel %vm4595, %v4531, %v4659
        %v4724 = vsel %vm4596, %v4532, %v4660
        %v4725 = vsel %vm4597, %v4533, %v4661
        %v4726 = vsel %vm4598, %v4534, %v4662
        %v4727 = vsel %vm4599, %v4535, %v4663
        %v4728 = vsel %vm4600, %v4536, %v4664
        %v4729 = vsel %vm4601, %v4537, %v4665
        %v4730 = vsel %vm4602, %v4538, %v4666
        %v4731 = vsel %vm4603, %v4539, %v4667
        %v4732 = vsel %vm4604, %v4540, %v4668
        %v4733 = vsel %vm4605, %v4541, %v4669
        %v4734 = vsel %vm4606, %v4542, %v4670
        %v4735 = vsel %vm4607, %v4543, %v4671
        %v4736 = vsel %vm4608, %v4544, %v4672
        %v4737 = vpack.c.bf16 %v4673, %v4673
        %v4738 = vpack.c.bf16 %v4674, %v4674
        %v4739 = vpack.c.bf16 %v4675, %v4675
        %v4740 = vpack.c.bf16 %v4676, %v4676
        %v4741 = vpack.c.bf16 %v4677, %v4677
        %v4742 = vpack.c.bf16 %v4678, %v4678
        %v4743 = vpack.c.bf16 %v4679, %v4679
        %v4744 = vpack.c.bf16 %v4680, %v4680
        %v4745 = vpack.c.bf16 %v4681, %v4681
        %v4746 = vpack.c.bf16 %v4682, %v4682
        %v4747 = vpack.c.bf16 %v4683, %v4683
        %v4748 = vpack.c.bf16 %v4684, %v4684
        %v4749 = vpack.c.bf16 %v4685, %v4685
        %v4750 = vpack.c.bf16 %v4686, %v4686
        %v4751 = vpack.c.bf16 %v4687, %v4687
        %v4752 = vpack.c.bf16 %v4688, %v4688
        %v4753 = vpack.c.bf16 %v4689, %v4689
        %v4754 = vpack.c.bf16 %v4690, %v4690
        %v4755 = vpack.c.bf16 %v4691, %v4691
        %v4756 = vpack.c.bf16 %v4692, %v4692
        %v4757 = vpack.c.bf16 %v4693, %v4693
        %v4758 = vpack.c.bf16 %v4694, %v4694
        %v4759 = vpack.c.bf16 %v4695, %v4695
        %v4760 = vpack.c.bf16 %v4696, %v4696
        %v4761 = vpack.c.bf16 %v4697, %v4697
        %v4762 = vpack.c.bf16 %v4698, %v4698
        %v4763 = vpack.c.bf16 %v4699, %v4699
        %v4764 = vpack.c.bf16 %v4700, %v4700
        %v4765 = vpack.c.bf16 %v4701, %v4701
        %v4766 = vpack.c.bf16 %v4702, %v4702
        %v4767 = vpack.c.bf16 %v4703, %v4703
        %v4768 = vpack.c.bf16 %v4704, %v4704
        %v4769 = vpack.c.bf16 %v4705, %v4705
        %v4770 = vpack.c.bf16 %v4706, %v4706
        %v4771 = vpack.c.bf16 %v4707, %v4707
        %v4772 = vpack.c.bf16 %v4708, %v4708
        %v4773 = vpack.c.bf16 %v4709, %v4709
        %v4774 = vpack.c.bf16 %v4710, %v4710
        %v4775 = vpack.c.bf16 %v4711, %v4711
        %v4776 = vpack.c.bf16 %v4712, %v4712
        %v4777 = vpack.c.bf16 %v4713, %v4713
        %v4778 = vpack.c.bf16 %v4714, %v4714
        %v4779 = vpack.c.bf16 %v4715, %v4715
        %v4780 = vpack.c.bf16 %v4716, %v4716
        %v4781 = vpack.c.bf16 %v4717, %v4717
        %v4782 = vpack.c.bf16 %v4718, %v4718
        %v4783 = vpack.c.bf16 %v4719, %v4719
        %v4784 = vpack.c.bf16 %v4720, %v4720
        %v4785 = vpack.c.bf16 %v4721, %v4721
        %v4786 = vpack.c.bf16 %v4722, %v4722
        %v4787 = vpack.c.bf16 %v4723, %v4723
        %v4788 = vpack.c.bf16 %v4724, %v4724
        %v4789 = vpack.c.bf16 %v4725, %v4725
        %v4790 = vpack.c.bf16 %v4726, %v4726
        %v4791 = vpack.c.bf16 %v4727, %v4727
        %v4792 = vpack.c.bf16 %v4728, %v4728
        %v4793 = vpack.c.bf16 %v4729, %v4729
        %v4794 = vpack.c.bf16 %v4730, %v4730
        %v4795 = vpack.c.bf16 %v4731, %v4731
        %v4796 = vpack.c.bf16 %v4732, %v4732
        %v4797 = vpack.c.bf16 %v4733, %v4733
        %v4798 = vpack.c.bf16 %v4734, %v4734
        %v4799 = vpack.c.bf16 %v4735, %v4735
        %v4800 = vpack.c.bf16 %v4736, %v4736
        %4801 = vst [vmem:[%s207] sm:$0xf] %v4737
        %4802 = vst [vmem:[%s207 + $0x4] sm:$0xf] %v4738
        %4803 = vst [vmem:[%s207 + $0x8] sm:$0xf] %v4739
        %4804 = vst [vmem:[%s207 + $0xc] sm:$0xf] %v4740
        %4805 = vst [vmem:[%s207 + $0x10] sm:$0xf] %v4741
        %4806 = vst [vmem:[%s207 + $0x14] sm:$0xf] %v4742
        %4807 = vst [vmem:[%s207 + $0x18] sm:$0xf] %v4743
        %4808 = vst [vmem:[%s207 + $0x1c] sm:$0xf] %v4744
        %4809 = vst [vmem:[%s207 + $0x20] sm:$0xf] %v4745
        %4810 = vst [vmem:[%s207 + $0x24] sm:$0xf] %v4746
        %4811 = vst [vmem:[%s207 + $0x28] sm:$0xf] %v4747
        %4812 = vst [vmem:[%s207 + $0x2c] sm:$0xf] %v4748
        %4813 = vst [vmem:[%s207 + $0x30] sm:$0xf] %v4749
        %4814 = vst [vmem:[%s207 + $0x34] sm:$0xf] %v4750
        %4815 = vst [vmem:[%s207 + $0x38] sm:$0xf] %v4751
        %4816 = vst [vmem:[%s207 + $0x3c] sm:$0xf] %v4752
        %4817 = vst [vmem:[%s207 + $0x40] sm:$0xf] %v4753
        %4818 = vst [vmem:[%s207 + $0x44] sm:$0xf] %v4754
        %4819 = vst [vmem:[%s207 + $0x48] sm:$0xf] %v4755
        %4820 = vst [vmem:[%s207 + $0x4c] sm:$0xf] %v4756
        %4821 = vst [vmem:[%s207 + $0x50] sm:$0xf] %v4757
        %4822 = vst [vmem:[%s207 + $0x54] sm:$0xf] %v4758
        %4823 = vst [vmem:[%s207 + $0x58] sm:$0xf] %v4759
        %4824 = vst [vmem:[%s207 + $0x5c] sm:$0xf] %v4760
        %4825 = vst [vmem:[%s207 + $0x60] sm:$0xf] %v4761
        %4826 = vst [vmem:[%s207 + $0x64] sm:$0xf] %v4762
        %4827 = vst [vmem:[%s207 + $0x68] sm:$0xf] %v4763
        %4828 = vst [vmem:[%s207 + $0x6c] sm:$0xf] %v4764
        %4829 = vst [vmem:[%s207 + $0x70] sm:$0xf] %v4765
        %4830 = vst [vmem:[%s207 + $0x74] sm:$0xf] %v4766
        %4831 = vst [vmem:[%s207 + $0x78] sm:$0xf] %v4767
        %4832 = vst [vmem:[%s207 + $0x7c] sm:$0xf] %v4768
        %4833 = vst [vmem:[%s207 + $0x80] sm:$0xf] %v4769
        %4834 = vst [vmem:[%s207 + $0x84] sm:$0xf] %v4770
        %4835 = vst [vmem:[%s207 + $0x88] sm:$0xf] %v4771
        %4836 = vst [vmem:[%s207 + $0x8c] sm:$0xf] %v4772
        %4837 = vst [vmem:[%s207 + $0x90] sm:$0xf] %v4773
        %4838 = vst [vmem:[%s207 + $0x94] sm:$0xf] %v4774
        %4839 = vst [vmem:[%s207 + $0x98] sm:$0xf] %v4775
        %4840 = vst [vmem:[%s207 + $0x9c] sm:$0xf] %v4776
        %4841 = vst [vmem:[%s207 + $0xa0] sm:$0xf] %v4777
        %4842 = vst [vmem:[%s207 + $0xa4] sm:$0xf] %v4778
        %4843 = vst [vmem:[%s207 + $0xa8] sm:$0xf] %v4779
        %4844 = vst [vmem:[%s207 + $0xac] sm:$0xf] %v4780
        %4845 = vst [vmem:[%s207 + $0xb0] sm:$0xf] %v4781
        %4846 = vst [vmem:[%s207 + $0xb4] sm:$0xf] %v4782
        %4847 = vst [vmem:[%s207 + $0xb8] sm:$0xf] %v4783
        %4848 = vst [vmem:[%s207 + $0xbc] sm:$0xf] %v4784
        %4849 = vst [vmem:[%s207 + $0xc0] sm:$0xf] %v4785
        %4850 = vst [vmem:[%s207 + $0xc4] sm:$0xf] %v4786
        %4851 = vst [vmem:[%s207 + $0xc8] sm:$0xf] %v4787
        %4852 = vst [vmem:[%s207 + $0xcc] sm:$0xf] %v4788
        %4853 = vst [vmem:[%s207 + $0xd0] sm:$0xf] %v4789
        %4854 = vst [vmem:[%s207 + $0xd4] sm:$0xf] %v4790
        %4855 = vst [vmem:[%s207 + $0xd8] sm:$0xf] %v4791
        %4856 = vst [vmem:[%s207 + $0xdc] sm:$0xf] %v4792
        %4857 = vst [vmem:[%s207 + $0xe0] sm:$0xf] %v4793
        %4858 = vst [vmem:[%s207 + $0xe4] sm:$0xf] %v4794
        %4859 = vst [vmem:[%s207 + $0xe8] sm:$0xf] %v4795
        %4860 = vst [vmem:[%s207 + $0xec] sm:$0xf] %v4796
        %4861 = vst [vmem:[%s207 + $0xf0] sm:$0xf] %v4797
        %4862 = vst [vmem:[%s207 + $0xf4] sm:$0xf] %v4798
        %4863 = vst [vmem:[%s207 + $0xf8] sm:$0xf] %v4799
        %4864 = vst [vmem:[%s207 + $0xfc] sm:$0xf] %v4800
        %s4865 = sand.u32 %s123, 1
        %s4866 = scalar_lea.sflag [#allocation3], %s4865
        %s4867 = sand.u32 %s123, 1
        %s4868 = smul.addr %s4867, 256
        %s4869 = scalar_lea.vmem [#allocation2], %s4868
        // Predicated region
        $region33: #{conv_layer.1} parent=31 // pred_check
          %p4870 = pneg %p133
        $region34: #{conv_layer.1} parent=31 // pred_check_branch
          %4872 = sbr.rel (%p4870) target = $region36
        $region35: #{conv_layer.1} parent=31 // pred_region
          %s4873 = smul.u32 16, %s23
          %4875 = vsyncadd %s4866, 0
          %s4876 = smul.addr %s4873, 4
          %s4877 = sadd.s32 %s24, %s4876
          %s4878 = smul.addr %s22, 128
          %s4879 = sadd.s32 %s4877, %s4878
          %s4880 = smul.addr %s4879, 4
          %s4881 = scalar_lea.hbm %s3, %s4880
          %s4882 = sshll.u32 %s4869, 4
          %s4883 = int_to_ptr.vmem [resolvable:$true] %s4882
          %s4884 = sshll.u32 %s4881, 4
          %s4885 = int_to_ptr.hbm [resolvable:$true] %s4884
          %4890 = dma.vmem_to_hbm [thread:$0]  %s4883, 4096, %s4885, %s4866, 64, 64, 4
        $region36: #{conv_layer.1} parent=31 // pred_fallthru
          _
      $region32: #{conv_layer.1} parent=5 // pred_fallthru
        _
      %p4891 = scmp.le.s32.totalorder 2, %s12
      // Predicated region
      $region37: #{conv_layer.1} parent=5 // pred_check
        %p4892 = pneg %p4891
      $region38: #{conv_layer.1} parent=5 // pred_check_branch
        %4894 = sbr.rel (%p4892) target = $region40
      $region39: #{conv_layer.1} parent=5 // pred_region
        %s4895 = ssub.s32 %s12, 2
        // Predicated region
        $region41: #{conv_layer.1} parent=39 // pred_check
          %p4896 = pneg %p139
        $region42: #{conv_layer.1} parent=39 // pred_check_branch
          %4898 = sbr.rel (%p4896) target = $region44
        $region43: #{conv_layer.1} parent=39 // pred_region
          %s4899 = sand.u32 %s124, 1
          %s4900 = scalar_lea.sflag [#allocation3], %s4899
          %s4901 = sand.u32 %s124, 1
          %s4902 = smul.addr %s4901, 256
          %s4903 = scalar_lea.vmem [#allocation2], %s4902
          %4905 = dma.done %s4900, 4096
        $region44: #{conv_layer.1} parent=39 // pred_fallthru
          _
      $region40: #{conv_layer.1} parent=5 // pred_fallthru
        _
    $region6: #{conv_layer.1} parent=1 // loop_footer
      %s16 = sadd.s32 1, %s12
    $region7: #{conv_layer.1} parent=1 // loop_footer_branch
      %11 = sbr.rel target = $region3
    $region8: #{conv_layer.1} parent=1 // loop_exit
      _
    %4906 = vsyncpa [#allocation3], 1
    %s4907 = scalar_lea.sflag [#allocation3], 1
    %4908 = vsyncpa %s4907, 1

</llo_original>
